<compile_context>
chip_gen: v7x
topology: tpu7x:2x2x1
jax: 0.10.0
libtpu: 0.0.40
codegen_flags: <defaults>
</compile_context>

<pallas_src>
import functools
import math

import jax
import jax.numpy as jnp
from jax.experimental import pallas as pl
from jax.experimental.pallas import tpu as pltpu


# -----------------------------------------------------------------------------
# In-kernel helpers (pure jnp, traced inside the Pallas kernel)
# -----------------------------------------------------------------------------
def _layernorm(y, gamma, beta, eps):
    mean = jnp.mean(y, axis=-1, keepdims=True)
    var = jnp.mean(jnp.square(y - mean), axis=-1, keepdims=True)
    return (y - mean) * jax.lax.rsqrt(var + eps) * gamma + beta


def _all_heads_attention(q, k, v, mask, wo, bo, *, H, cd, approx_recip):
    """Multi-head attention for one sequence, all heads batched on the MXU.

    q: (Sq, D) f32   k, v: (Sk, D) f32   mask: (Sq, Sk) f32 with 0 = masked
    wo: (D, D) cd    bo: (1, D) f32      returns (Sq, D) f32
    """
    Sq, D = q.shape
    Sk = k.shape[0]
    hd = D // H

    # One reshape + axis swap per tensor, then a single batched einsum over heads
    # (replaces the old per-head loop / lane slices / concat).
    qh = jnp.swapaxes(q.reshape(Sq, H, hd), 0, 1).astype(cd)   # (H, Sq, hd)
    kh = jnp.swapaxes(k.reshape(Sk, H, hd), 0, 1).astype(cd)   # (H, Sk, hd)
    vh = jnp.swapaxes(v.reshape(Sk, H, hd), 0, 1).astype(cd)   # (H, Sk, hd)

    e = jnp.einsum("hqd,hkd->hqk", qh, kh,
                   preferred_element_type=jnp.float32)          # (H, Sq, Sk) f32
    e = e * jnp.float32(1.0 / math.sqrt(hd))
    # In-kernel masking (mirrors masked_fill(mask == 0, -1e10)); mask broadcast over H.
    e = jnp.where(mask[None, :, :] == 0.0, jnp.float32(-1e10), e)

    # Softmax statistics in f32; reciprocal-multiply instead of a full divide.
    m = jnp.max(e, axis=-1, keepdims=True)
    p = jnp.exp(e - m)
    s = jnp.sum(p, axis=-1, keepdims=True)
    p = p * pl.reciprocal(s, approx=approx_recip)

    ctx = jnp.einsum("hqk,hkd->hqd", p.astype(cd), vh,
                     preferred_element_type=jnp.float32)        # (H, Sq, hd) f32
    concat = jnp.swapaxes(ctx, 0, 1).reshape(Sq, D)             # (Sq, D)
    return jnp.dot(concat.astype(cd), wo,
                   preferred_element_type=jnp.float32) + bo


# -----------------------------------------------------------------------------
# The fused decoder-layer kernel (one grid step == one batch element)
# -----------------------------------------------------------------------------
def _decoder_layer_kernel(
        x_ref, enc_ref, trg_mask_ref, src_mask_ref,
        sa_wqkv_ref, sa_bqkv_ref, sa_wo_ref, sa_bo_ref, ln1_g_ref, ln1_b_ref,
        ea_wq_ref, ea_bq_ref, ea_wkv_ref, ea_bkv_ref, ea_wo_ref, ea_bo_ref,
        ln2_g_ref, ln2_b_ref,
        ff_w1_ref, ff_b1_ref, ff_w2_ref, ff_b2_ref, ln3_g_ref, ln3_b_ref,
        out_ref, *, num_heads, eps, compute_dtype, approx_recip):
    D = x_ref.shape[-1]
    cd = compute_dtype

    x = x_ref[...]          # (Sq, D) f32
    enc = enc_ref[...]      # (Sk, D) f32

    # ---- stage 1: self-attention (fused QKV projection) + residual + LN1 ----
    qkv = jnp.dot(x.astype(cd), sa_wqkv_ref[...],
                  preferred_element_type=jnp.float32) + sa_bqkv_ref[...]
    sa = _all_heads_attention(qkv[:, :D], qkv[:, D:2 * D], qkv[:, 2 * D:],
                              trg_mask_ref[...], sa_wo_ref[...], sa_bo_ref[...],
                              H=num_heads, cd=cd, approx_recip=approx_recip)
    x1 = _layernorm(x + sa, ln1_g_ref[...], ln1_b_ref[...], eps)

    # ---- stage 2: encoder-decoder attention (fused KV projection) + LN2 ----
    q = jnp.dot(x1.astype(cd), ea_wq_ref[...],
                preferred_element_type=jnp.float32) + ea_bq_ref[...]
    kv = jnp.dot(enc.astype(cd), ea_wkv_ref[...],
                 preferred_element_type=jnp.float32) + ea_bkv_ref[...]
    ea = _all_heads_attention(q, kv[:, :D], kv[:, D:],
                              src_mask_ref[...], ea_wo_ref[...], ea_bo_ref[...],
                              H=num_heads, cd=cd, approx_recip=approx_recip)
    x2 = _layernorm(x1 + ea, ln2_g_ref[...], ln2_b_ref[...], eps)

    # ---- stage 3: position-wise feed-forward + residual + LN3 ----
    # TODO(synk): tile the d_ff reduction for large d_ff (v7x 64 MiB VMEM budget).
    h = jnp.dot(x2.astype(cd), ff_w1_ref[...],
                preferred_element_type=jnp.float32) + ff_b1_ref[...]
    h = jnp.maximum(h, 0.0)
    ff = jnp.dot(h.astype(cd), ff_w2_ref[...],
                 preferred_element_type=jnp.float32) + ff_b2_ref[...]
    x3 = _layernorm(x2 + ff, ln3_g_ref[...], ln3_b_ref[...], eps)

    out_ref[...] = x3.astype(out_ref.dtype)


# -----------------------------------------------------------------------------
# One-time parameter preparation: fuse QKV / KV weights, cast to compute dtype
# -----------------------------------------------------------------------------
def prepare_params(raw, compute_dtype=jnp.bfloat16):
    cd = jnp.dtype(compute_dtype)
    f32 = jnp.float32
    return {
        "sa_wqkv": jnp.concatenate([raw["sa_wq"], raw["sa_wk"], raw["sa_wv"]],
                                   axis=1).astype(cd),
        "sa_bqkv": jnp.concatenate([raw["sa_bq"], raw["sa_bk"], raw["sa_bv"]],
                                   axis=1).astype(f32),
        "sa_wo": raw["sa_wo"].astype(cd), "sa_bo": raw["sa_bo"].astype(f32),
        "ln1_g": raw["ln1_g"].astype(f32), "ln1_b": raw["ln1_b"].astype(f32),
        "ea_wq": raw["ea_wq"].astype(cd), "ea_bq": raw["ea_bq"].astype(f32),
        "ea_wkv": jnp.concatenate([raw["ea_wk"], raw["ea_wv"]], axis=1).astype(cd),
        "ea_bkv": jnp.concatenate([raw["ea_bk"], raw["ea_bv"]], axis=1).astype(f32),
        "ea_wo": raw["ea_wo"].astype(cd), "ea_bo": raw["ea_bo"].astype(f32),
        "ln2_g": raw["ln2_g"].astype(f32), "ln2_b": raw["ln2_b"].astype(f32),
        "ff_w1": raw["ff_w1"].astype(cd), "ff_b1": raw["ff_b1"].astype(f32),
        "ff_w2": raw["ff_w2"].astype(cd), "ff_b2": raw["ff_b2"].astype(f32),
        "ln3_g": raw["ln3_g"].astype(f32), "ln3_b": raw["ln3_b"].astype(f32),
    }


_WEIGHT_NAMES = ("sa_wqkv", "sa_bqkv", "sa_wo", "sa_bo", "ln1_g", "ln1_b",
                 "ea_wq", "ea_bq", "ea_wkv", "ea_bkv", "ea_wo", "ea_bo",
                 "ln2_g", "ln2_b",
                 "ff_w1", "ff_b1", "ff_w2", "ff_b2", "ln3_g", "ln3_b")


# -----------------------------------------------------------------------------
# Wrapper: batch grid, VMEM-resident weights, pipelined activation/mask blocks
# -----------------------------------------------------------------------------
@functools.partial(jax.jit, static_argnames=("num_heads",))
def decoder_layer(prepared, x, enc_output, trg_mask, src_mask, *, num_heads):
    B, Sq, D = x.shape
    Sk = enc_output.shape[1]
    d_ff = prepared["ff_w1"].shape[1]
    compute_dtype = prepared["sa_wqkv"].dtype
    approx_recip = bool(compute_dtype != jnp.float32)

    x = x.astype(jnp.float32)
    enc_output = enc_output.astype(jnp.float32)
    trg_mask = trg_mask.astype(jnp.float32)
    src_mask = src_mask.astype(jnp.float32)

    # Per-batch block (squeezed batch dim → kernel sees a 2-D (rows, D) tile).
    def _batch_spec(tail):
        tail = tuple(tail)
        return pl.BlockSpec((None,) + tail,
                            lambda b, _n=len(tail): (b,) + (0,) * _n)

    # Constant index_map → weight is DMA'd once and stays VMEM-resident.
    def _resident(shape):
        shape = tuple(shape)
        return pl.BlockSpec(shape, lambda b, _n=len(shape): (0,) * _n)

    weight_args = [prepared[n] for n in _WEIGHT_NAMES]

    # VMEM budget: resident weights + double-buffered activation/mask blocks + temps.
    weight_bytes = sum(int(v.size) * jnp.dtype(v.dtype).itemsize for v in weight_args)
    block_bytes = 4 * (2 * Sq * D + Sk * D + Sq * Sq + Sq * Sk)
    temp_bytes = 4 * (3 * Sq * D + Sq * d_ff
                      + 4 * num_heads * Sq * max(Sq, Sk) + 8 * Sq * D)
    vmem_limit = int(min(64 * 1024 * 1024,
                         max(16 * 1024 * 1024,
                             2 * (weight_bytes + 2 * block_bytes + temp_bytes))))

    kern = functools.partial(
        _decoder_layer_kernel, num_heads=num_heads, eps=1e-5,
        compute_dtype=compute_dtype, approx_recip=approx_recip)

    grid_spec = pltpu.PrefetchScalarGridSpec(
        num_scalar_prefetch=0,
        grid=(B,),
        in_specs=[_batch_spec((Sq, D)),       # x
                  _batch_spec((Sk, D)),       # enc_output
                  _batch_spec((Sq, Sq)),      # trg_mask
                  _batch_spec((Sq, Sk))]      # src_mask
                 + [_resident(prepared[n].shape) for n in _WEIGHT_NAMES],
        out_specs=pl.BlockSpec((None, Sq, D), lambda b: (b, 0, 0)),
    )

    return pl.pallas_call(
        kern,
        grid_spec=grid_spec,
        out_shape=jax.ShapeDtypeStruct((B, Sq, D), jnp.float32),
        compiler_params=pltpu.CompilerParams(
            dimension_semantics=("parallel",),   # shard batch over v7x's 2 TCs
            vmem_limit_bytes=vmem_limit),
    )(x, enc_output, trg_mask, src_mask, *weight_args)


# -----------------------------------------------------------------------------
# Pure-JAX reference (mirrors the PyTorch forward, dropout = identity)
# -----------------------------------------------------------------------------
def _ref_mha(x_q, x_kv, mask, wq, bq, wk, bk, wv, bv, wo, bo, num_heads):
    B, Sq, D = x_q.shape
    hd = D // num_heads

    def split(t):
        return t.reshape(B, -1, num_heads, hd).transpose(0, 2, 1, 3)

    q = split(x_q @ wq + bq[0])
    k = split(x_kv @ wk + bk[0])
    v = split(x_kv @ wv + bv[0])
    energy = jnp.einsum("bhqd,bhkd->bhqk", q, k) / math.sqrt(hd)
    energy = jnp.where(mask[:, None, :, :] == 0.0, -1e10, energy)
    attn = jax.nn.softmax(energy, axis=-1)
    out = jnp.einsum("bhqk,bhkd->bhqd", attn, v)
    out = out.transpose(0, 2, 1, 3).reshape(B, Sq, D)
    return out @ wo + bo[0]


def _ref_ln(y, g, b, eps=1e-5):
    mean = jnp.mean(y, axis=-1, keepdims=True)
    var = jnp.mean((y - mean) ** 2, axis=-1, keepdims=True)
    return (y - mean) / jnp.sqrt(var + eps) * g[0] + b[0]


def decoder_layer_ref(p, x, enc, trg_mask, src_mask, num_heads):
    sa = _ref_mha(x, x, trg_mask, p["sa_wq"], p["sa_bq"], p["sa_wk"], p["sa_bk"],
                  p["sa_wv"], p["sa_bv"], p["sa_wo"], p["sa_bo"], num_heads)
    x = _ref_ln(x + sa, p["ln1_g"], p["ln1_b"])
    ea = _ref_mha(x, enc, src_mask, p["ea_wq"], p["ea_bq"], p["ea_wk"], p["ea_bk"],
                  p["ea_wv"], p["ea_bv"], p["ea_wo"], p["ea_bo"], num_heads)
    x = _ref_ln(x + ea, p["ln2_g"], p["ln2_b"])
    ff = jnp.maximum(x @ p["ff_w1"] + p["ff_b1"][0], 0.0) @ p["ff_w2"] + p["ff_b2"][0]
    return _ref_ln(x + ff, p["ln3_g"], p["ln3_b"])


if __name__ == "__main__":
    B, S, D, H, D_FF = 2, 8, 32, 4, 64

    key = jax.random.PRNGKey(0)
    keys = iter(jax.random.split(key, 32))
    rnd = lambda shape, scale=0.05: (scale *
                                     jax.random.normal(next(keys), shape, jnp.float32))

    params = {
        # self-attention
        "sa_wq": rnd((D, D)), "sa_bq": rnd((1, D)),
        "sa_wk": rnd((D, D)), "sa_bk": rnd((1, D)),
        "sa_wv": rnd((D, D)), "sa_bv": rnd((1, D)),
        "sa_wo": rnd((D, D)), "sa_bo": rnd((1, D)),
        "ln1_g": jnp.ones((1, D), jnp.float32), "ln1_b": jnp.zeros((1, D), jnp.float32),
        # encoder-decoder attention
        "ea_wq": rnd((D, D)), "ea_bq": rnd((1, D)),
        "ea_wk": rnd((D, D)), "ea_bk": rnd((1, D)),
        "ea_wv": rnd((D, D)), "ea_bv": rnd((1, D)),
        "ea_wo": rnd((D, D)), "ea_bo": rnd((1, D)),
        "ln2_g": jnp.ones((1, D), jnp.float32), "ln2_b": jnp.zeros((1, D), jnp.float32),
        # feed-forward
        "ff_w1": rnd((D, D_FF)), "ff_b1": rnd((1, D_FF)),
        "ff_w2": rnd((D_FF, D)), "ff_b2": rnd((1, D)),
        "ln3_g": jnp.ones((1, D), jnp.float32), "ln3_b": jnp.zeros((1, D), jnp.float32),
    }

    x = jax.random.normal(next(keys), (B, S, D), jnp.float32)
    enc_out = jax.random.normal(next(keys), (B, S, D), jnp.float32)

    # causal target mask (B, S, S); encoder mask: all valid except last key of batch 1
    trg_mask = jnp.broadcast_to(jnp.tril(jnp.ones((S, S), jnp.float32)), (B, S, S))
    src_mask = jnp.ones((B, S, S), jnp.float32).at[1, :, -1].set(0.0)

    ref = decoder_layer_ref(params, x, enc_out, trg_mask, src_mask, H)

    # --- exact-precision path (f32 MXU operands): tight tolerance ---
    prep_f32 = prepare_params(params, compute_dtype=jnp.float32)
    out_f32 = jax.block_until_ready(
        decoder_layer(prep_f32, x, enc_out, trg_mask, src_mask, num_heads=H))
    assert out_f32.shape == (B, S, D)
    assert jnp.allclose(out_f32, ref, atol=1e-4, rtol=1e-4), \
        f"f32 max err {jnp.max(jnp.abs(out_f32 - ref))}"

    # --- performance path (bf16 MXU operands, f32 accumulation/stats): loose tol ---
    prep_bf16 = prepare_params(params, compute_dtype=jnp.bfloat16)
    out_bf16 = jax.block_until_ready(
        decoder_layer(prep_bf16, x, enc_out, trg_mask, src_mask, num_heads=H))
    assert out_bf16.shape == (B, S, D)
    assert jnp.allclose(out_bf16, ref, atol=3e-2, rtol=3e-2), \
        f"bf16 max err {jnp.max(jnp.abs(out_bf16 - ref))}"

    print("KERNEL_OK")
</pallas_src>

<mosaic_0001>
module attributes {stable_mosaic.version = 11 : i64} {
  func.func @_decoder_layer_kernel(%arg0: i32, %arg1: memref<1x8x32xf32, #tpu.memory_space<vmem>>, %arg2: memref<1x8x32xf32, #tpu.memory_space<vmem>>, %arg3: memref<1x8x8xf32, #tpu.memory_space<vmem>>, %arg4: memref<1x8x8xf32, #tpu.memory_space<vmem>>, %arg5: memref<32x96xf32, #tpu.memory_space<vmem>>, %arg6: memref<1x96xf32, #tpu.memory_space<vmem>>, %arg7: memref<32x32xf32, #tpu.memory_space<vmem>>, %arg8: memref<1x32xf32, #tpu.memory_space<vmem>>, %arg9: memref<1x32xf32, #tpu.memory_space<vmem>>, %arg10: memref<1x32xf32, #tpu.memory_space<vmem>>, %arg11: memref<32x32xf32, #tpu.memory_space<vmem>>, %arg12: memref<1x32xf32, #tpu.memory_space<vmem>>, %arg13: memref<32x64xf32, #tpu.memory_space<vmem>>, %arg14: memref<1x64xf32, #tpu.memory_space<vmem>>, %arg15: memref<32x32xf32, #tpu.memory_space<vmem>>, %arg16: memref<1x32xf32, #tpu.memory_space<vmem>>, %arg17: memref<1x32xf32, #tpu.memory_space<vmem>>, %arg18: memref<1x32xf32, #tpu.memory_space<vmem>>, %arg19: memref<32x64xf32, #tpu.memory_space<vmem>>, %arg20: memref<1x64xf32, #tpu.memory_space<vmem>>, %arg21: memref<64x32xf32, #tpu.memory_space<vmem>>, %arg22: memref<1x32xf32, #tpu.memory_space<vmem>>, %arg23: memref<1x32xf32, #tpu.memory_space<vmem>>, %arg24: memref<1x32xf32, #tpu.memory_space<vmem>>, %arg25: memref<1x8x32xf32, #tpu.memory_space<vmem>>) attributes {dimension_semantics = [#tpu.dimension_semantics<parallel>], iteration_bounds = array<i64: 2>, scalar_prefetch = 0 : i64, scratch_operands = 0 : i64, tpu.core_type = #tpu.core_type<tc>, window_params = [{transform_indices = @transform_0, window_bounds = array<i64: 1, 8, 32>}, {transform_indices = @transform_1, window_bounds = array<i64: 1, 8, 32>}, {transform_indices = @transform_2, window_bounds = array<i64: 1, 8, 8>}, {transform_indices = @transform_3, window_bounds = array<i64: 1, 8, 8>}, {pipeline_mode = #tpu.pipeline_mode<synchronous>, transform_indices = @transform_4, window_bounds = array<i64: 32, 96>}, {pipeline_mode = #tpu.pipeline_mode<synchronous>, transform_indices = @transform_5, window_bounds = array<i64: 1, 96>}, {pipeline_mode = #tpu.pipeline_mode<synchronous>, transform_indices = @transform_6, window_bounds = array<i64: 32, 32>}, {pipeline_mode = #tpu.pipeline_mode<synchronous>, transform_indices = @transform_7, window_bounds = array<i64: 1, 32>}, {pipeline_mode = #tpu.pipeline_mode<synchronous>, transform_indices = @transform_8, window_bounds = array<i64: 1, 32>}, {pipeline_mode = #tpu.pipeline_mode<synchronous>, transform_indices = @transform_9, window_bounds = array<i64: 1, 32>}, {pipeline_mode = #tpu.pipeline_mode<synchronous>, transform_indices = @transform_10, window_bounds = array<i64: 32, 32>}, {pipeline_mode = #tpu.pipeline_mode<synchronous>, transform_indices = @transform_11, window_bounds = array<i64: 1, 32>}, {pipeline_mode = #tpu.pipeline_mode<synchronous>, transform_indices = @transform_12, window_bounds = array<i64: 32, 64>}, {pipeline_mode = #tpu.pipeline_mode<synchronous>, transform_indices = @transform_13, window_bounds = array<i64: 1, 64>}, {pipeline_mode = #tpu.pipeline_mode<synchronous>, transform_indices = @transform_14, window_bounds = array<i64: 32, 32>}, {pipeline_mode = #tpu.pipeline_mode<synchronous>, transform_indices = @transform_15, window_bounds = array<i64: 1, 32>}, {pipeline_mode = #tpu.pipeline_mode<synchronous>, transform_indices = @transform_16, window_bounds = array<i64: 1, 32>}, {pipeline_mode = #tpu.pipeline_mode<synchronous>, transform_indices = @transform_17, window_bounds = array<i64: 1, 32>}, {pipeline_mode = #tpu.pipeline_mode<synchronous>, transform_indices = @transform_18, window_bounds = array<i64: 32, 64>}, {pipeline_mode = #tpu.pipeline_mode<synchronous>, transform_indices = @transform_19, window_bounds = array<i64: 1, 64>}, {pipeline_mode = #tpu.pipeline_mode<synchronous>, transform_indices = @transform_20, window_bounds = array<i64: 64, 32>}, {pipeline_mode = #tpu.pipeline_mode<synchronous>, transform_indices = @transform_21, window_bounds = array<i64: 1, 32>}, {pipeline_mode = #tpu.pipeline_mode<synchronous>, transform_indices = @transform_22, window_bounds = array<i64: 1, 32>}, {pipeline_mode = #tpu.pipeline_mode<synchronous>, transform_indices = @transform_23, window_bounds = array<i64: 1, 32>}, {transform_indices = @transform_24, window_bounds = array<i64: 1, 8, 32>}]} {
    %c0 = arith.constant 0 : index
    %c0_0 = arith.constant 0 : index
    %c0_1 = arith.constant 0 : index
    %0 = vector.load %arg1[%c0, %c0_0, %c0_1] : memref<1x8x32xf32, #tpu.memory_space<vmem>>, vector<1x8x32xf32>
    %1 = vector.shape_cast %0 : vector<1x8x32xf32> to vector<8x32xf32>
    %c0_2 = arith.constant 0 : index
    %c0_3 = arith.constant 0 : index
    %c0_4 = arith.constant 0 : index
    %2 = vector.load %arg2[%c0_2, %c0_3, %c0_4] : memref<1x8x32xf32, #tpu.memory_space<vmem>>, vector<1x8x32xf32>
    %3 = vector.shape_cast %2 : vector<1x8x32xf32> to vector<8x32xf32>
    %c0_5 = arith.constant 0 : index
    %c0_6 = arith.constant 0 : index
    %4 = vector.load %arg5[%c0_5, %c0_6] : memref<32x96xf32, #tpu.memory_space<vmem>>, vector<32x96xf32>
    %cst = arith.constant dense<0.000000e+00> : vector<8x96xf32>
    %5 = tpu.matmul %1, %4, %cst {dimension_numbers = #tpu.dot_dimension_numbers<[1], [0], [0], [1], [0, 0, 1, 1], [], []>} : vector<8x32xf32>, vector<32x96xf32>, vector<8x96xf32> -> vector<8x96xf32>
    %c0_7 = arith.constant 0 : index
    %c0_8 = arith.constant 0 : index
    %6 = vector.load %arg6[%c0_7, %c0_8] : memref<1x96xf32, #tpu.memory_space<vmem>>, vector<1x96xf32>
    %7 = vector.broadcast %6 : vector<1x96xf32> to vector<8x96xf32>
    %8 = arith.addf %5, %7 : vector<8x96xf32>
    %9 = vector.extract_strided_slice %8 {offsets = [0, 0], sizes = [8, 32], strides = [1, 1]} : vector<8x96xf32> to vector<8x32xf32>
    %10 = vector.extract_strided_slice %8 {offsets = [0, 32], sizes = [8, 32], strides = [1, 1]} : vector<8x96xf32> to vector<8x32xf32>
    %11 = vector.extract_strided_slice %8 {offsets = [0, 64], sizes = [8, 32], strides = [1, 1]} : vector<8x96xf32> to vector<8x32xf32>
    %c0_9 = arith.constant 0 : index
    %c0_10 = arith.constant 0 : index
    %c0_11 = arith.constant 0 : index
    %12 = vector.load %arg3[%c0_9, %c0_10, %c0_11] : memref<1x8x8xf32, #tpu.memory_space<vmem>>, vector<1x8x8xf32>
    %13 = vector.shape_cast %12 : vector<1x8x8xf32> to vector<8x8xf32>
    %c0_12 = arith.constant 0 : index
    %c0_13 = arith.constant 0 : index
    %14 = vector.load %arg7[%c0_12, %c0_13] : memref<32x32xf32, #tpu.memory_space<vmem>>, vector<32x32xf32>
    %c0_14 = arith.constant 0 : index
    %c0_15 = arith.constant 0 : index
    %15 = vector.load %arg8[%c0_14, %c0_15] : memref<1x32xf32, #tpu.memory_space<vmem>>, vector<1x32xf32>
    %16 = vector.shape_cast %9 : vector<8x32xf32> to vector<8x4x8xf32>
    %17 = tpu.transpose %16, [1, 0, 2] : vector<8x4x8xf32> -> vector<4x8x8xf32>
    %18 = vector.shape_cast %10 : vector<8x32xf32> to vector<8x4x8xf32>
    %19 = tpu.transpose %18, [1, 0, 2] : vector<8x4x8xf32> -> vector<4x8x8xf32>
    %20 = vector.shape_cast %11 : vector<8x32xf32> to vector<8x4x8xf32>
    %21 = tpu.transpose %20, [1, 0, 2] : vector<8x4x8xf32> -> vector<4x8x8xf32>
    "tpu.trace_start"() <{level = 10 : i32, message = "hqd,hkd->hqk"}> : () -> ()
    %cst_16 = arith.constant dense<0.000000e+00> : vector<4x8x8xf32>
    %22 = tpu.matmul %17, %19, %cst_16 {dimension_numbers = #tpu.dot_dimension_numbers<[2], [2], [1], [1], [0, 0, 0, 1, 1, 1], [0], [0]>} : vector<4x8x8xf32>, vector<4x8x8xf32>, vector<4x8x8xf32> -> vector<4x8x8xf32>
    "tpu.trace_stop"() : () -> ()
    %cst_17 = arith.constant 0.353553385 : f32
    %23 = vector.broadcast %cst_17 : f32 to vector<4x8x8xf32>
    %24 = arith.mulf %22, %23 : vector<4x8x8xf32>
    %25 = vector.shape_cast %13 : vector<8x8xf32> to vector<1x8x8xf32>
    %cst_18 = arith.constant 0.000000e+00 : f32
    %26 = vector.broadcast %cst_18 : f32 to vector<1x8x8xf32>
    %27 = arith.cmpf oeq, %25, %26 : vector<1x8x8xf32>
    %cst_19 = arith.constant -1.000000e+10 : f32
    %28 = vector.shape_cast %27 : vector<1x8x8xi1> to vector<1x8x8xi1>
    %29 = vector.broadcast %28 : vector<1x8x8xi1> to vector<4x8x8xi1>
    %30 = vector.broadcast %cst_19 : f32 to vector<4x8x8xf32>
    %31 = arith.select %29, %30, %24 : vector<4x8x8xi1>, vector<4x8x8xf32>
    %cst_20 = arith.constant dense<0xFF800000> : vector<4x8xf32>
    %32 = vector.multi_reduction <maximumf>, %31, %cst_20 [2] : vector<4x8x8xf32> to vector<4x8xf32>
    %33 = vector.shape_cast %32 : vector<4x8xf32> to vector<4x8x1xf32>
    %34 = vector.broadcast %33 : vector<4x8x1xf32> to vector<4x8x8xf32>
    %35 = arith.subf %31, %34 : vector<4x8x8xf32>
    %36 = math.exp %35 : vector<4x8x8xf32>
    %cst_21 = arith.constant dense<0.000000e+00> : vector<4x8xf32>
    %37 = vector.multi_reduction <add>, %36, %cst_21 [2] : vector<4x8x8xf32> to vector<4x8xf32>
    %38 = vector.shape_cast %37 : vector<4x8xf32> to vector<4x8x1xf32>
    %39 = tpu.reciprocal %38 : vector<4x8x1xf32> -> vector<4x8x1xf32>
    %40 = vector.broadcast %39 : vector<4x8x1xf32> to vector<4x8x8xf32>
    %41 = arith.mulf %36, %40 : vector<4x8x8xf32>
    "tpu.trace_start"() <{level = 10 : i32, message = "hqk,hkd->hqd"}> : () -> ()
    %cst_22 = arith.constant dense<0.000000e+00> : vector<4x8x8xf32>
    %42 = tpu.matmul %41, %21, %cst_22 {dimension_numbers = #tpu.dot_dimension_numbers<[2], [1], [1], [2], [0, 0, 0, 1, 1, 2], [0], [0]>} : vector<4x8x8xf32>, vector<4x8x8xf32>, vector<4x8x8xf32> -> vector<4x8x8xf32>
    "tpu.trace_stop"() : () -> ()
    %43 = tpu.transpose %42, [1, 0, 2] : vector<4x8x8xf32> -> vector<8x4x8xf32>
    %44 = vector.shape_cast %43 : vector<8x4x8xf32> to vector<8x32xf32>
    %cst_23 = arith.constant dense<0.000000e+00> : vector<8x32xf32>
    %45 = tpu.matmul %44, %14, %cst_23 {dimension_numbers = #tpu.dot_dimension_numbers<[1], [0], [0], [1], [0, 0, 1, 1], [], []>} : vector<8x32xf32>, vector<32x32xf32>, vector<8x32xf32> -> vector<8x32xf32>
    %46 = vector.broadcast %15 : vector<1x32xf32> to vector<8x32xf32>
    %47 = arith.addf %45, %46 : vector<8x32xf32>
    %48 = arith.addf %1, %47 : vector<8x32xf32>
    %c0_24 = arith.constant 0 : index
    %c0_25 = arith.constant 0 : index
    %49 = vector.load %arg9[%c0_24, %c0_25] : memref<1x32xf32, #tpu.memory_space<vmem>>, vector<1x32xf32>
    %c0_26 = arith.constant 0 : index
    %c0_27 = arith.constant 0 : index
    %50 = vector.load %arg10[%c0_26, %c0_27] : memref<1x32xf32, #tpu.memory_space<vmem>>, vector<1x32xf32>
    %cst_28 = arith.constant dense<0.000000e+00> : vector<8xf32>
    %51 = vector.multi_reduction <add>, %48, %cst_28 [1] : vector<8x32xf32> to vector<8xf32>
    %52 = vector.shape_cast %51 : vector<8xf32> to vector<8x1xf32>
    %cst_29 = arith.constant 3.200000e+01 : f32
    %53 = vector.broadcast %cst_29 : f32 to vector<8x1xf32>
    %54 = arith.divf %52, %53 : vector<8x1xf32>
    %55 = vector.broadcast %54 : vector<8x1xf32> to vector<8x32xf32>
    %56 = arith.subf %48, %55 : vector<8x32xf32>
    %57 = arith.mulf %56, %56 : vector<8x32xf32>
    %cst_30 = arith.constant dense<0.000000e+00> : vector<8xf32>
    %58 = vector.multi_reduction <add>, %57, %cst_30 [1] : vector<8x32xf32> to vector<8xf32>
    %59 = vector.shape_cast %58 : vector<8xf32> to vector<8x1xf32>
    %cst_31 = arith.constant 3.200000e+01 : f32
    %60 = vector.broadcast %cst_31 : f32 to vector<8x1xf32>
    %61 = arith.divf %59, %60 : vector<8x1xf32>
    %62 = vector.broadcast %54 : vector<8x1xf32> to vector<8x32xf32>
    %63 = arith.subf %48, %62 : vector<8x32xf32>
    %cst_32 = arith.constant 9.99999974E-6 : f32
    %64 = vector.broadcast %cst_32 : f32 to vector<8x1xf32>
    %65 = arith.addf %61, %64 : vector<8x1xf32>
    %66 = math.rsqrt %65 : vector<8x1xf32>
    %67 = vector.broadcast %66 : vector<8x1xf32> to vector<8x32xf32>
    %68 = arith.mulf %63, %67 : vector<8x32xf32>
    %69 = vector.broadcast %49 : vector<1x32xf32> to vector<8x32xf32>
    %70 = arith.mulf %68, %69 : vector<8x32xf32>
    %71 = vector.broadcast %50 : vector<1x32xf32> to vector<8x32xf32>
    %72 = arith.addf %70, %71 : vector<8x32xf32>
    %c0_33 = arith.constant 0 : index
    %c0_34 = arith.constant 0 : index
    %73 = vector.load %arg11[%c0_33, %c0_34] : memref<32x32xf32, #tpu.memory_space<vmem>>, vector<32x32xf32>
    %cst_35 = arith.constant dense<0.000000e+00> : vector<8x32xf32>
    %74 = tpu.matmul %72, %73, %cst_35 {dimension_numbers = #tpu.dot_dimension_numbers<[1], [0], [0], [1], [0, 0, 1, 1], [], []>} : vector<8x32xf32>, vector<32x32xf32>, vector<8x32xf32> -> vector<8x32xf32>
    %c0_36 = arith.constant 0 : index
    %c0_37 = arith.constant 0 : index
    %75 = vector.load %arg12[%c0_36, %c0_37] : memref<1x32xf32, #tpu.memory_space<vmem>>, vector<1x32xf32>
    %76 = vector.broadcast %75 : vector<1x32xf32> to vector<8x32xf32>
    %77 = arith.addf %74, %76 : vector<8x32xf32>
    %c0_38 = arith.constant 0 : index
    %c0_39 = arith.constant 0 : index
    %78 = vector.load %arg13[%c0_38, %c0_39] : memref<32x64xf32, #tpu.memory_space<vmem>>, vector<32x64xf32>
    %cst_40 = arith.constant dense<0.000000e+00> : vector<8x64xf32>
    %79 = tpu.matmul %3, %78, %cst_40 {dimension_numbers = #tpu.dot_dimension_numbers<[1], [0], [0], [1], [0, 0, 1, 1], [], []>} : vector<8x32xf32>, vector<32x64xf32>, vector<8x64xf32> -> vector<8x64xf32>
    %c0_41 = arith.constant 0 : index
    %c0_42 = arith.constant 0 : index
    %80 = vector.load %arg14[%c0_41, %c0_42] : memref<1x64xf32, #tpu.memory_space<vmem>>, vector<1x64xf32>
    %81 = vector.broadcast %80 : vector<1x64xf32> to vector<8x64xf32>
    %82 = arith.addf %79, %81 : vector<8x64xf32>
    %83 = vector.extract_strided_slice %82 {offsets = [0, 0], sizes = [8, 32], strides = [1, 1]} : vector<8x64xf32> to vector<8x32xf32>
    %84 = vector.extract_strided_slice %82 {offsets = [0, 32], sizes = [8, 32], strides = [1, 1]} : vector<8x64xf32> to vector<8x32xf32>
    %c0_43 = arith.constant 0 : index
    %c0_44 = arith.constant 0 : index
    %c0_45 = arith.constant 0 : index
    %85 = vector.load %arg4[%c0_43, %c0_44, %c0_45] : memref<1x8x8xf32, #tpu.memory_space<vmem>>, vector<1x8x8xf32>
    %86 = vector.shape_cast %85 : vector<1x8x8xf32> to vector<8x8xf32>
    %c0_46 = arith.constant 0 : index
    %c0_47 = arith.constant 0 : index
    %87 = vector.load %arg15[%c0_46, %c0_47] : memref<32x32xf32, #tpu.memory_space<vmem>>, vector<32x32xf32>
    %c0_48 = arith.constant 0 : index
    %c0_49 = arith.constant 0 : index
    %88 = vector.load %arg16[%c0_48, %c0_49] : memref<1x32xf32, #tpu.memory_space<vmem>>, vector<1x32xf32>
    %89 = vector.shape_cast %77 : vector<8x32xf32> to vector<8x4x8xf32>
    %90 = tpu.transpose %89, [1, 0, 2] : vector<8x4x8xf32> -> vector<4x8x8xf32>
    %91 = vector.shape_cast %83 : vector<8x32xf32> to vector<8x4x8xf32>
    %92 = tpu.transpose %91, [1, 0, 2] : vector<8x4x8xf32> -> vector<4x8x8xf32>
    %93 = vector.shape_cast %84 : vector<8x32xf32> to vector<8x4x8xf32>
    %94 = tpu.transpose %93, [1, 0, 2] : vector<8x4x8xf32> -> vector<4x8x8xf32>
    "tpu.trace_start"() <{level = 10 : i32, message = "hqd,hkd->hqk"}> : () -> ()
    %cst_50 = arith.constant dense<0.000000e+00> : vector<4x8x8xf32>
    %95 = tpu.matmul %90, %92, %cst_50 {dimension_numbers = #tpu.dot_dimension_numbers<[2], [2], [1], [1], [0, 0, 0, 1, 1, 1], [0], [0]>} : vector<4x8x8xf32>, vector<4x8x8xf32>, vector<4x8x8xf32> -> vector<4x8x8xf32>
    "tpu.trace_stop"() : () -> ()
    %cst_51 = arith.constant 0.353553385 : f32
    %96 = vector.broadcast %cst_51 : f32 to vector<4x8x8xf32>
    %97 = arith.mulf %95, %96 : vector<4x8x8xf32>
    %98 = vector.shape_cast %86 : vector<8x8xf32> to vector<1x8x8xf32>
    %cst_52 = arith.constant 0.000000e+00 : f32
    %99 = vector.broadcast %cst_52 : f32 to vector<1x8x8xf32>
    %100 = arith.cmpf oeq, %98, %99 : vector<1x8x8xf32>
    %cst_53 = arith.constant -1.000000e+10 : f32
    %101 = vector.shape_cast %100 : vector<1x8x8xi1> to vector<1x8x8xi1>
    %102 = vector.broadcast %101 : vector<1x8x8xi1> to vector<4x8x8xi1>
    %103 = vector.broadcast %cst_53 : f32 to vector<4x8x8xf32>
    %104 = arith.select %102, %103, %97 : vector<4x8x8xi1>, vector<4x8x8xf32>
    %cst_54 = arith.constant dense<0xFF800000> : vector<4x8xf32>
    %105 = vector.multi_reduction <maximumf>, %104, %cst_54 [2] : vector<4x8x8xf32> to vector<4x8xf32>
    %106 = vector.shape_cast %105 : vector<4x8xf32> to vector<4x8x1xf32>
    %107 = vector.broadcast %106 : vector<4x8x1xf32> to vector<4x8x8xf32>
    %108 = arith.subf %104, %107 : vector<4x8x8xf32>
    %109 = math.exp %108 : vector<4x8x8xf32>
    %cst_55 = arith.constant dense<0.000000e+00> : vector<4x8xf32>
    %110 = vector.multi_reduction <add>, %109, %cst_55 [2] : vector<4x8x8xf32> to vector<4x8xf32>
    %111 = vector.shape_cast %110 : vector<4x8xf32> to vector<4x8x1xf32>
    %112 = tpu.reciprocal %111 : vector<4x8x1xf32> -> vector<4x8x1xf32>
    %113 = vector.broadcast %112 : vector<4x8x1xf32> to vector<4x8x8xf32>
    %114 = arith.mulf %109, %113 : vector<4x8x8xf32>
    "tpu.trace_start"() <{level = 10 : i32, message = "hqk,hkd->hqd"}> : () -> ()
    %cst_56 = arith.constant dense<0.000000e+00> : vector<4x8x8xf32>
    %115 = tpu.matmul %114, %94, %cst_56 {dimension_numbers = #tpu.dot_dimension_numbers<[2], [1], [1], [2], [0, 0, 0, 1, 1, 2], [0], [0]>} : vector<4x8x8xf32>, vector<4x8x8xf32>, vector<4x8x8xf32> -> vector<4x8x8xf32>
    "tpu.trace_stop"() : () -> ()
    %116 = tpu.transpose %115, [1, 0, 2] : vector<4x8x8xf32> -> vector<8x4x8xf32>
    %117 = vector.shape_cast %116 : vector<8x4x8xf32> to vector<8x32xf32>
    %cst_57 = arith.constant dense<0.000000e+00> : vector<8x32xf32>
    %118 = tpu.matmul %117, %87, %cst_57 {dimension_numbers = #tpu.dot_dimension_numbers<[1], [0], [0], [1], [0, 0, 1, 1], [], []>} : vector<8x32xf32>, vector<32x32xf32>, vector<8x32xf32> -> vector<8x32xf32>
    %119 = vector.broadcast %88 : vector<1x32xf32> to vector<8x32xf32>
    %120 = arith.addf %118, %119 : vector<8x32xf32>
    %121 = arith.addf %72, %120 : vector<8x32xf32>
    %c0_58 = arith.constant 0 : index
    %c0_59 = arith.constant 0 : index
    %122 = vector.load %arg17[%c0_58, %c0_59] : memref<1x32xf32, #tpu.memory_space<vmem>>, vector<1x32xf32>
    %c0_60 = arith.constant 0 : index
    %c0_61 = arith.constant 0 : index
    %123 = vector.load %arg18[%c0_60, %c0_61] : memref<1x32xf32, #tpu.memory_space<vmem>>, vector<1x32xf32>
    %cst_62 = arith.constant dense<0.000000e+00> : vector<8xf32>
    %124 = vector.multi_reduction <add>, %121, %cst_62 [1] : vector<8x32xf32> to vector<8xf32>
    %125 = vector.shape_cast %124 : vector<8xf32> to vector<8x1xf32>
    %cst_63 = arith.constant 3.200000e+01 : f32
    %126 = vector.broadcast %cst_63 : f32 to vector<8x1xf32>
    %127 = arith.divf %125, %126 : vector<8x1xf32>
    %128 = vector.broadcast %127 : vector<8x1xf32> to vector<8x32xf32>
    %129 = arith.subf %121, %128 : vector<8x32xf32>
    %130 = arith.mulf %129, %129 : vector<8x32xf32>
    %cst_64 = arith.constant dense<0.000000e+00> : vector<8xf32>
    %131 = vector.multi_reduction <add>, %130, %cst_64 [1] : vector<8x32xf32> to vector<8xf32>
    %132 = vector.shape_cast %131 : vector<8xf32> to vector<8x1xf32>
    %cst_65 = arith.constant 3.200000e+01 : f32
    %133 = vector.broadcast %cst_65 : f32 to vector<8x1xf32>
    %134 = arith.divf %132, %133 : vector<8x1xf32>
    %135 = vector.broadcast %127 : vector<8x1xf32> to vector<8x32xf32>
    %136 = arith.subf %121, %135 : vector<8x32xf32>
    %cst_66 = arith.constant 9.99999974E-6 : f32
    %137 = vector.broadcast %cst_66 : f32 to vector<8x1xf32>
    %138 = arith.addf %134, %137 : vector<8x1xf32>
    %139 = math.rsqrt %138 : vector<8x1xf32>
    %140 = vector.broadcast %139 : vector<8x1xf32> to vector<8x32xf32>
    %141 = arith.mulf %136, %140 : vector<8x32xf32>
    %142 = vector.broadcast %122 : vector<1x32xf32> to vector<8x32xf32>
    %143 = arith.mulf %141, %142 : vector<8x32xf32>
    %144 = vector.broadcast %123 : vector<1x32xf32> to vector<8x32xf32>
    %145 = arith.addf %143, %144 : vector<8x32xf32>
    %c0_67 = arith.constant 0 : index
    %c0_68 = arith.constant 0 : index
    %146 = vector.load %arg19[%c0_67, %c0_68] : memref<32x64xf32, #tpu.memory_space<vmem>>, vector<32x64xf32>
    %cst_69 = arith.constant dense<0.000000e+00> : vector<8x64xf32>
    %147 = tpu.matmul %145, %146, %cst_69 {dimension_numbers = #tpu.dot_dimension_numbers<[1], [0], [0], [1], [0, 0, 1, 1], [], []>} : vector<8x32xf32>, vector<32x64xf32>, vector<8x64xf32> -> vector<8x64xf32>
    %c0_70 = arith.constant 0 : index
    %c0_71 = arith.constant 0 : index
    %148 = vector.load %arg20[%c0_70, %c0_71] : memref<1x64xf32, #tpu.memory_space<vmem>>, vector<1x64xf32>
    %149 = vector.broadcast %148 : vector<1x64xf32> to vector<8x64xf32>
    %150 = arith.addf %147, %149 : vector<8x64xf32>
    %cst_72 = arith.constant 0.000000e+00 : f32
    %151 = vector.broadcast %cst_72 : f32 to vector<8x64xf32>
    %152 = arith.maximumf %150, %151 : vector<8x64xf32>
    %c0_73 = arith.constant 0 : index
    %c0_74 = arith.constant 0 : index
    %153 = vector.load %arg21[%c0_73, %c0_74] : memref<64x32xf32, #tpu.memory_space<vmem>>, vector<64x32xf32>
    %cst_75 = arith.constant dense<0.000000e+00> : vector<8x32xf32>
    %154 = tpu.matmul %152, %153, %cst_75 {dimension_numbers = #tpu.dot_dimension_numbers<[1], [0], [0], [1], [0, 0, 1, 1], [], []>} : vector<8x64xf32>, vector<64x32xf32>, vector<8x32xf32> -> vector<8x32xf32>
    %c0_76 = arith.constant 0 : index
    %c0_77 = arith.constant 0 : index
    %155 = vector.load %arg22[%c0_76, %c0_77] : memref<1x32xf32, #tpu.memory_space<vmem>>, vector<1x32xf32>
    %156 = vector.broadcast %155 : vector<1x32xf32> to vector<8x32xf32>
    %157 = arith.addf %154, %156 : vector<8x32xf32>
    %158 = arith.addf %145, %157 : vector<8x32xf32>
    %c0_78 = arith.constant 0 : index
    %c0_79 = arith.constant 0 : index
    %159 = vector.load %arg23[%c0_78, %c0_79] : memref<1x32xf32, #tpu.memory_space<vmem>>, vector<1x32xf32>
    %c0_80 = arith.constant 0 : index
    %c0_81 = arith.constant 0 : index
    %160 = vector.load %arg24[%c0_80, %c0_81] : memref<1x32xf32, #tpu.memory_space<vmem>>, vector<1x32xf32>
    %cst_82 = arith.constant dense<0.000000e+00> : vector<8xf32>
    %161 = vector.multi_reduction <add>, %158, %cst_82 [1] : vector<8x32xf32> to vector<8xf32>
    %162 = vector.shape_cast %161 : vector<8xf32> to vector<8x1xf32>
    %cst_83 = arith.constant 3.200000e+01 : f32
    %163 = vector.broadcast %cst_83 : f32 to vector<8x1xf32>
    %164 = arith.divf %162, %163 : vector<8x1xf32>
    %165 = vector.broadcast %164 : vector<8x1xf32> to vector<8x32xf32>
    %166 = arith.subf %158, %165 : vector<8x32xf32>
    %167 = arith.mulf %166, %166 : vector<8x32xf32>
    %cst_84 = arith.constant dense<0.000000e+00> : vector<8xf32>
    %168 = vector.multi_reduction <add>, %167, %cst_84 [1] : vector<8x32xf32> to vector<8xf32>
    %169 = vector.shape_cast %168 : vector<8xf32> to vector<8x1xf32>
    %cst_85 = arith.constant 3.200000e+01 : f32
    %170 = vector.broadcast %cst_85 : f32 to vector<8x1xf32>
    %171 = arith.divf %169, %170 : vector<8x1xf32>
    %172 = vector.broadcast %164 : vector<8x1xf32> to vector<8x32xf32>
    %173 = arith.subf %158, %172 : vector<8x32xf32>
    %cst_86 = arith.constant 9.99999974E-6 : f32
    %174 = vector.broadcast %cst_86 : f32 to vector<8x1xf32>
    %175 = arith.addf %171, %174 : vector<8x1xf32>
    %176 = math.rsqrt %175 : vector<8x1xf32>
    %177 = vector.broadcast %176 : vector<8x1xf32> to vector<8x32xf32>
    %178 = arith.mulf %173, %177 : vector<8x32xf32>
    %179 = vector.broadcast %159 : vector<1x32xf32> to vector<8x32xf32>
    %180 = arith.mulf %178, %179 : vector<8x32xf32>
    %181 = vector.broadcast %160 : vector<1x32xf32> to vector<8x32xf32>
    %182 = arith.addf %180, %181 : vector<8x32xf32>
    %c0_87 = arith.constant 0 : index
    %c0_88 = arith.constant 0 : index
    %c0_89 = arith.constant 0 : index
    %183 = vector.load %arg25[%c0_87, %c0_88, %c0_89] : memref<1x8x32xf32, #tpu.memory_space<vmem>>, vector<1x8x32xf32>
    %184 = vector.shape_cast %183 : vector<1x8x32xf32> to vector<8x32xf32>
    %185 = vector.shape_cast %182 : vector<8x32xf32> to vector<1x8x32xf32>
    tpu.vector_store %arg25[%c0_87, %c0_88, %c0_89], %185 {strides = array<i32>} : memref<1x8x32xf32, #tpu.memory_space<vmem>>, vector<1x8x32xf32>,
    return
  }
  func.func @transform_0(%arg0: i32) -> (i32, i32, i32) {
    %c0_i32 = arith.constant 0 : i32
    %c0_i32_0 = arith.constant 0 : i32
    %c0_i32_1 = arith.constant 0 : i32
    return %arg0, %c0_i32, %c0_i32_0 : i32, i32, i32
  }
  func.func @transform_1(%arg0: i32) -> (i32, i32, i32) {
    %c0_i32 = arith.constant 0 : i32
    %c0_i32_0 = arith.constant 0 : i32
    %c0_i32_1 = arith.constant 0 : i32
    return %arg0, %c0_i32, %c0_i32_0 : i32, i32, i32
  }
  func.func @transform_2(%arg0: i32) -> (i32, i32, i32) {
    %c0_i32 = arith.constant 0 : i32
    %c0_i32_0 = arith.constant 0 : i32
    %c0_i32_1 = arith.constant 0 : i32
    return %arg0, %c0_i32, %c0_i32_0 : i32, i32, i32
  }
  func.func @transform_3(%arg0: i32) -> (i32, i32, i32) {
    %c0_i32 = arith.constant 0 : i32
    %c0_i32_0 = arith.constant 0 : i32
    %c0_i32_1 = arith.constant 0 : i32
    return %arg0, %c0_i32, %c0_i32_0 : i32, i32, i32
  }
  func.func @transform_4(%arg0: i32) -> (i32, i32) {
    %c0_i32 = arith.constant 0 : i32
    %c0_i32_0 = arith.constant 0 : i32
    %c0_i32_1 = arith.constant 0 : i32
    return %c0_i32, %c0_i32_0 : i32, i32
  }
  func.func @transform_5(%arg0: i32) -> (i32, i32) {
    %c0_i32 = arith.constant 0 : i32
    %c0_i32_0 = arith.constant 0 : i32
    %c0_i32_1 = arith.constant 0 : i32
    return %c0_i32, %c0_i32_0 : i32, i32
  }
  func.func @transform_6(%arg0: i32) -> (i32, i32) {
    %c0_i32 = arith.constant 0 : i32
    %c0_i32_0 = arith.constant 0 : i32
    %c0_i32_1 = arith.constant 0 : i32
    return %c0_i32, %c0_i32_0 : i32, i32
  }
  func.func @transform_7(%arg0: i32) -> (i32, i32) {
    %c0_i32 = arith.constant 0 : i32
    %c0_i32_0 = arith.constant 0 : i32
    %c0_i32_1 = arith.constant 0 : i32
    return %c0_i32, %c0_i32_0 : i32, i32
  }
  func.func @transform_8(%arg0: i32) -> (i32, i32) {
    %c0_i32 = arith.constant 0 : i32
    %c0_i32_0 = arith.constant 0 : i32
    %c0_i32_1 = arith.constant 0 : i32
    return %c0_i32, %c0_i32_0 : i32, i32
  }
  func.func @transform_9(%arg0: i32) -> (i32, i32) {
    %c0_i32 = arith.constant 0 : i32
    %c0_i32_0 = arith.constant 0 : i32
    %c0_i32_1 = arith.constant 0 : i32
    return %c0_i32, %c0_i32_0 : i32, i32
  }
  func.func @transform_10(%arg0: i32) -> (i32, i32) {
    %c0_i32 = arith.constant 0 : i32
    %c0_i32_0 = arith.constant 0 : i32
    %c0_i32_1 = arith.constant 0 : i32
    return %c0_i32, %c0_i32_0 : i32, i32
  }
  func.func @transform_11(%arg0: i32) -> (i32, i32) {
    %c0_i32 = arith.constant 0 : i32
    %c0_i32_0 = arith.constant 0 : i32
    %c0_i32_1 = arith.constant 0 : i32
    return %c0_i32, %c0_i32_0 : i32, i32
  }
  func.func @transform_12(%arg0: i32) -> (i32, i32) {
    %c0_i32 = arith.constant 0 : i32
    %c0_i32_0 = arith.constant 0 : i32
    %c0_i32_1 = arith.constant 0 : i32
    return %c0_i32, %c0_i32_0 : i32, i32
  }
  func.func @transform_13(%arg0: i32) -> (i32, i32) {
    %c0_i32 = arith.constant 0 : i32
    %c0_i32_0 = arith.constant 0 : i32
    %c0_i32_1 = arith.constant 0 : i32
    return %c0_i32, %c0_i32_0 : i32, i32
  }
  func.func @transform_14(%arg0: i32) -> (i32, i32) {
    %c0_i32 = arith.constant 0 : i32
    %c0_i32_0 = arith.constant 0 : i32
    %c0_i32_1 = arith.constant 0 : i32
    return %c0_i32, %c0_i32_0 : i32, i32
  }
  func.func @transform_15(%arg0: i32) -> (i32, i32) {
    %c0_i32 = arith.constant 0 : i32
    %c0_i32_0 = arith.constant 0 : i32
    %c0_i32_1 = arith.constant 0 : i32
    return %c0_i32, %c0_i32_0 : i32, i32
  }
  func.func @transform_16(%arg0: i32) -> (i32, i32) {
    %c0_i32 = arith.constant 0 : i32
    %c0_i32_0 = arith.constant 0 : i32
    %c0_i32_1 = arith.constant 0 : i32
    return %c0_i32, %c0_i32_0 : i32, i32
  }
  func.func @transform_17(%arg0: i32) -> (i32, i32) {
    %c0_i32 = arith.constant 0 : i32
    %c0_i32_0 = arith.constant 0 : i32
    %c0_i32_1 = arith.constant 0 : i32
    return %c0_i32, %c0_i32_0 : i32, i32
  }
  func.func @transform_18(%arg0: i32) -> (i32, i32) {
    %c0_i32 = arith.constant 0 : i32
    %c0_i32_0 = arith.constant 0 : i32
    %c0_i32_1 = arith.constant 0 : i32
    return %c0_i32, %c0_i32_0 : i32, i32
  }
  func.func @transform_19(%arg0: i32) -> (i32, i32) {
    %c0_i32 = arith.constant 0 : i32
    %c0_i32_0 = arith.constant 0 : i32
    %c0_i32_1 = arith.constant 0 : i32
    return %c0_i32, %c0_i32_0 : i32, i32
  }
  func.func @transform_20(%arg0: i32) -> (i32, i32) {
    %c0_i32 = arith.constant 0 : i32
    %c0_i32_0 = arith.constant 0 : i32
    %c0_i32_1 = arith.constant 0 : i32
    return %c0_i32, %c0_i32_0 : i32, i32
  }
  func.func @transform_21(%arg0: i32) -> (i32, i32) {
    %c0_i32 = arith.constant 0 : i32
    %c0_i32_0 = arith.constant 0 : i32
    %c0_i32_1 = arith.constant 0 : i32
    return %c0_i32, %c0_i32_0 : i32, i32
  }
  func.func @transform_22(%arg0: i32) -> (i32, i32) {
    %c0_i32 = arith.constant 0 : i32
    %c0_i32_0 = arith.constant 0 : i32
    %c0_i32_1 = arith.constant 0 : i32
    return %c0_i32, %c0_i32_0 : i32, i32
  }
  func.func @transform_23(%arg0: i32) -> (i32, i32) {
    %c0_i32 = arith.constant 0 : i32
    %c0_i32_0 = arith.constant 0 : i32
    %c0_i32_1 = arith.constant 0 : i32
    return %c0_i32, %c0_i32_0 : i32, i32
  }
  func.func @transform_24(%arg0: i32) -> (i32, i32, i32) {
    %c0_i32 = arith.constant 0 : i32
    %c0_i32_0 = arith.constant 0 : i32
    %c0_i32_1 = arith.constant 0 : i32
    return %arg0, %c0_i32, %c0_i32_0 : i32, i32, i32
  }
}

</mosaic_0001>

<llo_original>
// kernel: decoder_layer.1
$region0: #{decoder_layer.1}
  #allocation0 [shape = 'u32[]', space=smem, size = 0x4, offset = 0x4, fixed_abs, tag = 'smem constant byte address 0x4 - core index']
  #allocation1 [shape = 'u32[144,128]{1,0:T(1,128)}', space=vmem, size = 0x12000, scoped, tag = 'internal scratch']
  %s0 = inlined_call_operand.vmem [shape: f32[2,8,32], index: 0, kind: input, shape index: {}]
  %s1 = inlined_call_operand.vmem [shape: f32[2,8,32], index: 1, kind: input, shape index: {}]
  %s2 = inlined_call_operand.vmem [shape: f32[2,8,8], index: 2, kind: input, shape index: {}]
  %s3 = inlined_call_operand.hbm [shape: f32[2,8,8], index: 3, kind: input, shape index: {}]
  %s4 = inlined_call_operand.vmem [shape: f32[32,96], index: 4, kind: input, shape index: {}]
  %s5 = inlined_call_operand.hbm [shape: f32[1,96], index: 5, kind: input, shape index: {}]
  %s6 = inlined_call_operand.vmem [shape: f32[32,32], index: 6, kind: input, shape index: {}]
  %s7 = inlined_call_operand.hbm [shape: f32[1,32], index: 7, kind: input, shape index: {}]
  %s8 = inlined_call_operand.hbm [shape: f32[1,32], index: 8, kind: input, shape index: {}]
  %s9 = inlined_call_operand.hbm [shape: f32[1,32], index: 9, kind: input, shape index: {}]
  %s10 = inlined_call_operand.vmem [shape: f32[32,32], index: 10, kind: input, shape index: {}]
  %s11 = inlined_call_operand.hbm [shape: f32[1,32], index: 11, kind: input, shape index: {}]
  %s12 = inlined_call_operand.hbm [shape: f32[32,64], index: 12, kind: input, shape index: {}]
  %s13 = inlined_call_operand.hbm [shape: f32[1,64], index: 13, kind: input, shape index: {}]
  %s14 = inlined_call_operand.hbm [shape: f32[32,32], index: 14, kind: input, shape index: {}]
  %s15 = inlined_call_operand.hbm [shape: f32[1,32], index: 15, kind: input, shape index: {}]
  %s16 = inlined_call_operand.hbm [shape: f32[1,32], index: 16, kind: input, shape index: {}]
  %s17 = inlined_call_operand.hbm [shape: f32[1,32], index: 17, kind: input, shape index: {}]
  %s18 = inlined_call_operand.hbm [shape: f32[32,64], index: 18, kind: input, shape index: {}]
  %s19 = inlined_call_operand.hbm [shape: f32[1,64], index: 19, kind: input, shape index: {}]
  %s20 = inlined_call_operand.vmem [shape: f32[64,32], index: 20, kind: input, shape index: {}]
  %s21 = inlined_call_operand.hbm [shape: f32[1,32], index: 21, kind: input, shape index: {}]
  %s22 = inlined_call_operand.hbm [shape: f32[1,32], index: 22, kind: input, shape index: {}]
  %s23 = inlined_call_operand.hbm [shape: f32[1,32], index: 23, kind: input, shape index: {}]
  %s24 = inlined_call_operand.hbm [shape: f32[2,8,32], index: 24, kind: output, shape index: {}]
  %s25 = sld [smem:[#allocation0]]
  $region197: #{decoder_layer.1} parent=0
    _
  %s27 = ssub.s32 1, %s25
  %s28 = scalar_select 0, %s27, %s25
  $region1: #{decoder_layer.1} parent=0
    #allocation2 [shape = 'u8[8192]{0}', space=vmem, size = 0x2000, scoped, tag = 'input window, operand 3']
    #allocation3 [shape = 's32[2]{0}', space=sflag, size = 0x8, scoped, tag = 'scoped memory for decoder_layer.1']
    #allocation4 [shape = 's32[2]{0}', space=sflag, size = 0x8, scoped, tag = 'scoped memory for decoder_layer.1']
    #allocation5 [shape = 'u8[512]{0}', space=vmem, size = 0x400, scoped, tag = 'input window, operand 5, single buffered']
    #allocation6 [shape = 's32[1]{0}', space=sflag, size = 0x4, scoped, tag = 'scoped memory for decoder_layer.1']
    #allocation7 [shape = 'u8[512]{0}', space=vmem, size = 0x400, scoped, tag = 'input window, operand 7, single buffered']
    #allocation8 [shape = 'u8[512]{0}', space=vmem, size = 0x400, scoped, tag = 'input window, operand 8, single buffered']
    #allocation9 [shape = 's32[1]{0}', space=sflag, size = 0x4, scoped, tag = 'scoped memory for decoder_layer.1']
    #allocation10 [shape = 'u8[512]{0}', space=vmem, size = 0x400, scoped, tag = 'input window, operand 9, single buffered']
    #allocation11 [shape = 'u8[512]{0}', space=vmem, size = 0x400, scoped, tag = 'input window, operand 11, single buffered']
    #allocation12 [shape = 's32[1]{0}', space=sflag, size = 0x4, scoped, tag = 'scoped memory for decoder_layer.1']
    #allocation13 [shape = 'u8[16384]{0}', space=vmem, size = 0x4000, scoped, tag = 'input window, operand 12, single buffered']
    #allocation14 [shape = 'u8[512]{0}', space=vmem, size = 0x400, scoped, tag = 'input window, operand 13, single buffered']
    #allocation15 [shape = 's32[1]{0}', space=sflag, size = 0x4, scoped, tag = 'scoped memory for decoder_layer.1']
    #allocation16 [shape = 'u8[16384]{0}', space=vmem, size = 0x4000, scoped, tag = 'input window, operand 14, single buffered']
    #allocation17 [shape = 'u8[512]{0}', space=vmem, size = 0x400, scoped, tag = 'input window, operand 15, single buffered']
    #allocation18 [shape = 's32[1]{0}', space=sflag, size = 0x4, scoped, tag = 'scoped memory for decoder_layer.1']
    #allocation19 [shape = 'u8[512]{0}', space=vmem, size = 0x400, scoped, tag = 'input window, operand 16, single buffered']
    #allocation20 [shape = 'u8[512]{0}', space=vmem, size = 0x400, scoped, tag = 'input window, operand 17, single buffered']
    #allocation21 [shape = 's32[1]{0}', space=sflag, size = 0x4, scoped, tag = 'scoped memory for decoder_layer.1']
    #allocation22 [shape = 'u8[16384]{0}', space=vmem, size = 0x4000, scoped, tag = 'input window, operand 18, single buffered']
    #allocation23 [shape = 'u8[512]{0}', space=vmem, size = 0x400, scoped, tag = 'input window, operand 19, single buffered']
    #allocation24 [shape = 's32[1]{0}', space=sflag, size = 0x4, scoped, tag = 'scoped memory for decoder_layer.1']
    #allocation25 [shape = 'u8[512]{0}', space=vmem, size = 0x400, scoped, tag = 'input window, operand 21, single buffered']
    #allocation26 [shape = 'u8[512]{0}', space=vmem, size = 0x400, scoped, tag = 'input window, operand 22, single buffered']
    #allocation27 [shape = 's32[1]{0}', space=sflag, size = 0x4, scoped, tag = 'scoped memory for decoder_layer.1']
    #allocation28 [shape = 'u8[512]{0}', space=vmem, size = 0x400, scoped, tag = 'input window, operand 23, single buffered']
    #allocation29 [shape = 'u8[8192]{0}', space=vmem, size = 0x2000, scoped, tag = 'output window, operand 0']
    %29 = vsyncpa [#allocation3], 0
    %s30 = scalar_lea.sflag [#allocation3], 1
    %31 = vsyncpa %s30, 0
    %32 = vsyncpa [#allocation6], 0
    %33 = vsyncpa [#allocation9], 0
    %34 = vsyncpa [#allocation12], 0
    %35 = vsyncpa [#allocation15], 0
    %36 = vsyncpa [#allocation18], 0
    %37 = vsyncpa [#allocation21], 0
    %38 = vsyncpa [#allocation24], 0
    %39 = vsyncpa [#allocation27], 0
    %40 = vsyncpa [#allocation4], 0
    %s41 = scalar_lea.sflag [#allocation4], 1
    %42 = vsyncpa %s41, 0
    loop: start=0, step=1, limit=4
    $region2: #{decoder_layer.1} parent=1 // loop_pre_header
      _
    $region3: #{decoder_layer.1} parent=1 // loop_header
      %s44 = sphi 0, %s48
      %p45 = scmp.ge.s32.totalorder %s44, 4
      %s54 = sphi 0, %s56
      %s57 = sphi 0, %s54
      %s58 = sphi 0, %s57
      %s74 = sphi 0, %s58
      %s80 = sphi 0, %s82
      %s83 = sphi 0, %s80
      %s84 = sphi 0, %s83
      %s100 = sphi 0, %s84
      %s106 = sphi 0, %s108
      %s109 = sphi 0, %s106
      %s110 = sphi 0, %s109
      %s126 = sphi 0, %s110
      %s132 = sphi 0, %s134
      %s135 = sphi 0, %s132
      %s136 = sphi 0, %s135
      %s152 = sphi 0, %s136
      %s156 = sphi 0, %s156
      %s158 = sphi 0, %s156
      %s159 = sphi 0, %s158
      %s173 = sphi 0, %s159
      %s177 = sphi 0, %s177
      %s179 = sphi 0, %s177
      %s180 = sphi 0, %s179
      %s194 = sphi 0, %s180
      %s198 = sphi 0, %s198
      %s200 = sphi 0, %s198
      %s201 = sphi 0, %s200
      %s215 = sphi 0, %s201
      %s219 = sphi 0, %s219
      %s221 = sphi 0, %s219
      %s222 = sphi 0, %s221
      %s236 = sphi 0, %s222
      %s240 = sphi 0, %s240
      %s242 = sphi 0, %s240
      %s243 = sphi 0, %s242
      %s257 = sphi 0, %s243
      %s261 = sphi 0, %s261
      %s263 = sphi 0, %s261
      %s264 = sphi 0, %s263
      %s278 = sphi 0, %s264
      %s282 = sphi 0, %s282
      %s284 = sphi 0, %s282
      %s285 = sphi 0, %s284
      %s299 = sphi 0, %s285
      %s303 = sphi 0, %s303
      %s305 = sphi 0, %s303
      %s306 = sphi 0, %s305
      %s320 = sphi 0, %s306
      %s324 = sphi 0, %s324
      %s326 = sphi 0, %s324
      %s327 = sphi 0, %s326
      %s341 = sphi 0, %s327
      %s345 = sphi 0, %s345
      %s347 = sphi 0, %s345
      %s348 = sphi 0, %s347
      %s362 = sphi 0, %s348
      %s366 = sphi 0, %s366
      %s368 = sphi 0, %s366
      %s369 = sphi 0, %s368
      %s383 = sphi 0, %s369
      %s387 = sphi 0, %s387
      %s389 = sphi 0, %s387
      %s390 = sphi 0, %s389
      %s404 = sphi 0, %s390
      %s408 = sphi 0, %s408
      %s410 = sphi 0, %s408
      %s411 = sphi 0, %s410
      %s425 = sphi 0, %s411
      %s429 = sphi 0, %s429
      %s431 = sphi 0, %s429
      %s432 = sphi 0, %s431
      %s446 = sphi 0, %s432
      %s450 = sphi 0, %s450
      %s452 = sphi 0, %s450
      %s453 = sphi 0, %s452
      %s467 = sphi 0, %s453
      %s471 = sphi 0, %s471
      %s473 = sphi 0, %s471
      %s474 = sphi 0, %s473
      %s488 = sphi 0, %s474
      %s492 = sphi 0, %s492
      %s494 = sphi 0, %s492
      %s495 = sphi 0, %s494
      %s509 = sphi 0, %s495
      %s513 = sphi 0, %s513
      %s515 = sphi 0, %s513
      %s516 = sphi 0, %s515
      %s530 = sphi 0, %s516
      %s534 = sphi 0, %s534
      %s536 = sphi 0, %s534
      %s537 = sphi 0, %s536
      %s551 = sphi 0, %s537
      %s555 = sphi 0, %s555
      %s557 = sphi 0, %s555
      %s558 = sphi 0, %s557
      %s572 = sphi 0, %s558
      %s578 = sphi 0, %s580
      %s581 = sphi 0, %s578
      %s582 = sphi 0, %s581
      %s598 = sphi 0, %s582
    $region4: #{decoder_layer.1} parent=1 // loop_header_branch
      %47 = sbr.rel (%p45) target = $region8
    $region5: #{decoder_layer.1} parent=1 // loop_body
      %s49 = ssub.s32 %s44, 1
      %s50 = ssub.s32 %s44, 2
      %s51 = sadd.s32 %s44, 1
      %s52 = ssub.s32 %s44, %s51
      %p53 = scmp.eq.s32.totalorder %s52, 0
      %s55 = sadd.s32 %s54, 1
      %s56 = scalar_select %p53, %s54, %s55
      %p59 = pneg %p53
      %p60 = scmp.eq.s32.totalorder %s44, 1
      %p61 = por %p59, %p60
      %p62 = scmp.ne.s32.totalorder %s54, %s57
      %p63 = scmp.eq.s32.totalorder %s44, 0
      %p64 = por %p62, %p63
      %p65 = scmp.ne.s32.totalorder %s54, %s57
      %p66 = scmp.eq.s32.totalorder %s49, 1
      %p67 = por %p65, %p66
      %p68 = scmp.ne.s32.totalorder %s57, %s58
      %p69 = scmp.eq.s32.totalorder %s49, 0
      %p70 = por %p68, %p69
      %p71 = scmp.ne.s32.totalorder %s57, %s58
      %p72 = scmp.eq.s32.totalorder %s50, 1
      %p73 = por %p71, %p72
      %p75 = scmp.ne.s32.totalorder %s58, %s74
      %p76 = scmp.eq.s32.totalorder %s50, 0
      %p77 = por %p75, %p76
      %s78 = ssub.s32 %s44, %s51
      %p79 = scmp.eq.s32.totalorder %s78, 0
      %s81 = sadd.s32 %s80, 1
      %s82 = scalar_select %p79, %s80, %s81
      %p85 = pneg %p79
      %p86 = scmp.eq.s32.totalorder %s44, 1
      %p87 = por %p85, %p86
      %p88 = scmp.ne.s32.totalorder %s80, %s83
      %p89 = scmp.eq.s32.totalorder %s44, 0
      %p90 = por %p88, %p89
      %p91 = scmp.ne.s32.totalorder %s80, %s83
      %p92 = scmp.eq.s32.totalorder %s49, 1
      %p93 = por %p91, %p92
      %p94 = scmp.ne.s32.totalorder %s83, %s84
      %p95 = scmp.eq.s32.totalorder %s49, 0
      %p96 = por %p94, %p95
      %p97 = scmp.ne.s32.totalorder %s83, %s84
      %p98 = scmp.eq.s32.totalorder %s50, 1
      %p99 = por %p97, %p98
      %p101 = scmp.ne.s32.totalorder %s84, %s100
      %p102 = scmp.eq.s32.totalorder %s50, 0
      %p103 = por %p101, %p102
      %s104 = ssub.s32 %s44, %s51
      %p105 = scmp.eq.s32.totalorder %s104, 0
      %s107 = sadd.s32 %s106, 1
      %s108 = scalar_select %p105, %s106, %s107
      %p111 = pneg %p105
      %p112 = scmp.eq.s32.totalorder %s44, 1
      %p113 = por %p111, %p112
      %p114 = scmp.ne.s32.totalorder %s106, %s109
      %p115 = scmp.eq.s32.totalorder %s44, 0
      %p116 = por %p114, %p115
      %p117 = scmp.ne.s32.totalorder %s106, %s109
      %p118 = scmp.eq.s32.totalorder %s49, 1
      %p119 = por %p117, %p118
      %p120 = scmp.ne.s32.totalorder %s109, %s110
      %p121 = scmp.eq.s32.totalorder %s49, 0
      %p122 = por %p120, %p121
      %p123 = scmp.ne.s32.totalorder %s109, %s110
      %p124 = scmp.eq.s32.totalorder %s50, 1
      %p125 = por %p123, %p124
      %p127 = scmp.ne.s32.totalorder %s110, %s126
      %p128 = scmp.eq.s32.totalorder %s50, 0
      %p129 = por %p127, %p128
      %s130 = ssub.s32 %s44, %s51
      %p131 = scmp.eq.s32.totalorder %s130, 0
      %s133 = sadd.s32 %s132, 1
      %s134 = scalar_select %p131, %s132, %s133
      %p137 = pneg %p131
      %p138 = scmp.eq.s32.totalorder %s44, 1
      %p139 = por %p137, %p138
      %p140 = scmp.ne.s32.totalorder %s132, %s135
      %p141 = scmp.eq.s32.totalorder %s44, 0
      %p142 = por %p140, %p141
      %p143 = scmp.ne.s32.totalorder %s132, %s135
      %p144 = scmp.eq.s32.totalorder %s49, 1
      %p145 = por %p143, %p144
      %p146 = scmp.ne.s32.totalorder %s135, %s136
      %p147 = scmp.eq.s32.totalorder %s49, 0
      %p148 = por %p146, %p147
      %p149 = scmp.ne.s32.totalorder %s135, %s136
      %p150 = scmp.eq.s32.totalorder %s50, 1
      %p151 = por %p149, %p150
      %p153 = scmp.ne.s32.totalorder %s136, %s152
      %p154 = scmp.eq.s32.totalorder %s50, 0
      %p155 = por %p153, %p154
      %s157 = sadd.s32 %s156, 1
      %p160 = scmp.eq.s32.totalorder %s44, 1
      %p161 = scmp.ne.s32.totalorder %s156, %s158
      %p162 = scmp.eq.s32.totalorder %s44, 0
      %p163 = por %p161, %p162
      %p164 = scmp.ne.s32.totalorder %s156, %s158
      %p165 = scmp.eq.s32.totalorder %s49, 1
      %p166 = por %p164, %p165
      %p167 = scmp.ne.s32.totalorder %s158, %s159
      %p168 = scmp.eq.s32.totalorder %s49, 0
      %p169 = por %p167, %p168
      %p170 = scmp.ne.s32.totalorder %s158, %s159
      %p171 = scmp.eq.s32.totalorder %s50, 1
      %p172 = por %p170, %p171
      %p174 = scmp.ne.s32.totalorder %s159, %s173
      %p175 = scmp.eq.s32.totalorder %s50, 0
      %p176 = por %p174, %p175
      %s178 = sadd.s32 %s177, 1
      %p181 = scmp.eq.s32.totalorder %s44, 1
      %p182 = scmp.ne.s32.totalorder %s177, %s179
      %p183 = scmp.eq.s32.totalorder %s44, 0
      %p184 = por %p182, %p183
      %p185 = scmp.ne.s32.totalorder %s177, %s179
      %p186 = scmp.eq.s32.totalorder %s49, 1
      %p187 = por %p185, %p186
      %p188 = scmp.ne.s32.totalorder %s179, %s180
      %p189 = scmp.eq.s32.totalorder %s49, 0
      %p190 = por %p188, %p189
      %p191 = scmp.ne.s32.totalorder %s179, %s180
      %p192 = scmp.eq.s32.totalorder %s50, 1
      %p193 = por %p191, %p192
      %p195 = scmp.ne.s32.totalorder %s180, %s194
      %p196 = scmp.eq.s32.totalorder %s50, 0
      %p197 = por %p195, %p196
      %s199 = sadd.s32 %s198, 1
      %p202 = scmp.eq.s32.totalorder %s44, 1
      %p203 = scmp.ne.s32.totalorder %s198, %s200
      %p204 = scmp.eq.s32.totalorder %s44, 0
      %p205 = por %p203, %p204
      %p206 = scmp.ne.s32.totalorder %s198, %s200
      %p207 = scmp.eq.s32.totalorder %s49, 1
      %p208 = por %p206, %p207
      %p209 = scmp.ne.s32.totalorder %s200, %s201
      %p210 = scmp.eq.s32.totalorder %s49, 0
      %p211 = por %p209, %p210
      %p212 = scmp.ne.s32.totalorder %s200, %s201
      %p213 = scmp.eq.s32.totalorder %s50, 1
      %p214 = por %p212, %p213
      %p216 = scmp.ne.s32.totalorder %s201, %s215
      %p217 = scmp.eq.s32.totalorder %s50, 0
      %p218 = por %p216, %p217
      %s220 = sadd.s32 %s219, 1
      %p223 = scmp.eq.s32.totalorder %s44, 1
      %p224 = scmp.ne.s32.totalorder %s219, %s221
      %p225 = scmp.eq.s32.totalorder %s44, 0
      %p226 = por %p224, %p225
      %p227 = scmp.ne.s32.totalorder %s219, %s221
      %p228 = scmp.eq.s32.totalorder %s49, 1
      %p229 = por %p227, %p228
      %p230 = scmp.ne.s32.totalorder %s221, %s222
      %p231 = scmp.eq.s32.totalorder %s49, 0
      %p232 = por %p230, %p231
      %p233 = scmp.ne.s32.totalorder %s221, %s222
      %p234 = scmp.eq.s32.totalorder %s50, 1
      %p235 = por %p233, %p234
      %p237 = scmp.ne.s32.totalorder %s222, %s236
      %p238 = scmp.eq.s32.totalorder %s50, 0
      %p239 = por %p237, %p238
      %s241 = sadd.s32 %s240, 1
      %p244 = scmp.eq.s32.totalorder %s44, 1
      %p245 = scmp.ne.s32.totalorder %s240, %s242
      %p246 = scmp.eq.s32.totalorder %s44, 0
      %p247 = por %p245, %p246
      %p248 = scmp.ne.s32.totalorder %s240, %s242
      %p249 = scmp.eq.s32.totalorder %s49, 1
      %p250 = por %p248, %p249
      %p251 = scmp.ne.s32.totalorder %s242, %s243
      %p252 = scmp.eq.s32.totalorder %s49, 0
      %p253 = por %p251, %p252
      %p254 = scmp.ne.s32.totalorder %s242, %s243
      %p255 = scmp.eq.s32.totalorder %s50, 1
      %p256 = por %p254, %p255
      %p258 = scmp.ne.s32.totalorder %s243, %s257
      %p259 = scmp.eq.s32.totalorder %s50, 0
      %p260 = por %p258, %p259
      %s262 = sadd.s32 %s261, 1
      %p265 = scmp.eq.s32.totalorder %s44, 1
      %p266 = scmp.ne.s32.totalorder %s261, %s263
      %p267 = scmp.eq.s32.totalorder %s44, 0
      %p268 = por %p266, %p267
      %p269 = scmp.ne.s32.totalorder %s261, %s263
      %p270 = scmp.eq.s32.totalorder %s49, 1
      %p271 = por %p269, %p270
      %p272 = scmp.ne.s32.totalorder %s263, %s264
      %p273 = scmp.eq.s32.totalorder %s49, 0
      %p274 = por %p272, %p273
      %p275 = scmp.ne.s32.totalorder %s263, %s264
      %p276 = scmp.eq.s32.totalorder %s50, 1
      %p277 = por %p275, %p276
      %p279 = scmp.ne.s32.totalorder %s264, %s278
      %p280 = scmp.eq.s32.totalorder %s50, 0
      %p281 = por %p279, %p280
      %s283 = sadd.s32 %s282, 1
      %p286 = scmp.eq.s32.totalorder %s44, 1
      %p287 = scmp.ne.s32.totalorder %s282, %s284
      %p288 = scmp.eq.s32.totalorder %s44, 0
      %p289 = por %p287, %p288
      %p290 = scmp.ne.s32.totalorder %s282, %s284
      %p291 = scmp.eq.s32.totalorder %s49, 1
      %p292 = por %p290, %p291
      %p293 = scmp.ne.s32.totalorder %s284, %s285
      %p294 = scmp.eq.s32.totalorder %s49, 0
      %p295 = por %p293, %p294
      %p296 = scmp.ne.s32.totalorder %s284, %s285
      %p297 = scmp.eq.s32.totalorder %s50, 1
      %p298 = por %p296, %p297
      %p300 = scmp.ne.s32.totalorder %s285, %s299
      %p301 = scmp.eq.s32.totalorder %s50, 0
      %p302 = por %p300, %p301
      %s304 = sadd.s32 %s303, 1
      %p307 = scmp.eq.s32.totalorder %s44, 1
      %p308 = scmp.ne.s32.totalorder %s303, %s305
      %p309 = scmp.eq.s32.totalorder %s44, 0
      %p310 = por %p308, %p309
      %p311 = scmp.ne.s32.totalorder %s303, %s305
      %p312 = scmp.eq.s32.totalorder %s49, 1
      %p313 = por %p311, %p312
      %p314 = scmp.ne.s32.totalorder %s305, %s306
      %p315 = scmp.eq.s32.totalorder %s49, 0
      %p316 = por %p314, %p315
      %p317 = scmp.ne.s32.totalorder %s305, %s306
      %p318 = scmp.eq.s32.totalorder %s50, 1
      %p319 = por %p317, %p318
      %p321 = scmp.ne.s32.totalorder %s306, %s320
      %p322 = scmp.eq.s32.totalorder %s50, 0
      %p323 = por %p321, %p322
      %s325 = sadd.s32 %s324, 1
      %p328 = scmp.eq.s32.totalorder %s44, 1
      %p329 = scmp.ne.s32.totalorder %s324, %s326
      %p330 = scmp.eq.s32.totalorder %s44, 0
      %p331 = por %p329, %p330
      %p332 = scmp.ne.s32.totalorder %s324, %s326
      %p333 = scmp.eq.s32.totalorder %s49, 1
      %p334 = por %p332, %p333
      %p335 = scmp.ne.s32.totalorder %s326, %s327
      %p336 = scmp.eq.s32.totalorder %s49, 0
      %p337 = por %p335, %p336
      %p338 = scmp.ne.s32.totalorder %s326, %s327
      %p339 = scmp.eq.s32.totalorder %s50, 1
      %p340 = por %p338, %p339
      %p342 = scmp.ne.s32.totalorder %s327, %s341
      %p343 = scmp.eq.s32.totalorder %s50, 0
      %p344 = por %p342, %p343
      %s346 = sadd.s32 %s345, 1
      %p349 = scmp.eq.s32.totalorder %s44, 1
      %p350 = scmp.ne.s32.totalorder %s345, %s347
      %p351 = scmp.eq.s32.totalorder %s44, 0
      %p352 = por %p350, %p351
      %p353 = scmp.ne.s32.totalorder %s345, %s347
      %p354 = scmp.eq.s32.totalorder %s49, 1
      %p355 = por %p353, %p354
      %p356 = scmp.ne.s32.totalorder %s347, %s348
      %p357 = scmp.eq.s32.totalorder %s49, 0
      %p358 = por %p356, %p357
      %p359 = scmp.ne.s32.totalorder %s347, %s348
      %p360 = scmp.eq.s32.totalorder %s50, 1
      %p361 = por %p359, %p360
      %p363 = scmp.ne.s32.totalorder %s348, %s362
      %p364 = scmp.eq.s32.totalorder %s50, 0
      %p365 = por %p363, %p364
      %s367 = sadd.s32 %s366, 1
      %p370 = scmp.eq.s32.totalorder %s44, 1
      %p371 = scmp.ne.s32.totalorder %s366, %s368
      %p372 = scmp.eq.s32.totalorder %s44, 0
      %p373 = por %p371, %p372
      %p374 = scmp.ne.s32.totalorder %s366, %s368
      %p375 = scmp.eq.s32.totalorder %s49, 1
      %p376 = por %p374, %p375
      %p377 = scmp.ne.s32.totalorder %s368, %s369
      %p378 = scmp.eq.s32.totalorder %s49, 0
      %p379 = por %p377, %p378
      %p380 = scmp.ne.s32.totalorder %s368, %s369
      %p381 = scmp.eq.s32.totalorder %s50, 1
      %p382 = por %p380, %p381
      %p384 = scmp.ne.s32.totalorder %s369, %s383
      %p385 = scmp.eq.s32.totalorder %s50, 0
      %p386 = por %p384, %p385
      %s388 = sadd.s32 %s387, 1
      %p391 = scmp.eq.s32.totalorder %s44, 1
      %p392 = scmp.ne.s32.totalorder %s387, %s389
      %p393 = scmp.eq.s32.totalorder %s44, 0
      %p394 = por %p392, %p393
      %p395 = scmp.ne.s32.totalorder %s387, %s389
      %p396 = scmp.eq.s32.totalorder %s49, 1
      %p397 = por %p395, %p396
      %p398 = scmp.ne.s32.totalorder %s389, %s390
      %p399 = scmp.eq.s32.totalorder %s49, 0
      %p400 = por %p398, %p399
      %p401 = scmp.ne.s32.totalorder %s389, %s390
      %p402 = scmp.eq.s32.totalorder %s50, 1
      %p403 = por %p401, %p402
      %p405 = scmp.ne.s32.totalorder %s390, %s404
      %p406 = scmp.eq.s32.totalorder %s50, 0
      %p407 = por %p405, %p406
      %s409 = sadd.s32 %s408, 1
      %p412 = scmp.eq.s32.totalorder %s44, 1
      %p413 = scmp.ne.s32.totalorder %s408, %s410
      %p414 = scmp.eq.s32.totalorder %s44, 0
      %p415 = por %p413, %p414
      %p416 = scmp.ne.s32.totalorder %s408, %s410
      %p417 = scmp.eq.s32.totalorder %s49, 1
      %p418 = por %p416, %p417
      %p419 = scmp.ne.s32.totalorder %s410, %s411
      %p420 = scmp.eq.s32.totalorder %s49, 0
      %p421 = por %p419, %p420
      %p422 = scmp.ne.s32.totalorder %s410, %s411
      %p423 = scmp.eq.s32.totalorder %s50, 1
      %p424 = por %p422, %p423
      %p426 = scmp.ne.s32.totalorder %s411, %s425
      %p427 = scmp.eq.s32.totalorder %s50, 0
      %p428 = por %p426, %p427
      %s430 = sadd.s32 %s429, 1
      %p433 = scmp.eq.s32.totalorder %s44, 1
      %p434 = scmp.ne.s32.totalorder %s429, %s431
      %p435 = scmp.eq.s32.totalorder %s44, 0
      %p436 = por %p434, %p435
      %p437 = scmp.ne.s32.totalorder %s429, %s431
      %p438 = scmp.eq.s32.totalorder %s49, 1
      %p439 = por %p437, %p438
      %p440 = scmp.ne.s32.totalorder %s431, %s432
      %p441 = scmp.eq.s32.totalorder %s49, 0
      %p442 = por %p440, %p441
      %p443 = scmp.ne.s32.totalorder %s431, %s432
      %p444 = scmp.eq.s32.totalorder %s50, 1
      %p445 = por %p443, %p444
      %p447 = scmp.ne.s32.totalorder %s432, %s446
      %p448 = scmp.eq.s32.totalorder %s50, 0
      %p449 = por %p447, %p448
      %s451 = sadd.s32 %s450, 1
      %p454 = scmp.eq.s32.totalorder %s44, 1
      %p455 = scmp.ne.s32.totalorder %s450, %s452
      %p456 = scmp.eq.s32.totalorder %s44, 0
      %p457 = por %p455, %p456
      %p458 = scmp.ne.s32.totalorder %s450, %s452
      %p459 = scmp.eq.s32.totalorder %s49, 1
      %p460 = por %p458, %p459
      %p461 = scmp.ne.s32.totalorder %s452, %s453
      %p462 = scmp.eq.s32.totalorder %s49, 0
      %p463 = por %p461, %p462
      %p464 = scmp.ne.s32.totalorder %s452, %s453
      %p465 = scmp.eq.s32.totalorder %s50, 1
      %p466 = por %p464, %p465
      %p468 = scmp.ne.s32.totalorder %s453, %s467
      %p469 = scmp.eq.s32.totalorder %s50, 0
      %p470 = por %p468, %p469
      %s472 = sadd.s32 %s471, 1
      %p475 = scmp.eq.s32.totalorder %s44, 1
      %p476 = scmp.ne.s32.totalorder %s471, %s473
      %p477 = scmp.eq.s32.totalorder %s44, 0
      %p478 = por %p476, %p477
      %p479 = scmp.ne.s32.totalorder %s471, %s473
      %p480 = scmp.eq.s32.totalorder %s49, 1
      %p481 = por %p479, %p480
      %p482 = scmp.ne.s32.totalorder %s473, %s474
      %p483 = scmp.eq.s32.totalorder %s49, 0
      %p484 = por %p482, %p483
      %p485 = scmp.ne.s32.totalorder %s473, %s474
      %p486 = scmp.eq.s32.totalorder %s50, 1
      %p487 = por %p485, %p486
      %p489 = scmp.ne.s32.totalorder %s474, %s488
      %p490 = scmp.eq.s32.totalorder %s50, 0
      %p491 = por %p489, %p490
      %s493 = sadd.s32 %s492, 1
      %p496 = scmp.eq.s32.totalorder %s44, 1
      %p497 = scmp.ne.s32.totalorder %s492, %s494
      %p498 = scmp.eq.s32.totalorder %s44, 0
      %p499 = por %p497, %p498
      %p500 = scmp.ne.s32.totalorder %s492, %s494
      %p501 = scmp.eq.s32.totalorder %s49, 1
      %p502 = por %p500, %p501
      %p503 = scmp.ne.s32.totalorder %s494, %s495
      %p504 = scmp.eq.s32.totalorder %s49, 0
      %p505 = por %p503, %p504
      %p506 = scmp.ne.s32.totalorder %s494, %s495
      %p507 = scmp.eq.s32.totalorder %s50, 1
      %p508 = por %p506, %p507
      %p510 = scmp.ne.s32.totalorder %s495, %s509
      %p511 = scmp.eq.s32.totalorder %s50, 0
      %p512 = por %p510, %p511
      %s514 = sadd.s32 %s513, 1
      %p517 = scmp.eq.s32.totalorder %s44, 1
      %p518 = scmp.ne.s32.totalorder %s513, %s515
      %p519 = scmp.eq.s32.totalorder %s44, 0
      %p520 = por %p518, %p519
      %p521 = scmp.ne.s32.totalorder %s513, %s515
      %p522 = scmp.eq.s32.totalorder %s49, 1
      %p523 = por %p521, %p522
      %p524 = scmp.ne.s32.totalorder %s515, %s516
      %p525 = scmp.eq.s32.totalorder %s49, 0
      %p526 = por %p524, %p525
      %p527 = scmp.ne.s32.totalorder %s515, %s516
      %p528 = scmp.eq.s32.totalorder %s50, 1
      %p529 = por %p527, %p528
      %p531 = scmp.ne.s32.totalorder %s516, %s530
      %p532 = scmp.eq.s32.totalorder %s50, 0
      %p533 = por %p531, %p532
      %s535 = sadd.s32 %s534, 1
      %p538 = scmp.eq.s32.totalorder %s44, 1
      %p539 = scmp.ne.s32.totalorder %s534, %s536
      %p540 = scmp.eq.s32.totalorder %s44, 0
      %p541 = por %p539, %p540
      %p542 = scmp.ne.s32.totalorder %s534, %s536
      %p543 = scmp.eq.s32.totalorder %s49, 1
      %p544 = por %p542, %p543
      %p545 = scmp.ne.s32.totalorder %s536, %s537
      %p546 = scmp.eq.s32.totalorder %s49, 0
      %p547 = por %p545, %p546
      %p548 = scmp.ne.s32.totalorder %s536, %s537
      %p549 = scmp.eq.s32.totalorder %s50, 1
      %p550 = por %p548, %p549
      %p552 = scmp.ne.s32.totalorder %s537, %s551
      %p553 = scmp.eq.s32.totalorder %s50, 0
      %p554 = por %p552, %p553
      %s556 = sadd.s32 %s555, 1
      %p559 = scmp.eq.s32.totalorder %s44, 1
      %p560 = scmp.ne.s32.totalorder %s555, %s557
      %p561 = scmp.eq.s32.totalorder %s44, 0
      %p562 = por %p560, %p561
      %p563 = scmp.ne.s32.totalorder %s555, %s557
      %p564 = scmp.eq.s32.totalorder %s49, 1
      %p565 = por %p563, %p564
      %p566 = scmp.ne.s32.totalorder %s557, %s558
      %p567 = scmp.eq.s32.totalorder %s49, 0
      %p568 = por %p566, %p567
      %p569 = scmp.ne.s32.totalorder %s557, %s558
      %p570 = scmp.eq.s32.totalorder %s50, 1
      %p571 = por %p569, %p570
      %p573 = scmp.ne.s32.totalorder %s558, %s572
      %p574 = scmp.eq.s32.totalorder %s50, 0
      %p575 = por %p573, %p574
      %s576 = ssub.s32 %s44, %s51
      %p577 = scmp.eq.s32.totalorder %s576, 0
      %s579 = sadd.s32 %s578, 1
      %s580 = scalar_select %p577, %s578, %s579
      %p583 = pneg %p577
      %p584 = scmp.eq.s32.totalorder %s44, 1
      %p585 = por %p583, %p584
      %p586 = scmp.ne.s32.totalorder %s578, %s581
      %p587 = scmp.eq.s32.totalorder %s44, 0
      %p588 = por %p586, %p587
      %p589 = scmp.ne.s32.totalorder %s578, %s581
      %p590 = scmp.eq.s32.totalorder %s49, 1
      %p591 = por %p589, %p590
      %p592 = scmp.ne.s32.totalorder %s581, %s582
      %p593 = scmp.eq.s32.totalorder %s49, 0
      %p594 = por %p592, %p593
      %p595 = scmp.ne.s32.totalorder %s581, %s582
      %p596 = scmp.eq.s32.totalorder %s50, 1
      %p597 = por %p595, %p596
      %p599 = scmp.ne.s32.totalorder %s582, %s598
      %p600 = scmp.eq.s32.totalorder %s50, 0
      %p601 = por %p599, %p600
      %p602 = scmp.le.s32.totalorder 1, %s44
      %p603 = scmp.lt.s32.totalorder %s44, 3
      %p604 = pnand %p602, %p603
      %p605 = pneg %p604
      // Predicated region
      $region9: #{decoder_layer.1} parent=5 // pred_check
        _
      $region10: #{decoder_layer.1} parent=5 // pred_check_branch
        %607 = sbr.rel (%p604) target = $region12
      $region11: #{decoder_layer.1} parent=5 // pred_region
        %s608 = ssub.s32 %s44, 1
        // Predicated region
        $region13: #{decoder_layer.1} parent=11 // pred_check
          %p609 = pneg %p169
        $region14: #{decoder_layer.1} parent=11 // pred_check_branch
          %611 = sbr.rel (%p609) target = $region16
        $region15: #{decoder_layer.1} parent=11 // pred_region
          _
        $region16: #{decoder_layer.1} parent=11 // pred_fallthru
          _
        // Predicated region
        $region17: #{decoder_layer.1} parent=11 // pred_check
          %p612 = pneg %p190
        $region18: #{decoder_layer.1} parent=11 // pred_check_branch
          %614 = sbr.rel (%p612) target = $region20
        $region19: #{decoder_layer.1} parent=11 // pred_region
          %s616 = ssub.s32 16, 16
          %617 = vsyncadd [#allocation6], %s616
          %s619 = sshll.u32 [#allocation5], 4
          %s620 = int_to_ptr.vmem [resolvable:$true] %s619
          %622 = dma.hbm_to_vmem [thread:$0]  %s5, 16, %s620, [#allocation6]
        $region20: #{decoder_layer.1} parent=11 // pred_fallthru
          _
        // Predicated region
        $region21: #{decoder_layer.1} parent=11 // pred_check
          %p623 = pneg %p211
        $region22: #{decoder_layer.1} parent=11 // pred_check_branch
          %625 = sbr.rel (%p623) target = $region24
        $region23: #{decoder_layer.1} parent=11 // pred_region
          _
        $region24: #{decoder_layer.1} parent=11 // pred_fallthru
          _
        // Predicated region
        $region25: #{decoder_layer.1} parent=11 // pred_check
          %p626 = pneg %p232
        $region26: #{decoder_layer.1} parent=11 // pred_check_branch
          %628 = sbr.rel (%p626) target = $region28
        $region27: #{decoder_layer.1} parent=11 // pred_region
          %s630 = ssub.s32 16, 16
          %631 = vsyncadd [#allocation6], %s630
          %s633 = sshll.u32 [#allocation7], 4
          %s634 = int_to_ptr.vmem [resolvable:$true] %s633
          %636 = dma.hbm_to_vmem [thread:$0]  %s7, 16, %s634, [#allocation6]
        $region28: #{decoder_layer.1} parent=11 // pred_fallthru
          _
        // Predicated region
        $region29: #{decoder_layer.1} parent=11 // pred_check
          %p637 = pneg %p253
        $region30: #{decoder_layer.1} parent=11 // pred_check_branch
          %639 = sbr.rel (%p637) target = $region32
        $region31: #{decoder_layer.1} parent=11 // pred_region
          %s641 = ssub.s32 16, 16
          %642 = vsyncadd [#allocation9], %s641
          %s644 = sshll.u32 [#allocation8], 4
          %s645 = int_to_ptr.vmem [resolvable:$true] %s644
          %647 = dma.hbm_to_vmem [thread:$0]  %s8, 16, %s645, [#allocation9]
        $region32: #{decoder_layer.1} parent=11 // pred_fallthru
          _
        // Predicated region
        $region33: #{decoder_layer.1} parent=11 // pred_check
          %p648 = pneg %p274
        $region34: #{decoder_layer.1} parent=11 // pred_check_branch
          %650 = sbr.rel (%p648) target = $region36
        $region35: #{decoder_layer.1} parent=11 // pred_region
          %s652 = ssub.s32 16, 16
          %653 = vsyncadd [#allocation9], %s652
          %s655 = sshll.u32 [#allocation10], 4
          %s656 = int_to_ptr.vmem [resolvable:$true] %s655
          %658 = dma.hbm_to_vmem [thread:$0]  %s9, 16, %s656, [#allocation9]
        $region36: #{decoder_layer.1} parent=11 // pred_fallthru
          _
        // Predicated region
        $region37: #{decoder_layer.1} parent=11 // pred_check
          %p659 = pneg %p295
        $region38: #{decoder_layer.1} parent=11 // pred_check_branch
          %661 = sbr.rel (%p659) target = $region40
        $region39: #{decoder_layer.1} parent=11 // pred_region
          _
        $region40: #{decoder_layer.1} parent=11 // pred_fallthru
          _
        // Predicated region
        $region41: #{decoder_layer.1} parent=11 // pred_check
          %p662 = pneg %p316
        $region42: #{decoder_layer.1} parent=11 // pred_check_branch
          %664 = sbr.rel (%p662) target = $region44
        $region43: #{decoder_layer.1} parent=11 // pred_region
          %s666 = ssub.s32 16, 16
          %667 = vsyncadd [#allocation12], %s666
          %s669 = sshll.u32 [#allocation11], 4
          %s670 = int_to_ptr.vmem [resolvable:$true] %s669
          %672 = dma.hbm_to_vmem [thread:$0]  %s11, 16, %s670, [#allocation12]
        $region44: #{decoder_layer.1} parent=11 // pred_fallthru
          _
        // Predicated region
        $region45: #{decoder_layer.1} parent=11 // pred_check
          %p673 = pneg %p337
        $region46: #{decoder_layer.1} parent=11 // pred_check_branch
          %675 = sbr.rel (%p673) target = $region48
        $region47: #{decoder_layer.1} parent=11 // pred_region
          %s677 = ssub.s32 512, 512
          %678 = vsyncadd [#allocation12], %s677
          %s679 = sshll.u32 [#allocation13], 4
          %s680 = int_to_ptr.vmem [resolvable:$true] %s679
          %685 = dma.hbm_to_vmem [thread:$0]  %s12, 512, %s680, [#allocation12], 128, 128, 8
        $region48: #{decoder_layer.1} parent=11 // pred_fallthru
          _
        // Predicated region
        $region49: #{decoder_layer.1} parent=11 // pred_check
          %p686 = pneg %p358
        $region50: #{decoder_layer.1} parent=11 // pred_check_branch
          %688 = sbr.rel (%p686) target = $region52
        $region51: #{decoder_layer.1} parent=11 // pred_region
          %s690 = ssub.s32 16, 16
          %691 = vsyncadd [#allocation15], %s690
          %s693 = sshll.u32 [#allocation14], 4
          %s694 = int_to_ptr.vmem [resolvable:$true] %s693
          %696 = dma.hbm_to_vmem [thread:$0]  %s13, 16, %s694, [#allocation15]
        $region52: #{decoder_layer.1} parent=11 // pred_fallthru
          _
        // Predicated region
        $region53: #{decoder_layer.1} parent=11 // pred_check
          %p697 = pneg %p379
        $region54: #{decoder_layer.1} parent=11 // pred_check_branch
          %699 = sbr.rel (%p697) target = $region56
        $region55: #{decoder_layer.1} parent=11 // pred_region
          %s701 = ssub.s32 512, 512
          %702 = vsyncadd [#allocation15], %s701
          %s703 = sshll.u32 [#allocation16], 4
          %s704 = int_to_ptr.vmem [resolvable:$true] %s703
          %709 = dma.hbm_to_vmem [thread:$0]  %s14, 512, %s704, [#allocation15], 128, 128, 8
        $region56: #{decoder_layer.1} parent=11 // pred_fallthru
          _
        // Predicated region
        $region57: #{decoder_layer.1} parent=11 // pred_check
          %p710 = pneg %p400
        $region58: #{decoder_layer.1} parent=11 // pred_check_branch
          %712 = sbr.rel (%p710) target = $region60
        $region59: #{decoder_layer.1} parent=11 // pred_region
          %s714 = ssub.s32 16, 16
          %715 = vsyncadd [#allocation18], %s714
          %s717 = sshll.u32 [#allocation17], 4
          %s718 = int_to_ptr.vmem [resolvable:$true] %s717
          %720 = dma.hbm_to_vmem [thread:$0]  %s15, 16, %s718, [#allocation18]
        $region60: #{decoder_layer.1} parent=11 // pred_fallthru
          _
        // Predicated region
        $region61: #{decoder_layer.1} parent=11 // pred_check
          %p721 = pneg %p421
        $region62: #{decoder_layer.1} parent=11 // pred_check_branch
          %723 = sbr.rel (%p721) target = $region64
        $region63: #{decoder_layer.1} parent=11 // pred_region
          %s725 = ssub.s32 16, 16
          %726 = vsyncadd [#allocation18], %s725
          %s728 = sshll.u32 [#allocation19], 4
          %s729 = int_to_ptr.vmem [resolvable:$true] %s728
          %731 = dma.hbm_to_vmem [thread:$0]  %s16, 16, %s729, [#allocation18]
        $region64: #{decoder_layer.1} parent=11 // pred_fallthru
          _
        // Predicated region
        $region65: #{decoder_layer.1} parent=11 // pred_check
          %p732 = pneg %p442
        $region66: #{decoder_layer.1} parent=11 // pred_check_branch
          %734 = sbr.rel (%p732) target = $region68
        $region67: #{decoder_layer.1} parent=11 // pred_region
          %s736 = ssub.s32 16, 16
          %737 = vsyncadd [#allocation21], %s736
          %s739 = sshll.u32 [#allocation20], 4
          %s740 = int_to_ptr.vmem [resolvable:$true] %s739
          %742 = dma.hbm_to_vmem [thread:$0]  %s17, 16, %s740, [#allocation21]
        $region68: #{decoder_layer.1} parent=11 // pred_fallthru
          _
        // Predicated region
        $region69: #{decoder_layer.1} parent=11 // pred_check
          %p743 = pneg %p463
        $region70: #{decoder_layer.1} parent=11 // pred_check_branch
          %745 = sbr.rel (%p743) target = $region72
        $region71: #{decoder_layer.1} parent=11 // pred_region
          %s747 = ssub.s32 512, 512
          %748 = vsyncadd [#allocation21], %s747
          %s749 = sshll.u32 [#allocation22], 4
          %s750 = int_to_ptr.vmem [resolvable:$true] %s749
          %755 = dma.hbm_to_vmem [thread:$0]  %s18, 512, %s750, [#allocation21], 128, 128, 8
        $region72: #{decoder_layer.1} parent=11 // pred_fallthru
          _
        // Predicated region
        $region73: #{decoder_layer.1} parent=11 // pred_check
          %p756 = pneg %p484
        $region74: #{decoder_layer.1} parent=11 // pred_check_branch
          %758 = sbr.rel (%p756) target = $region76
        $region75: #{decoder_layer.1} parent=11 // pred_region
          %s760 = ssub.s32 16, 16
          %761 = vsyncadd [#allocation24], %s760
          %s763 = sshll.u32 [#allocation23], 4
          %s764 = int_to_ptr.vmem [resolvable:$true] %s763
          %766 = dma.hbm_to_vmem [thread:$0]  %s19, 16, %s764, [#allocation24]
        $region76: #{decoder_layer.1} parent=11 // pred_fallthru
          _
        // Predicated region
        $region77: #{decoder_layer.1} parent=11 // pred_check
          %p767 = pneg %p505
        $region78: #{decoder_layer.1} parent=11 // pred_check_branch
          %769 = sbr.rel (%p767) target = $region80
        $region79: #{decoder_layer.1} parent=11 // pred_region
          _
        $region80: #{decoder_layer.1} parent=11 // pred_fallthru
          _
        // Predicated region
        $region81: #{decoder_layer.1} parent=11 // pred_check
          %p770 = pneg %p526
        $region82: #{decoder_layer.1} parent=11 // pred_check_branch
          %772 = sbr.rel (%p770) target = $region84
        $region83: #{decoder_layer.1} parent=11 // pred_region
          %s774 = ssub.s32 16, 16
          %775 = vsyncadd [#allocation24], %s774
          %s777 = sshll.u32 [#allocation25], 4
          %s778 = int_to_ptr.vmem [resolvable:$true] %s777
          %780 = dma.hbm_to_vmem [thread:$0]  %s21, 16, %s778, [#allocation24]
        $region84: #{decoder_layer.1} parent=11 // pred_fallthru
          _
        // Predicated region
        $region85: #{decoder_layer.1} parent=11 // pred_check
          %p781 = pneg %p547
        $region86: #{decoder_layer.1} parent=11 // pred_check_branch
          %783 = sbr.rel (%p781) target = $region88
        $region87: #{decoder_layer.1} parent=11 // pred_region
          %s785 = ssub.s32 16, 16
          %786 = vsyncadd [#allocation27], %s785
          %s788 = sshll.u32 [#allocation26], 4
          %s789 = int_to_ptr.vmem [resolvable:$true] %s788
          %791 = dma.hbm_to_vmem [thread:$0]  %s22, 16, %s789, [#allocation27]
        $region88: #{decoder_layer.1} parent=11 // pred_fallthru
          _
        // Predicated region
        $region89: #{decoder_layer.1} parent=11 // pred_check
          %p792 = pneg %p568
        $region90: #{decoder_layer.1} parent=11 // pred_check_branch
          %794 = sbr.rel (%p792) target = $region92
        $region91: #{decoder_layer.1} parent=11 // pred_region
          %s796 = ssub.s32 16, 16
          %797 = vsyncadd [#allocation27], %s796
          %s799 = sshll.u32 [#allocation28], 4
          %s800 = int_to_ptr.vmem [resolvable:$true] %s799
          %802 = dma.hbm_to_vmem [thread:$0]  %s23, 16, %s800, [#allocation27]
        $region92: #{decoder_layer.1} parent=11 // pred_fallthru
          _
      $region12: #{decoder_layer.1} parent=5 // pred_fallthru
        _
      %p803 = scmp.lt.s32.totalorder %s44, 2
      // Predicated region
      $region93: #{decoder_layer.1} parent=5 // pred_check
        %p804 = pneg %p803
      $region94: #{decoder_layer.1} parent=5 // pred_check_branch
        %806 = sbr.rel (%p804) target = $region96
      $region95: #{decoder_layer.1} parent=5 // pred_region
        // Predicated region
        $region97: #{decoder_layer.1} parent=95 // pred_check
          %p807 = pneg %p64
        $region98: #{decoder_layer.1} parent=95 // pred_check_branch
          %809 = sbr.rel (%p807) target = $region100
        $region99: #{decoder_layer.1} parent=95 // pred_region
          %p810 = scmp.lt.s32.totalorder %s44, 1
          %s811 = scalar_select %p810, %s44, 1
          %s812 = smul.addr %s811, 8
          %s813 = scalar_lea.vmem %s0, %s812
        $region100: #{decoder_layer.1} parent=95 // pred_fallthru
          _
        // Predicated region
        $region101: #{decoder_layer.1} parent=95 // pred_check
          %p814 = pneg %p90
        $region102: #{decoder_layer.1} parent=95 // pred_check_branch
          %816 = sbr.rel (%p814) target = $region104
        $region103: #{decoder_layer.1} parent=95 // pred_region
          %p817 = scmp.lt.s32.totalorder %s44, 1
          %s818 = scalar_select %p817, %s44, 1
          %s819 = smul.addr %s818, 8
          %s820 = scalar_lea.vmem %s1, %s819
        $region104: #{decoder_layer.1} parent=95 // pred_fallthru
          _
        // Predicated region
        $region105: #{decoder_layer.1} parent=95 // pred_check
          %p821 = pneg %p116
        $region106: #{decoder_layer.1} parent=95 // pred_check_branch
          %823 = sbr.rel (%p821) target = $region108
        $region107: #{decoder_layer.1} parent=95 // pred_region
          %p824 = scmp.lt.s32.totalorder %s44, 1
          %s825 = scalar_select %p824, %s44, 1
          %s826 = smul.addr %s825, 8
          %s827 = scalar_lea.vmem %s2, %s826
        $region108: #{decoder_layer.1} parent=95 // pred_fallthru
          _
        // Predicated region
        $region109: #{decoder_layer.1} parent=95 // pred_check
          %p828 = pneg %p142
        $region110: #{decoder_layer.1} parent=95 // pred_check_branch
          %830 = sbr.rel (%p828) target = $region112
        $region111: #{decoder_layer.1} parent=95 // pred_region
          %s831 = sand.u32 %s132, 1
          %s832 = scalar_lea.sflag [#allocation3], %s831
          %s833 = sand.u32 %s132, 1
          %s834 = smul.addr %s833, 8
          %s835 = scalar_lea.vmem [#allocation2], %s834
          %s837 = ssub.s32 128, 128
          %838 = vsyncadd %s832, %s837
          %s839 = smul.addr %s44, 128
          %s840 = scalar_lea.hbm %s3, %s839
          %s842 = sshll.u32 %s835, 4
          %s843 = int_to_ptr.vmem [resolvable:$true] %s842
          %845 = dma.hbm_to_vmem [thread:$0]  %s840, 128, %s843, %s832
        $region112: #{decoder_layer.1} parent=95 // pred_fallthru
          _
      $region96: #{decoder_layer.1} parent=5 // pred_fallthru
        _
      %p846 = scmp.le.s32.totalorder 1, %s44
      %p847 = scmp.lt.s32.totalorder %s44, 3
      %p848 = pnand %p846, %p847
      %p849 = pneg %p848
      // Predicated region
      $region113: #{decoder_layer.1} parent=5 // pred_check
        _
      $region114: #{decoder_layer.1} parent=5 // pred_check_branch
        %851 = sbr.rel (%p848) target = $region116
      $region115: #{decoder_layer.1} parent=5 // pred_region
        %s852 = ssub.s32 %s44, 1
        %s853 = sand.u32 %s135, 1
        %s854 = scalar_lea.sflag [#allocation3], %s853
        %s855 = sand.u32 %s135, 1
        %s856 = smul.addr %s855, 8
        %s857 = scalar_lea.vmem [#allocation2], %s856
        // Predicated region
        $region117: #{decoder_layer.1} parent=115 // pred_check
          %p858 = pneg %p148
        $region118: #{decoder_layer.1} parent=115 // pred_check_branch
          %860 = sbr.rel (%p858) target = $region120
        $region119: #{decoder_layer.1} parent=115 // pred_region
          %861 = dma.done %s854, 128
        $region120: #{decoder_layer.1} parent=115 // pred_fallthru
          _
        // Predicated region
        $region121: #{decoder_layer.1} parent=115 // pred_check
          %p862 = pneg %p190
        $region122: #{decoder_layer.1} parent=115 // pred_check_branch
          %864 = sbr.rel (%p862) target = $region124
        $region123: #{decoder_layer.1} parent=115 // pred_region
          %865 = dma.done [#allocation6], 16
        $region124: #{decoder_layer.1} parent=115 // pred_fallthru
          _
        // Predicated region
        $region125: #{decoder_layer.1} parent=115 // pred_check
          %p866 = pneg %p232
        $region126: #{decoder_layer.1} parent=115 // pred_check_branch
          %868 = sbr.rel (%p866) target = $region128
        $region127: #{decoder_layer.1} parent=115 // pred_region
          %869 = dma.done [#allocation6], 16
        $region128: #{decoder_layer.1} parent=115 // pred_fallthru
          _
        // Predicated region
        $region129: #{decoder_layer.1} parent=115 // pred_check
          %p870 = pneg %p253
        $region130: #{decoder_layer.1} parent=115 // pred_check_branch
          %872 = sbr.rel (%p870) target = $region132
        $region131: #{decoder_layer.1} parent=115 // pred_region
          %873 = dma.done [#allocation9], 16
        $region132: #{decoder_layer.1} parent=115 // pred_fallthru
          _
        // Predicated region
        $region133: #{decoder_layer.1} parent=115 // pred_check
          %p874 = pneg %p274
        $region134: #{decoder_layer.1} parent=115 // pred_check_branch
          %876 = sbr.rel (%p874) target = $region136
        $region135: #{decoder_layer.1} parent=115 // pred_region
          %877 = dma.done [#allocation9], 16
        $region136: #{decoder_layer.1} parent=115 // pred_fallthru
          _
        // Predicated region
        $region137: #{decoder_layer.1} parent=115 // pred_check
          %p878 = pneg %p316
        $region138: #{decoder_layer.1} parent=115 // pred_check_branch
          %880 = sbr.rel (%p878) target = $region140
        $region139: #{decoder_layer.1} parent=115 // pred_region
          %881 = dma.done [#allocation12], 16
        $region140: #{decoder_layer.1} parent=115 // pred_fallthru
          _
        // Predicated region
        $region141: #{decoder_layer.1} parent=115 // pred_check
          %p882 = pneg %p337
        $region142: #{decoder_layer.1} parent=115 // pred_check_branch
          %884 = sbr.rel (%p882) target = $region144
        $region143: #{decoder_layer.1} parent=115 // pred_region
          %885 = dma.done [#allocation12], 512
        $region144: #{decoder_layer.1} parent=115 // pred_fallthru
          _
        // Predicated region
        $region145: #{decoder_layer.1} parent=115 // pred_check
          %p886 = pneg %p358
        $region146: #{decoder_layer.1} parent=115 // pred_check_branch
          %888 = sbr.rel (%p886) target = $region148
        $region147: #{decoder_layer.1} parent=115 // pred_region
          %889 = dma.done [#allocation15], 16
        $region148: #{decoder_layer.1} parent=115 // pred_fallthru
          _
        // Predicated region
        $region149: #{decoder_layer.1} parent=115 // pred_check
          %p890 = pneg %p379
        $region150: #{decoder_layer.1} parent=115 // pred_check_branch
          %892 = sbr.rel (%p890) target = $region152
        $region151: #{decoder_layer.1} parent=115 // pred_region
          %893 = dma.done [#allocation15], 512
        $region152: #{decoder_layer.1} parent=115 // pred_fallthru
          _
        // Predicated region
        $region153: #{decoder_layer.1} parent=115 // pred_check
          %p894 = pneg %p400
        $region154: #{decoder_layer.1} parent=115 // pred_check_branch
          %896 = sbr.rel (%p894) target = $region156
        $region155: #{decoder_layer.1} parent=115 // pred_region
          %897 = dma.done [#allocation18], 16
        $region156: #{decoder_layer.1} parent=115 // pred_fallthru
          _
        // Predicated region
        $region157: #{decoder_layer.1} parent=115 // pred_check
          %p898 = pneg %p421
        $region158: #{decoder_layer.1} parent=115 // pred_check_branch
          %900 = sbr.rel (%p898) target = $region160
        $region159: #{decoder_layer.1} parent=115 // pred_region
          %901 = dma.done [#allocation18], 16
        $region160: #{decoder_layer.1} parent=115 // pred_fallthru
          _
        // Predicated region
        $region161: #{decoder_layer.1} parent=115 // pred_check
          %p902 = pneg %p442
        $region162: #{decoder_layer.1} parent=115 // pred_check_branch
          %904 = sbr.rel (%p902) target = $region164
        $region163: #{decoder_layer.1} parent=115 // pred_region
          %905 = dma.done [#allocation21], 16
        $region164: #{decoder_layer.1} parent=115 // pred_fallthru
          _
        // Predicated region
        $region165: #{decoder_layer.1} parent=115 // pred_check
          %p906 = pneg %p463
        $region166: #{decoder_layer.1} parent=115 // pred_check_branch
          %908 = sbr.rel (%p906) target = $region168
        $region167: #{decoder_layer.1} parent=115 // pred_region
          %909 = dma.done [#allocation21], 512
        $region168: #{decoder_layer.1} parent=115 // pred_fallthru
          _
        // Predicated region
        $region169: #{decoder_layer.1} parent=115 // pred_check
          %p910 = pneg %p484
        $region170: #{decoder_layer.1} parent=115 // pred_check_branch
          %912 = sbr.rel (%p910) target = $region172
        $region171: #{decoder_layer.1} parent=115 // pred_region
          %913 = dma.done [#allocation24], 16
        $region172: #{decoder_layer.1} parent=115 // pred_fallthru
          _
        // Predicated region
        $region173: #{decoder_layer.1} parent=115 // pred_check
          %p914 = pneg %p526
        $region174: #{decoder_layer.1} parent=115 // pred_check_branch
          %916 = sbr.rel (%p914) target = $region176
        $region175: #{decoder_layer.1} parent=115 // pred_region
          %917 = dma.done [#allocation24], 16
        $region176: #{decoder_layer.1} parent=115 // pred_fallthru
          _
        // Predicated region
        $region177: #{decoder_layer.1} parent=115 // pred_check
          %p918 = pneg %p547
        $region178: #{decoder_layer.1} parent=115 // pred_check_branch
          %920 = sbr.rel (%p918) target = $region180
        $region179: #{decoder_layer.1} parent=115 // pred_region
          %921 = dma.done [#allocation27], 16
        $region180: #{decoder_layer.1} parent=115 // pred_fallthru
          _
        // Predicated region
        $region181: #{decoder_layer.1} parent=115 // pred_check
          %p922 = pneg %p568
        $region182: #{decoder_layer.1} parent=115 // pred_check_branch
          %924 = sbr.rel (%p922) target = $region184
        $region183: #{decoder_layer.1} parent=115 // pred_region
          %925 = dma.done [#allocation27], 16
        $region184: #{decoder_layer.1} parent=115 // pred_fallthru
          _
        %p926 = scmp.lt.s32.totalorder %s49, 1
        %s927 = scalar_select %p926, %s49, 1
        %s928 = smul.addr %s927, 8
        %s929 = scalar_lea.vmem %s0, %s928
        %p930 = pneg %p70
        %p931 = pneg %p67
        %p932 = scmp.lt.s32.totalorder %s49, 1
        %s933 = scalar_select %p932, %s49, 1
        %s934 = smul.addr %s933, 8
        %s935 = scalar_lea.vmem %s1, %s934
        %p936 = pneg %p96
        %p937 = pneg %p93
        %p938 = scmp.lt.s32.totalorder %s49, 1
        %s939 = scalar_select %p938, %s49, 1
        %s940 = smul.addr %s939, 8
        %s941 = scalar_lea.vmem %s2, %s940
        %p942 = pneg %p122
        %p943 = pneg %p119
        %s944 = sand.u32 %s135, 1
        %s945 = scalar_lea.sflag [#allocation3], %s944
        %s946 = sand.u32 %s135, 1
        %s947 = smul.addr %s946, 8
        %s948 = scalar_lea.vmem [#allocation2], %s947
        %p949 = pneg %p148
        %p950 = pneg %p145
        %p951 = pneg %p169
        %p952 = pneg %p166
        %p953 = pneg %p190
        %p954 = pneg %p187
        %p955 = pneg %p211
        %p956 = pneg %p208
        %p957 = pneg %p232
        %p958 = pneg %p229
        %p959 = pneg %p253
        %p960 = pneg %p250
        %p961 = pneg %p274
        %p962 = pneg %p271
        %p963 = pneg %p295
        %p964 = pneg %p292
        %p965 = pneg %p316
        %p966 = pneg %p313
        %p967 = pneg %p337
        %p968 = pneg %p334
        %p969 = pneg %p358
        %p970 = pneg %p355
        %p971 = pneg %p379
        %p972 = pneg %p376
        %p973 = pneg %p400
        %p974 = pneg %p397
        %p975 = pneg %p421
        %p976 = pneg %p418
        %p977 = pneg %p442
        %p978 = pneg %p439
        %p979 = pneg %p463
        %p980 = pneg %p460
        %p981 = pneg %p484
        %p982 = pneg %p481
        %p983 = pneg %p505
        %p984 = pneg %p502
        %p985 = pneg %p526
        %p986 = pneg %p523
        %p987 = pneg %p547
        %p988 = pneg %p544
        %p989 = pneg %p568
        %p990 = pneg %p565
        %p991 = pneg %p594
        %p992 = pneg %p591
        %s993 = sand.u32 %s581, 1
        %s994 = scalar_lea.sflag [#allocation4], %s993
        %s995 = sand.u32 %s581, 1
        %s996 = smul.addr %s995, 8
        %s997 = scalar_lea.vmem [#allocation29], %s996
        %p998 = scmp.lt.s32.totalorder %s49, 1
        %s999 = scalar_select %p998, %s49, 1
        %s1000 = smul.addr %s999, 8
        %s1001 = scalar_lea.vmem %s0, %s1000
        %p1002 = scmp.lt.s32.totalorder %s49, 1
        %s1003 = scalar_select %p1002, %s49, 1
        %s1004 = smul.addr %s1003, 8
        %s1005 = scalar_lea.vmem %s1, %s1004
        %p1006 = scmp.lt.s32.totalorder %s49, 1
        %s1007 = scalar_select %p1006, %s49, 1
        %s1008 = smul.addr %s1007, 8
        %s1009 = scalar_lea.vmem %s2, %s1008
        %v1010 = vld [vmem:[%s1001] sm:$0xff]
        %v1011 = vld [vmem:[%s1005] sm:$0xff]
        %v1012 = vld [vmem:[%s4] sm:$0xff]
        %v1013 = vld [vmem:[%s4 + $0x8] sm:$0xff]
        %v1014 = vld [vmem:[%s4 + $0x10] sm:$0xff]
        %v1015 = vld [vmem:[%s4 + $0x18] sm:$0xff]
        %v1016 = vld [vmem:[#allocation5] sm:$0x1]
        %v1018 = vlaneseq
        %v1019 = vshrl.u32 %v1018, 7
        %v1020 = vsub.s32 0, %v1019
        %v1021 = vrot.slane %v1016, %v1020
        %vm1023 = vcmask 261120
        %v1025 = vsel %vm1023, %v1010, 0
        %1027 = vmatprep.subr.mxu0 0.0
        %1028 = vmatpush1.msra.mxu0 %v1012
        %1029 = vmatprep.subr.mxu0 0.0
        %1030 = vmatpush1.msra.mxu0 %v1013
        %1031 = vmatprep.subr.mxu0 0.0
        %1032 = vmatpush1.msra.mxu0 %v1014
        %1033 = vmatprep.subr.mxu0 0.0
        %1034 = vmatpush1.msra.mxu0 %v1015
        %1035 = vmatprep.subr.mxu0 0.0
        %1036 = vmatpush1.msra.mxu0 0.0
        %1037 = vmatprep.subr.mxu0 0.0
        %1038 = vmatpush1.msra.mxu0 0.0
        %1039 = vmatprep.subr.mxu0 0.0
        %1040 = vmatpush1.msra.mxu0 0.0
        %1041 = vmatprep.subr.mxu0 0.0
        %1042 = vmatpush1.msra.mxu0 0.0
        %1043 = vmatprep.subr.mxu0 0.0
        %1044 = vmatpush1.msra.mxu0 0.0
        %1045 = vmatprep.subr.mxu0 0.0
        %1046 = vmatpush1.msra.mxu0 0.0
        %1047 = vmatprep.subr.mxu0 0.0
        %1048 = vmatpush1.msra.mxu0 0.0
        %1049 = vmatprep.subr.mxu0 0.0
        %1050 = vmatpush1.msra.mxu0 0.0
        %1051 = vmatprep.subr.mxu0 0.0
        %1052 = vmatpush1.msra.mxu0 0.0
        %1053 = vmatprep.subr.mxu0 0.0
        %1054 = vmatpush1.msra.mxu0 0.0
        %1055 = vmatprep.subr.mxu0 0.0
        %1056 = vmatpush1.msra.mxu0 0.0
        %1057 = vmatprep.subr.mxu0 0.0
        %1058 = vmatpush1.msra.mxu0 0.0
        %1059 = vmatprep.subr.mxu0 0.0
        %1060 = vmatpush1.msra.mxu0 0.0
        %1061 = vmatprep.subr.mxu0 0.0
        %1062 = vmatpush1.msra.mxu0 0.0
        %1063 = vmatprep.subr.mxu0 0.0
        %1064 = vmatpush1.msra.mxu0 0.0
        %1065 = vmatprep.subr.mxu0 0.0
        %1066 = vmatpush1.msra.mxu0 0.0
        %1067 = vmatprep.subr.mxu0 0.0
        %1068 = vmatpush1.msra.mxu0 0.0
        %1069 = vmatprep.subr.mxu0 0.0
        %1070 = vmatpush1.msra.mxu0 0.0
        %1071 = vmatprep.subr.mxu0 0.0
        %1072 = vmatpush1.msra.mxu0 0.0
        %1073 = vmatprep.subr.mxu0 0.0
        %1074 = vmatpush1.msra.mxu0 0.0
        %1075 = vmatprep.subr.mxu0 0.0
        %1076 = vmatpush1.msra.mxu0 0.0
        %1077 = vmatprep.subr.mxu0 0.0
        %1078 = vmatpush1.msra.mxu0 0.0
        %1079 = vmatprep.subr.mxu0 0.0
        %1080 = vmatpush1.msra.mxu0 0.0
        %1081 = vmatprep.subr.mxu0 0.0
        %1082 = vmatpush1.msra.mxu0 0.0
        %1083 = vmatprep.subr.mxu0 0.0
        %1084 = vmatpush1.msra.mxu0 0.0
        %1085 = vmatprep.subr.mxu0 0.0
        %1086 = vmatpush1.msra.mxu0 0.0
        %1087 = vmatprep.subr.mxu0 0.0
        %1088 = vmatpush1.msra.mxu0 0.0
        %1089 = vmatprep.subr.mxu0 0.0
        %1090 = vmatpush1.msra.mxu0 0.0
        %1091 = vmatprep.mubr.f32.mxu0 0.0
        %1092 = vmatmul.mubr.f32.gmra.mrb[0].mxu0 %v1025
        %v1093 = vpop.f32.mrb[0].mxu0
        %v1094 = vadd.f32 %v1021, %v1093
        %v1095 = vpop.f32.mrb[0].mxu0
        %1096 = vdwg.mxu0
        %v1097 = vld [vmem:[%s1009] sm:$0xff]
        %v1098 = vld [vmem:[%s6] sm:$0xff]
        %v1099 = vld [vmem:[%s6 + $0x8] sm:$0xff]
        %v1100 = vld [vmem:[%s6 + $0x10] sm:$0xff]
        %v1101 = vld [vmem:[%s6 + $0x18] sm:$0xff]
        %v1102 = vld [vmem:[#allocation7] sm:$0x1]
        %1104 = vrot.lane.b32.xlu0 %v1094, 120
        %v1105 = vpop.permute.xlu0 %1104
        %1107 = vrot.lane.b32.xlu0 %v1094, 112
        %v1108 = vpop.permute.xlu0 %1107
        %1110 = vrot.lane.b32.xlu0 %v1094, 104
        %v1111 = vpop.permute.xlu0 %1110
        %v1113 = vcombine.low %v1094, %v1108
        %v1114 = vcombine.high %v1094, %v1108
        %v1116 = vunpack.c.l.s4 1983009808
        %v1117 = vunpack.c.0.s8 %v1116
        %v1118 = vlaneseq
        %v1119 = vshrl.u32 %v1118, 7
        %v1120 = vsub.s32 %v1117, %v1119
        %v1121 = vrot.slane %v1113, %v1120
        %v1123 = vunpack.c.l.s4 1983009808
        %v1124 = vunpack.c.0.s8 %v1123
        %v1125 = vlaneseq
        %v1126 = vshrl.u32 %v1125, 7
        %v1127 = vsub.s32 %v1124, %v1126
        %v1128 = vrot.slane %v1114, %v1127
        %v1129 = vcombine.low %v1105, %v1111
        %v1130 = vcombine.high %v1105, %v1111
        %v1132 = vunpack.c.l.s4 1983009808
        %v1133 = vunpack.c.0.s8 %v1132
        %v1134 = vlaneseq
        %v1135 = vshrl.u32 %v1134, 7
        %v1136 = vsub.s32 %v1133, %v1135
        %v1137 = vrot.slane %v1129, %v1136
        %v1139 = vunpack.c.l.s4 1983009808
        %v1140 = vunpack.c.0.s8 %v1139
        %v1141 = vlaneseq
        %v1142 = vshrl.u32 %v1141, 7
        %v1143 = vsub.s32 %v1140, %v1142
        %v1144 = vrot.slane %v1130, %v1143
        %v1145 = vcombine.low %v1121, %v1137
        %v1146 = vcombine.high %v1121, %v1137
        %v1148 = vunpack.c.l.s4 1934713408
        %v1149 = vunpack.c.0.s8 %v1148
        %v1150 = vlaneseq
        %v1151 = vshrl.u32 %v1150, 7
        %v1152 = vsub.s32 %v1149, %v1151
        %v1153 = vrot.slane %v1145, %v1152
        %v1155 = vunpack.c.l.s4 1934713408
        %v1156 = vunpack.c.0.s8 %v1155
        %v1157 = vlaneseq
        %v1158 = vshrl.u32 %v1157, 7
        %v1159 = vsub.s32 %v1156, %v1158
        %v1160 = vrot.slane %v1146, %v1159
        %v1161 = vcombine.low %v1128, %v1144
        %v1162 = vcombine.high %v1128, %v1144
        %v1164 = vunpack.c.l.s4 1934713408
        %v1165 = vunpack.c.0.s8 %v1164
        %v1166 = vlaneseq
        %v1167 = vshrl.u32 %v1166, 7
        %v1168 = vsub.s32 %v1165, %v1167
        %v1169 = vrot.slane %v1161, %v1168
        %v1171 = vunpack.c.l.s4 1934713408
        %v1172 = vunpack.c.0.s8 %v1171
        %v1173 = vlaneseq
        %v1174 = vshrl.u32 %v1173, 7
        %v1175 = vsub.s32 %v1172, %v1174
        %v1176 = vrot.slane %v1162, %v1175
        %v1177 = vcombine.high %v1153, 0.0
        %v1178 = vcombine.high %v1160, 0.0
        %v1179 = vcombine.high %v1169, 0.0
        %v1180 = vcombine.high %v1176, 0.0
        %v1181 = vcombine.low %v1153, %v1160
        %v1183 = vunpack.c.l.s4 1983009808
        %v1184 = vunpack.c.0.s8 %v1183
        %v1185 = vlaneseq
        %v1186 = vshrl.u32 %v1185, 7
        %v1187 = vsub.s32 %v1184, %v1186
        %v1188 = vrot.slane %v1181, %v1187
        %v1189 = vcombine.low %v1177, %v1178
        %v1191 = vunpack.c.l.s4 1983009808
        %v1192 = vunpack.c.0.s8 %v1191
        %v1193 = vlaneseq
        %v1194 = vshrl.u32 %v1193, 7
        %v1195 = vsub.s32 %v1192, %v1194
        %v1196 = vrot.slane %v1189, %v1195
        %v1197 = vcombine.low %v1169, %v1176
        %v1199 = vunpack.c.l.s4 1983009808
        %v1200 = vunpack.c.0.s8 %v1199
        %v1201 = vlaneseq
        %v1202 = vshrl.u32 %v1201, 7
        %v1203 = vsub.s32 %v1200, %v1202
        %v1204 = vrot.slane %v1197, %v1203
        %v1205 = vcombine.low %v1179, %v1180
        %v1207 = vunpack.c.l.s4 1983009808
        %v1208 = vunpack.c.0.s8 %v1207
        %v1209 = vlaneseq
        %v1210 = vshrl.u32 %v1209, 7
        %v1211 = vsub.s32 %v1208, %v1210
        %v1212 = vrot.slane %v1205, %v1211
        %v1213 = vcombine.low %v1188, %v1196
        %v1214 = vcombine.high %v1188, %v1196
        %v1216 = vunpack.c.l.s4 1934713408
        %v1217 = vunpack.c.0.s8 %v1216
        %v1218 = vlaneseq
        %v1219 = vshrl.u32 %v1218, 7
        %v1220 = vsub.s32 %v1217, %v1219
        %v1221 = vrot.slane %v1213, %v1220
        %v1223 = vunpack.c.l.s4 1934713408
        %v1224 = vunpack.c.0.s8 %v1223
        %v1225 = vlaneseq
        %v1226 = vshrl.u32 %v1225, 7
        %v1227 = vsub.s32 %v1224, %v1226
        %v1228 = vrot.slane %v1214, %v1227
        %v1229 = vcombine.low %v1204, %v1212
        %v1230 = vcombine.high %v1204, %v1212
        %v1232 = vunpack.c.l.s4 1934713408
        %v1233 = vunpack.c.0.s8 %v1232
        %v1234 = vlaneseq
        %v1235 = vshrl.u32 %v1234, 7
        %v1236 = vsub.s32 %v1233, %v1235
        %v1237 = vrot.slane %v1229, %v1236
        %v1239 = vunpack.c.l.s4 1934713408
        %v1240 = vunpack.c.0.s8 %v1239
        %v1241 = vlaneseq
        %v1242 = vshrl.u32 %v1241, 7
        %v1243 = vsub.s32 %v1240, %v1242
        %v1244 = vrot.slane %v1230, %v1243
        %v1245 = vcombine.low %v1221, %v1237
        %v1246 = vcombine.high %v1221, %v1237
        %v1247 = vcombine.low %v1228, %v1244
        %v1248 = vcombine.high %v1228, %v1244
        %1249 = vrot.lane.b32.xlu0 %v1094, 96
        %v1250 = vpop.permute.xlu0 %1249
        %1251 = vrot.lane.b32.xlu0 %v1105, 96
        %v1252 = vpop.permute.xlu0 %1251
        %1253 = vrot.lane.b32.xlu0 %v1108, 96
        %v1254 = vpop.permute.xlu0 %1253
        %1255 = vrot.lane.b32.xlu0 %v1111, 96
        %v1256 = vpop.permute.xlu0 %1255
        %v1261 = vcombine.low %v1250, %v1254
        %v1262 = vcombine.high %v1250, %v1254
        %v1264 = vunpack.c.l.s4 1983009808
        %v1265 = vunpack.c.0.s8 %v1264
        %v1266 = vlaneseq
        %v1267 = vshrl.u32 %v1266, 7
        %v1268 = vsub.s32 %v1265, %v1267
        %v1269 = vrot.slane %v1261, %v1268
        %v1271 = vunpack.c.l.s4 1983009808
        %v1272 = vunpack.c.0.s8 %v1271
        %v1273 = vlaneseq
        %v1274 = vshrl.u32 %v1273, 7
        %v1275 = vsub.s32 %v1272, %v1274
        %v1276 = vrot.slane %v1262, %v1275
        %v1277 = vcombine.low %v1252, %v1256
        %v1278 = vcombine.high %v1252, %v1256
        %v1280 = vunpack.c.l.s4 1983009808
        %v1281 = vunpack.c.0.s8 %v1280
        %v1282 = vlaneseq
        %v1283 = vshrl.u32 %v1282, 7
        %v1284 = vsub.s32 %v1281, %v1283
        %v1285 = vrot.slane %v1277, %v1284
        %v1287 = vunpack.c.l.s4 1983009808
        %v1288 = vunpack.c.0.s8 %v1287
        %v1289 = vlaneseq
        %v1290 = vshrl.u32 %v1289, 7
        %v1291 = vsub.s32 %v1288, %v1290
        %v1292 = vrot.slane %v1278, %v1291
        %v1293 = vcombine.low %v1269, %v1285
        %v1294 = vcombine.high %v1269, %v1285
        %v1296 = vunpack.c.l.s4 1934713408
        %v1297 = vunpack.c.0.s8 %v1296
        %v1298 = vlaneseq
        %v1299 = vshrl.u32 %v1298, 7
        %v1300 = vsub.s32 %v1297, %v1299
        %v1301 = vrot.slane %v1293, %v1300
        %v1303 = vunpack.c.l.s4 1934713408
        %v1304 = vunpack.c.0.s8 %v1303
        %v1305 = vlaneseq
        %v1306 = vshrl.u32 %v1305, 7
        %v1307 = vsub.s32 %v1304, %v1306
        %v1308 = vrot.slane %v1294, %v1307
        %v1309 = vcombine.low %v1276, %v1292
        %v1310 = vcombine.high %v1276, %v1292
        %v1312 = vunpack.c.l.s4 1934713408
        %v1313 = vunpack.c.0.s8 %v1312
        %v1314 = vlaneseq
        %v1315 = vshrl.u32 %v1314, 7
        %v1316 = vsub.s32 %v1313, %v1315
        %v1317 = vrot.slane %v1309, %v1316
        %v1319 = vunpack.c.l.s4 1934713408
        %v1320 = vunpack.c.0.s8 %v1319
        %v1321 = vlaneseq
        %v1322 = vshrl.u32 %v1321, 7
        %v1323 = vsub.s32 %v1320, %v1322
        %v1324 = vrot.slane %v1310, %v1323
        %v1325 = vcombine.high %v1301, 0.0
        %v1326 = vcombine.high %v1308, 0.0
        %v1327 = vcombine.high %v1317, 0.0
        %v1328 = vcombine.high %v1324, 0.0
        %v1329 = vcombine.low %v1301, %v1308
        %v1331 = vunpack.c.l.s4 1983009808
        %v1332 = vunpack.c.0.s8 %v1331
        %v1333 = vlaneseq
        %v1334 = vshrl.u32 %v1333, 7
        %v1335 = vsub.s32 %v1332, %v1334
        %v1336 = vrot.slane %v1329, %v1335
        %v1337 = vcombine.low %v1325, %v1326
        %v1339 = vunpack.c.l.s4 1983009808
        %v1340 = vunpack.c.0.s8 %v1339
        %v1341 = vlaneseq
        %v1342 = vshrl.u32 %v1341, 7
        %v1343 = vsub.s32 %v1340, %v1342
        %v1344 = vrot.slane %v1337, %v1343
        %v1345 = vcombine.low %v1317, %v1324
        %v1347 = vunpack.c.l.s4 1983009808
        %v1348 = vunpack.c.0.s8 %v1347
        %v1349 = vlaneseq
        %v1350 = vshrl.u32 %v1349, 7
        %v1351 = vsub.s32 %v1348, %v1350
        %v1352 = vrot.slane %v1345, %v1351
        %v1353 = vcombine.low %v1327, %v1328
        %v1355 = vunpack.c.l.s4 1983009808
        %v1356 = vunpack.c.0.s8 %v1355
        %v1357 = vlaneseq
        %v1358 = vshrl.u32 %v1357, 7
        %v1359 = vsub.s32 %v1356, %v1358
        %v1360 = vrot.slane %v1353, %v1359
        %v1361 = vcombine.low %v1336, %v1344
        %v1362 = vcombine.high %v1336, %v1344
        %v1364 = vunpack.c.l.s4 1934713408
        %v1365 = vunpack.c.0.s8 %v1364
        %v1366 = vlaneseq
        %v1367 = vshrl.u32 %v1366, 7
        %v1368 = vsub.s32 %v1365, %v1367
        %v1369 = vrot.slane %v1361, %v1368
        %v1371 = vunpack.c.l.s4 1934713408
        %v1372 = vunpack.c.0.s8 %v1371
        %v1373 = vlaneseq
        %v1374 = vshrl.u32 %v1373, 7
        %v1375 = vsub.s32 %v1372, %v1374
        %v1376 = vrot.slane %v1362, %v1375
        %v1377 = vcombine.low %v1352, %v1360
        %v1378 = vcombine.high %v1352, %v1360
        %v1380 = vunpack.c.l.s4 1934713408
        %v1381 = vunpack.c.0.s8 %v1380
        %v1382 = vlaneseq
        %v1383 = vshrl.u32 %v1382, 7
        %v1384 = vsub.s32 %v1381, %v1383
        %v1385 = vrot.slane %v1377, %v1384
        %v1387 = vunpack.c.l.s4 1934713408
        %v1388 = vunpack.c.0.s8 %v1387
        %v1389 = vlaneseq
        %v1390 = vshrl.u32 %v1389, 7
        %v1391 = vsub.s32 %v1388, %v1390
        %v1392 = vrot.slane %v1378, %v1391
        %v1393 = vcombine.low %v1369, %v1385
        %v1394 = vcombine.high %v1369, %v1385
        %v1395 = vcombine.low %v1376, %v1392
        %v1396 = vcombine.high %v1376, %v1392
        %1397 = vrot.lane.b32.xlu0 %v1094, 64
        %v1398 = vpop.permute.xlu0 %1397
        %1399 = vrot.lane.b32.xlu0 %v1105, 64
        %v1400 = vpop.permute.xlu0 %1399
        %1401 = vrot.lane.b32.xlu0 %v1108, 64
        %v1402 = vpop.permute.xlu0 %1401
        %1403 = vrot.lane.b32.xlu0 %v1111, 64
        %v1404 = vpop.permute.xlu0 %1403
        %v1409 = vcombine.low %v1398, %v1402
        %v1410 = vcombine.high %v1398, %v1402
        %v1412 = vunpack.c.l.s4 1983009808
        %v1413 = vunpack.c.0.s8 %v1412
        %v1414 = vlaneseq
        %v1415 = vshrl.u32 %v1414, 7
        %v1416 = vsub.s32 %v1413, %v1415
        %v1417 = vrot.slane %v1409, %v1416
        %v1419 = vunpack.c.l.s4 1983009808
        %v1420 = vunpack.c.0.s8 %v1419
        %v1421 = vlaneseq
        %v1422 = vshrl.u32 %v1421, 7
        %v1423 = vsub.s32 %v1420, %v1422
        %v1424 = vrot.slane %v1410, %v1423
        %v1425 = vcombine.low %v1400, %v1404
        %v1426 = vcombine.high %v1400, %v1404
        %v1428 = vunpack.c.l.s4 1983009808
        %v1429 = vunpack.c.0.s8 %v1428
        %v1430 = vlaneseq
        %v1431 = vshrl.u32 %v1430, 7
        %v1432 = vsub.s32 %v1429, %v1431
        %v1433 = vrot.slane %v1425, %v1432
        %v1435 = vunpack.c.l.s4 1983009808
        %v1436 = vunpack.c.0.s8 %v1435
        %v1437 = vlaneseq
        %v1438 = vshrl.u32 %v1437, 7
        %v1439 = vsub.s32 %v1436, %v1438
        %v1440 = vrot.slane %v1426, %v1439
        %v1441 = vcombine.low %v1417, %v1433
        %v1442 = vcombine.high %v1417, %v1433
        %v1444 = vunpack.c.l.s4 1934713408
        %v1445 = vunpack.c.0.s8 %v1444
        %v1446 = vlaneseq
        %v1447 = vshrl.u32 %v1446, 7
        %v1448 = vsub.s32 %v1445, %v1447
        %v1449 = vrot.slane %v1441, %v1448
        %v1451 = vunpack.c.l.s4 1934713408
        %v1452 = vunpack.c.0.s8 %v1451
        %v1453 = vlaneseq
        %v1454 = vshrl.u32 %v1453, 7
        %v1455 = vsub.s32 %v1452, %v1454
        %v1456 = vrot.slane %v1442, %v1455
        %v1457 = vcombine.low %v1424, %v1440
        %v1458 = vcombine.high %v1424, %v1440
        %v1460 = vunpack.c.l.s4 1934713408
        %v1461 = vunpack.c.0.s8 %v1460
        %v1462 = vlaneseq
        %v1463 = vshrl.u32 %v1462, 7
        %v1464 = vsub.s32 %v1461, %v1463
        %v1465 = vrot.slane %v1457, %v1464
        %v1467 = vunpack.c.l.s4 1934713408
        %v1468 = vunpack.c.0.s8 %v1467
        %v1469 = vlaneseq
        %v1470 = vshrl.u32 %v1469, 7
        %v1471 = vsub.s32 %v1468, %v1470
        %v1472 = vrot.slane %v1458, %v1471
        %v1473 = vcombine.high %v1449, 0.0
        %v1474 = vcombine.high %v1456, 0.0
        %v1475 = vcombine.high %v1465, 0.0
        %v1476 = vcombine.high %v1472, 0.0
        %v1477 = vcombine.low %v1449, %v1456
        %v1479 = vunpack.c.l.s4 1983009808
        %v1480 = vunpack.c.0.s8 %v1479
        %v1481 = vlaneseq
        %v1482 = vshrl.u32 %v1481, 7
        %v1483 = vsub.s32 %v1480, %v1482
        %v1484 = vrot.slane %v1477, %v1483
        %v1485 = vcombine.low %v1473, %v1474
        %v1487 = vunpack.c.l.s4 1983009808
        %v1488 = vunpack.c.0.s8 %v1487
        %v1489 = vlaneseq
        %v1490 = vshrl.u32 %v1489, 7
        %v1491 = vsub.s32 %v1488, %v1490
        %v1492 = vrot.slane %v1485, %v1491
        %v1493 = vcombine.low %v1465, %v1472
        %v1495 = vunpack.c.l.s4 1983009808
        %v1496 = vunpack.c.0.s8 %v1495
        %v1497 = vlaneseq
        %v1498 = vshrl.u32 %v1497, 7
        %v1499 = vsub.s32 %v1496, %v1498
        %v1500 = vrot.slane %v1493, %v1499
        %v1501 = vcombine.low %v1475, %v1476
        %v1503 = vunpack.c.l.s4 1983009808
        %v1504 = vunpack.c.0.s8 %v1503
        %v1505 = vlaneseq
        %v1506 = vshrl.u32 %v1505, 7
        %v1507 = vsub.s32 %v1504, %v1506
        %v1508 = vrot.slane %v1501, %v1507
        %v1509 = vcombine.low %v1484, %v1492
        %v1510 = vcombine.high %v1484, %v1492
        %v1512 = vunpack.c.l.s4 1934713408
        %v1513 = vunpack.c.0.s8 %v1512
        %v1514 = vlaneseq
        %v1515 = vshrl.u32 %v1514, 7
        %v1516 = vsub.s32 %v1513, %v1515
        %v1517 = vrot.slane %v1509, %v1516
        %v1519 = vunpack.c.l.s4 1934713408
        %v1520 = vunpack.c.0.s8 %v1519
        %v1521 = vlaneseq
        %v1522 = vshrl.u32 %v1521, 7
        %v1523 = vsub.s32 %v1520, %v1522
        %v1524 = vrot.slane %v1510, %v1523
        %v1525 = vcombine.low %v1500, %v1508
        %v1526 = vcombine.high %v1500, %v1508
        %v1528 = vunpack.c.l.s4 1934713408
        %v1529 = vunpack.c.0.s8 %v1528
        %v1530 = vlaneseq
        %v1531 = vshrl.u32 %v1530, 7
        %v1532 = vsub.s32 %v1529, %v1531
        %v1533 = vrot.slane %v1525, %v1532
        %v1535 = vunpack.c.l.s4 1934713408
        %v1536 = vunpack.c.0.s8 %v1535
        %v1537 = vlaneseq
        %v1538 = vshrl.u32 %v1537, 7
        %v1539 = vsub.s32 %v1536, %v1538
        %v1540 = vrot.slane %v1526, %v1539
        %v1541 = vcombine.low %v1517, %v1533
        %v1542 = vcombine.high %v1517, %v1533
        %v1543 = vcombine.low %v1524, %v1540
        %v1544 = vcombine.high %v1524, %v1540
        %vm1545 = vcmask 64512
        %v1547 = vsel %vm1545, %v1245, 0
        %v1550 = vsel %vm1545, %v1393, 0
        %1552 = vmatprep.subr.mxu0 0.0
        %1553 = vmatpush1.xpose.msra.mxu0 %v1550
        %1554 = vmatprep.subr.mxu0 0.0
        %1555 = vmatpush1.xpose.msra.mxu0 0.0
        %1556 = vmatprep.subr.mxu0 0.0
        %1557 = vmatpush1.xpose.msra.mxu0 0.0
        %1558 = vmatprep.subr.mxu0 0.0
        %1559 = vmatpush1.xpose.msra.mxu0 0.0
        %1560 = vmatprep.subr.mxu0 0.0
        %1561 = vmatpush1.xpose.msra.mxu0 0.0
        %1562 = vmatprep.subr.mxu0 0.0
        %1563 = vmatpush1.xpose.msra.mxu0 0.0
        %1564 = vmatprep.subr.mxu0 0.0
        %1565 = vmatpush1.xpose.msra.mxu0 0.0
        %1566 = vmatprep.subr.mxu0 0.0
        %1567 = vmatpush1.xpose.msra.mxu0 0.0
        %1568 = vmatprep.subr.mxu0 0.0
        %1569 = vmatpush1.xpose.msra.mxu0 0.0
        %1570 = vmatprep.subr.mxu0 0.0
        %1571 = vmatpush1.xpose.msra.mxu0 0.0
        %1572 = vmatprep.subr.mxu0 0.0
        %1573 = vmatpush1.xpose.msra.mxu0 0.0
        %1574 = vmatprep.subr.mxu0 0.0
        %1575 = vmatpush1.xpose.msra.mxu0 0.0
        %1576 = vmatprep.subr.mxu0 0.0
        %1577 = vmatpush1.xpose.msra.mxu0 0.0
        %1578 = vmatprep.subr.mxu0 0.0
        %1579 = vmatpush1.xpose.msra.mxu0 0.0
        %1580 = vmatprep.subr.mxu0 0.0
        %1581 = vmatpush1.xpose.msra.mxu0 0.0
        %1582 = vmatprep.subr.mxu0 0.0
        %1583 = vmatpush1.xpose.msra.mxu0 0.0
        %1584 = vmatprep.subr.mxu0 0.0
        %1585 = vmatpush1.xpose.msra.mxu0 0.0
        %1586 = vmatprep.subr.mxu0 0.0
        %1587 = vmatpush1.xpose.msra.mxu0 0.0
        %1588 = vmatprep.subr.mxu0 0.0
        %1589 = vmatpush1.xpose.msra.mxu0 0.0
        %1590 = vmatprep.subr.mxu0 0.0
        %1591 = vmatpush1.xpose.msra.mxu0 0.0
        %1592 = vmatprep.subr.mxu0 0.0
        %1593 = vmatpush1.xpose.msra.mxu0 0.0
        %1594 = vmatprep.subr.mxu0 0.0
        %1595 = vmatpush1.xpose.msra.mxu0 0.0
        %1596 = vmatprep.subr.mxu0 0.0
        %1597 = vmatpush1.xpose.msra.mxu0 0.0
        %1598 = vmatprep.subr.mxu0 0.0
        %1599 = vmatpush1.xpose.msra.mxu0 0.0
        %1600 = vmatprep.subr.mxu0 0.0
        %1601 = vmatpush1.xpose.msra.mxu0 0.0
        %1602 = vmatprep.subr.mxu0 0.0
        %1603 = vmatpush1.xpose.msra.mxu0 0.0
        %1604 = vmatprep.subr.mxu0 0.0
        %1605 = vmatpush1.xpose.msra.mxu0 0.0
        %1606 = vmatprep.subr.mxu0 0.0
        %1607 = vmatpush1.xpose.msra.mxu0 0.0
        %1608 = vmatprep.subr.mxu0 0.0
        %1609 = vmatpush1.xpose.msra.mxu0 0.0
        %1610 = vmatprep.subr.mxu0 0.0
        %1611 = vmatpush1.xpose.msra.mxu0 0.0
        %1612 = vmatprep.subr.mxu0 0.0
        %1613 = vmatpush1.xpose.msra.mxu0 0.0
        %1614 = vmatprep.subr.mxu0 0.0
        %1615 = vmatpush1.xpose.msra.mxu0 0.0
        %1616 = vmatprep.mubr.f32.mxu0 0.0
        %1617 = vmatmul.mubr.f32.gmra.mrb[0].mxu0 %v1547
        %v1618 = vpop.f32.mrb[0].mxu0
        %v1619 = vadd.f32 0.0, %v1618
        %v1620 = vpop.f32.mrb[0].mxu0
        %1621 = vdwg.mxu0
        %v1623 = vsel %vm1545, %v1246, 0
        %v1626 = vsel %vm1545, %v1394, 0
        %1628 = vmatprep.subr.mxu0 0.0
        %1629 = vmatpush1.xpose.msra.mxu0 %v1626
        %1630 = vmatprep.subr.mxu0 0.0
        %1631 = vmatpush1.xpose.msra.mxu0 0.0
        %1632 = vmatprep.subr.mxu0 0.0
        %1633 = vmatpush1.xpose.msra.mxu0 0.0
        %1634 = vmatprep.subr.mxu0 0.0
        %1635 = vmatpush1.xpose.msra.mxu0 0.0
        %1636 = vmatprep.subr.mxu0 0.0
        %1637 = vmatpush1.xpose.msra.mxu0 0.0
        %1638 = vmatprep.subr.mxu0 0.0
        %1639 = vmatpush1.xpose.msra.mxu0 0.0
        %1640 = vmatprep.subr.mxu0 0.0
        %1641 = vmatpush1.xpose.msra.mxu0 0.0
        %1642 = vmatprep.subr.mxu0 0.0
        %1643 = vmatpush1.xpose.msra.mxu0 0.0
        %1644 = vmatprep.subr.mxu0 0.0
        %1645 = vmatpush1.xpose.msra.mxu0 0.0
        %1646 = vmatprep.subr.mxu0 0.0
        %1647 = vmatpush1.xpose.msra.mxu0 0.0
        %1648 = vmatprep.subr.mxu0 0.0
        %1649 = vmatpush1.xpose.msra.mxu0 0.0
        %1650 = vmatprep.subr.mxu0 0.0
        %1651 = vmatpush1.xpose.msra.mxu0 0.0
        %1652 = vmatprep.subr.mxu0 0.0
        %1653 = vmatpush1.xpose.msra.mxu0 0.0
        %1654 = vmatprep.subr.mxu0 0.0
        %1655 = vmatpush1.xpose.msra.mxu0 0.0
        %1656 = vmatprep.subr.mxu0 0.0
        %1657 = vmatpush1.xpose.msra.mxu0 0.0
        %1658 = vmatprep.subr.mxu0 0.0
        %1659 = vmatpush1.xpose.msra.mxu0 0.0
        %1660 = vmatprep.subr.mxu0 0.0
        %1661 = vmatpush1.xpose.msra.mxu0 0.0
        %1662 = vmatprep.subr.mxu0 0.0
        %1663 = vmatpush1.xpose.msra.mxu0 0.0
        %1664 = vmatprep.subr.mxu0 0.0
        %1665 = vmatpush1.xpose.msra.mxu0 0.0
        %1666 = vmatprep.subr.mxu0 0.0
        %1667 = vmatpush1.xpose.msra.mxu0 0.0
        %1668 = vmatprep.subr.mxu0 0.0
        %1669 = vmatpush1.xpose.msra.mxu0 0.0
        %1670 = vmatprep.subr.mxu0 0.0
        %1671 = vmatpush1.xpose.msra.mxu0 0.0
        %1672 = vmatprep.subr.mxu0 0.0
        %1673 = vmatpush1.xpose.msra.mxu0 0.0
        %1674 = vmatprep.subr.mxu0 0.0
        %1675 = vmatpush1.xpose.msra.mxu0 0.0
        %1676 = vmatprep.subr.mxu0 0.0
        %1677 = vmatpush1.xpose.msra.mxu0 0.0
        %1678 = vmatprep.subr.mxu0 0.0
        %1679 = vmatpush1.xpose.msra.mxu0 0.0
        %1680 = vmatprep.subr.mxu0 0.0
        %1681 = vmatpush1.xpose.msra.mxu0 0.0
        %1682 = vmatprep.subr.mxu0 0.0
        %1683 = vmatpush1.xpose.msra.mxu0 0.0
        %1684 = vmatprep.subr.mxu0 0.0
        %1685 = vmatpush1.xpose.msra.mxu0 0.0
        %1686 = vmatprep.subr.mxu0 0.0
        %1687 = vmatpush1.xpose.msra.mxu0 0.0
        %1688 = vmatprep.subr.mxu0 0.0
        %1689 = vmatpush1.xpose.msra.mxu0 0.0
        %1690 = vmatprep.subr.mxu0 0.0
        %1691 = vmatpush1.xpose.msra.mxu0 0.0
        %1692 = vmatprep.mubr.f32.mxu0 0.0
        %1693 = vmatmul.mubr.f32.gmra.mrb[0].mxu0 %v1623
        %v1694 = vpop.f32.mrb[0].mxu0
        %v1695 = vadd.f32 0.0, %v1694
        %v1696 = vpop.f32.mrb[0].mxu0
        %1697 = vdwg.mxu0
        %v1699 = vsel %vm1545, %v1247, 0
        %v1702 = vsel %vm1545, %v1395, 0
        %1704 = vmatprep.subr.mxu0 0.0
        %1705 = vmatpush1.xpose.msra.mxu0 %v1702
        %1706 = vmatprep.subr.mxu0 0.0
        %1707 = vmatpush1.xpose.msra.mxu0 0.0
        %1708 = vmatprep.subr.mxu0 0.0
        %1709 = vmatpush1.xpose.msra.mxu0 0.0
        %1710 = vmatprep.subr.mxu0 0.0
        %1711 = vmatpush1.xpose.msra.mxu0 0.0
        %1712 = vmatprep.subr.mxu0 0.0
        %1713 = vmatpush1.xpose.msra.mxu0 0.0
        %1714 = vmatprep.subr.mxu0 0.0
        %1715 = vmatpush1.xpose.msra.mxu0 0.0
        %1716 = vmatprep.subr.mxu0 0.0
        %1717 = vmatpush1.xpose.msra.mxu0 0.0
        %1718 = vmatprep.subr.mxu0 0.0
        %1719 = vmatpush1.xpose.msra.mxu0 0.0
        %1720 = vmatprep.subr.mxu0 0.0
        %1721 = vmatpush1.xpose.msra.mxu0 0.0
        %1722 = vmatprep.subr.mxu0 0.0
        %1723 = vmatpush1.xpose.msra.mxu0 0.0
        %1724 = vmatprep.subr.mxu0 0.0
        %1725 = vmatpush1.xpose.msra.mxu0 0.0
        %1726 = vmatprep.subr.mxu0 0.0
        %1727 = vmatpush1.xpose.msra.mxu0 0.0
        %1728 = vmatprep.subr.mxu0 0.0
        %1729 = vmatpush1.xpose.msra.mxu0 0.0
        %1730 = vmatprep.subr.mxu0 0.0
        %1731 = vmatpush1.xpose.msra.mxu0 0.0
        %1732 = vmatprep.subr.mxu0 0.0
        %1733 = vmatpush1.xpose.msra.mxu0 0.0
        %1734 = vmatprep.subr.mxu0 0.0
        %1735 = vmatpush1.xpose.msra.mxu0 0.0
        %1736 = vmatprep.subr.mxu0 0.0
        %1737 = vmatpush1.xpose.msra.mxu0 0.0
        %1738 = vmatprep.subr.mxu0 0.0
        %1739 = vmatpush1.xpose.msra.mxu0 0.0
        %1740 = vmatprep.subr.mxu0 0.0
        %1741 = vmatpush1.xpose.msra.mxu0 0.0
        %1742 = vmatprep.subr.mxu0 0.0
        %1743 = vmatpush1.xpose.msra.mxu0 0.0
        %1744 = vmatprep.subr.mxu0 0.0
        %1745 = vmatpush1.xpose.msra.mxu0 0.0
        %1746 = vmatprep.subr.mxu0 0.0
        %1747 = vmatpush1.xpose.msra.mxu0 0.0
        %1748 = vmatprep.subr.mxu0 0.0
        %1749 = vmatpush1.xpose.msra.mxu0 0.0
        %1750 = vmatprep.subr.mxu0 0.0
        %1751 = vmatpush1.xpose.msra.mxu0 0.0
        %1752 = vmatprep.subr.mxu0 0.0
        %1753 = vmatpush1.xpose.msra.mxu0 0.0
        %1754 = vmatprep.subr.mxu0 0.0
        %1755 = vmatpush1.xpose.msra.mxu0 0.0
        %1756 = vmatprep.subr.mxu0 0.0
        %1757 = vmatpush1.xpose.msra.mxu0 0.0
        %1758 = vmatprep.subr.mxu0 0.0
        %1759 = vmatpush1.xpose.msra.mxu0 0.0
        %1760 = vmatprep.subr.mxu0 0.0
        %1761 = vmatpush1.xpose.msra.mxu0 0.0
        %1762 = vmatprep.subr.mxu0 0.0
        %1763 = vmatpush1.xpose.msra.mxu0 0.0
        %1764 = vmatprep.subr.mxu0 0.0
        %1765 = vmatpush1.xpose.msra.mxu0 0.0
        %1766 = vmatprep.subr.mxu0 0.0
        %1767 = vmatpush1.xpose.msra.mxu0 0.0
        %1768 = vmatprep.mubr.f32.mxu0 0.0
        %1769 = vmatmul.mubr.f32.gmra.mrb[0].mxu0 %v1699
        %v1770 = vpop.f32.mrb[0].mxu0
        %v1771 = vadd.f32 0.0, %v1770
        %v1772 = vpop.f32.mrb[0].mxu0
        %1773 = vdwg.mxu0
        %v1775 = vsel %vm1545, %v1248, 0
        %v1778 = vsel %vm1545, %v1396, 0
        %1780 = vmatprep.subr.mxu0 0.0
        %1781 = vmatpush1.xpose.msra.mxu0 %v1778
        %1782 = vmatprep.subr.mxu0 0.0
        %1783 = vmatpush1.xpose.msra.mxu0 0.0
        %1784 = vmatprep.subr.mxu0 0.0
        %1785 = vmatpush1.xpose.msra.mxu0 0.0
        %1786 = vmatprep.subr.mxu0 0.0
        %1787 = vmatpush1.xpose.msra.mxu0 0.0
        %1788 = vmatprep.subr.mxu0 0.0
        %1789 = vmatpush1.xpose.msra.mxu0 0.0
        %1790 = vmatprep.subr.mxu0 0.0
        %1791 = vmatpush1.xpose.msra.mxu0 0.0
        %1792 = vmatprep.subr.mxu0 0.0
        %1793 = vmatpush1.xpose.msra.mxu0 0.0
        %1794 = vmatprep.subr.mxu0 0.0
        %1795 = vmatpush1.xpose.msra.mxu0 0.0
        %1796 = vmatprep.subr.mxu0 0.0
        %1797 = vmatpush1.xpose.msra.mxu0 0.0
        %1798 = vmatprep.subr.mxu0 0.0
        %1799 = vmatpush1.xpose.msra.mxu0 0.0
        %1800 = vmatprep.subr.mxu0 0.0
        %1801 = vmatpush1.xpose.msra.mxu0 0.0
        %1802 = vmatprep.subr.mxu0 0.0
        %1803 = vmatpush1.xpose.msra.mxu0 0.0
        %1804 = vmatprep.subr.mxu0 0.0
        %1805 = vmatpush1.xpose.msra.mxu0 0.0
        %1806 = vmatprep.subr.mxu0 0.0
        %1807 = vmatpush1.xpose.msra.mxu0 0.0
        %1808 = vmatprep.subr.mxu0 0.0
        %1809 = vmatpush1.xpose.msra.mxu0 0.0
        %1810 = vmatprep.subr.mxu0 0.0
        %1811 = vmatpush1.xpose.msra.mxu0 0.0
        %1812 = vmatprep.subr.mxu0 0.0
        %1813 = vmatpush1.xpose.msra.mxu0 0.0
        %1814 = vmatprep.subr.mxu0 0.0
        %1815 = vmatpush1.xpose.msra.mxu0 0.0
        %1816 = vmatprep.subr.mxu0 0.0
        %1817 = vmatpush1.xpose.msra.mxu0 0.0
        %1818 = vmatprep.subr.mxu0 0.0
        %1819 = vmatpush1.xpose.msra.mxu0 0.0
        %1820 = vmatprep.subr.mxu0 0.0
        %1821 = vmatpush1.xpose.msra.mxu0 0.0
        %1822 = vmatprep.subr.mxu0 0.0
        %1823 = vmatpush1.xpose.msra.mxu0 0.0
        %1824 = vmatprep.subr.mxu0 0.0
        %1825 = vmatpush1.xpose.msra.mxu0 0.0
        %1826 = vmatprep.subr.mxu0 0.0
        %1827 = vmatpush1.xpose.msra.mxu0 0.0
        %1828 = vmatprep.subr.mxu0 0.0
        %1829 = vmatpush1.xpose.msra.mxu0 0.0
        %1830 = vmatprep.subr.mxu0 0.0
        %1831 = vmatpush1.xpose.msra.mxu0 0.0
        %1832 = vmatprep.subr.mxu0 0.0
        %1833 = vmatpush1.xpose.msra.mxu0 0.0
        %1834 = vmatprep.subr.mxu0 0.0
        %1835 = vmatpush1.xpose.msra.mxu0 0.0
        %1836 = vmatprep.subr.mxu0 0.0
        %1837 = vmatpush1.xpose.msra.mxu0 0.0
        %1838 = vmatprep.subr.mxu0 0.0
        %1839 = vmatpush1.xpose.msra.mxu0 0.0
        %1840 = vmatprep.subr.mxu0 0.0
        %1841 = vmatpush1.xpose.msra.mxu0 0.0
        %1842 = vmatprep.subr.mxu0 0.0
        %1843 = vmatpush1.xpose.msra.mxu0 0.0
        %1844 = vmatprep.mubr.f32.mxu0 0.0
        %1845 = vmatmul.mubr.f32.gmra.mrb[0].mxu0 %v1775
        %v1846 = vpop.f32.mrb[0].mxu0
        %v1847 = vadd.f32 0.0, %v1846
        %v1848 = vpop.f32.mrb[0].mxu0
        %1849 = vdwg.mxu0
        %v1850 = vmul.f32 %v1619, 0.35355338
        %v1851 = vmul.f32 %v1695, 0.35355338
        %v1852 = vmul.f32 %v1771, 0.35355338
        %v1853 = vmul.f32 %v1847, 0.35355338
        %vm1854 = vcmp.eq.f32.partialorder %v1097, 0.0
        %v1855 = vsel %vm1854, 1, 0
        %vm1856 = vcmp.eq.s32.totalorder %v1855, 1
        %v1857 = vsel %vm1856, -1e+10, %v1850
        %v1858 = vsel %vm1856, -1e+10, %v1851
        %v1859 = vsel %vm1856, -1e+10, %v1852
        %v1860 = vsel %vm1856, -1e+10, %v1853
        %v1861 = vsel %vm1545, %v1857, -inf
        %1862 = vmax.xlane.f32.xlu0 %v1861
        %v1863 = vpop.xlane.xlu0 %1862
        %v1864 = vsel %vm1545, %v1858, -inf
        %1865 = vmax.xlane.f32.xlu0 %v1864
        %v1866 = vpop.xlane.xlu0 %1865
        %v1867 = vsel %vm1545, %v1859, -inf
        %1868 = vmax.xlane.f32.xlu0 %v1867
        %v1869 = vpop.xlane.xlu0 %1868
        %v1870 = vsel %vm1545, %v1860, -inf
        %1871 = vmax.xlane.f32.xlu0 %v1870
        %v1872 = vpop.xlane.xlu0 %1871
        %v1873 = vsub.f32 %v1857, %v1863
        %v1874 = vsub.f32 %v1858, %v1866
        %v1875 = vsub.f32 %v1859, %v1869
        %v1876 = vsub.f32 %v1860, %v1872
        %v1877 = vmul.f32 %v1873, 1.442695
        %v1878 = vpow.pop %v1877
        %v1879 = vmul.f32 %v1874, 1.442695
        %v1880 = vpow.pop %v1879
        %v1881 = vmul.f32 %v1875, 1.442695
        %v1882 = vpow.pop %v1881
        %v1883 = vmul.f32 %v1876, 1.442695
        %v1884 = vpow.pop %v1883
        %v1885 = vsel %vm1545, %v1878, 0.0
        %1886 = vadd.xlane.f32.xlu0 %v1885
        %v1887 = vpop.xlane.xlu0 %1886
        %v1888 = vsel %vm1545, %v1880, 0.0
        %1889 = vadd.xlane.f32.xlu0 %v1888
        %v1890 = vpop.xlane.xlu0 %1889
        %v1891 = vsel %vm1545, %v1882, 0.0
        %1892 = vadd.xlane.f32.xlu0 %v1891
        %v1893 = vpop.xlane.xlu0 %1892
        %v1894 = vsel %vm1545, %v1884, 0.0
        %1895 = vadd.xlane.f32.xlu0 %v1894
        %v1896 = vpop.xlane.xlu0 %1895
        %v1897 = vrcp.pop %v1887
        %v1898 = vrcp.pop %v1890
        %v1899 = vrcp.pop %v1893
        %v1900 = vrcp.pop %v1896
        %v1901 = vmul.f32 %v1878, %v1897
        %v1902 = vmul.f32 %v1880, %v1898
        %v1903 = vmul.f32 %v1882, %v1899
        %v1904 = vmul.f32 %v1884, %v1900
        %v1906 = vsel %vm1545, %v1901, 0
        %1908 = vmatprep.subr.mxu0 0.0
        %1909 = vmatpush1.msra.mxu0 %v1541
        %1910 = vmatprep.subr.mxu0 0.0
        %1911 = vmatpush1.msra.mxu0 0.0
        %1912 = vmatprep.subr.mxu0 0.0
        %1913 = vmatpush1.msra.mxu0 0.0
        %1914 = vmatprep.subr.mxu0 0.0
        %1915 = vmatpush1.msra.mxu0 0.0
        %1916 = vmatprep.subr.mxu0 0.0
        %1917 = vmatpush1.msra.mxu0 0.0
        %1918 = vmatprep.subr.mxu0 0.0
        %1919 = vmatpush1.msra.mxu0 0.0
        %1920 = vmatprep.subr.mxu0 0.0
        %1921 = vmatpush1.msra.mxu0 0.0
        %1922 = vmatprep.subr.mxu0 0.0
        %1923 = vmatpush1.msra.mxu0 0.0
        %1924 = vmatprep.subr.mxu0 0.0
        %1925 = vmatpush1.msra.mxu0 0.0
        %1926 = vmatprep.subr.mxu0 0.0
        %1927 = vmatpush1.msra.mxu0 0.0
        %1928 = vmatprep.subr.mxu0 0.0
        %1929 = vmatpush1.msra.mxu0 0.0
        %1930 = vmatprep.subr.mxu0 0.0
        %1931 = vmatpush1.msra.mxu0 0.0
        %1932 = vmatprep.subr.mxu0 0.0
        %1933 = vmatpush1.msra.mxu0 0.0
        %1934 = vmatprep.subr.mxu0 0.0
        %1935 = vmatpush1.msra.mxu0 0.0
        %1936 = vmatprep.subr.mxu0 0.0
        %1937 = vmatpush1.msra.mxu0 0.0
        %1938 = vmatprep.subr.mxu0 0.0
        %1939 = vmatpush1.msra.mxu0 0.0
        %1940 = vmatprep.subr.mxu0 0.0
        %1941 = vmatpush1.msra.mxu0 0.0
        %1942 = vmatprep.subr.mxu0 0.0
        %1943 = vmatpush1.msra.mxu0 0.0
        %1944 = vmatprep.subr.mxu0 0.0
        %1945 = vmatpush1.msra.mxu0 0.0
        %1946 = vmatprep.subr.mxu0 0.0
        %1947 = vmatpush1.msra.mxu0 0.0
        %1948 = vmatprep.subr.mxu0 0.0
        %1949 = vmatpush1.msra.mxu0 0.0
        %1950 = vmatprep.subr.mxu0 0.0
        %1951 = vmatpush1.msra.mxu0 0.0
        %1952 = vmatprep.subr.mxu0 0.0
        %1953 = vmatpush1.msra.mxu0 0.0
        %1954 = vmatprep.subr.mxu0 0.0
        %1955 = vmatpush1.msra.mxu0 0.0
        %1956 = vmatprep.subr.mxu0 0.0
        %1957 = vmatpush1.msra.mxu0 0.0
        %1958 = vmatprep.subr.mxu0 0.0
        %1959 = vmatpush1.msra.mxu0 0.0
        %1960 = vmatprep.subr.mxu0 0.0
        %1961 = vmatpush1.msra.mxu0 0.0
        %1962 = vmatprep.subr.mxu0 0.0
        %1963 = vmatpush1.msra.mxu0 0.0
        %1964 = vmatprep.subr.mxu0 0.0
        %1965 = vmatpush1.msra.mxu0 0.0
        %1966 = vmatprep.subr.mxu0 0.0
        %1967 = vmatpush1.msra.mxu0 0.0
        %1968 = vmatprep.subr.mxu0 0.0
        %1969 = vmatpush1.msra.mxu0 0.0
        %1970 = vmatprep.subr.mxu0 0.0
        %1971 = vmatpush1.msra.mxu0 0.0
        %1972 = vmatprep.mubr.f32.mxu0 0.0
        %1973 = vmatmul.mubr.f32.gmra.mrb[0].mxu0 %v1906
        %v1974 = vpop.f32.mrb[0].mxu0
        %v1975 = vadd.f32 0.0, %v1974
        %v1976 = vpop.f32.mrb[0].mxu0
        %1977 = vdwg.mxu0
        %v1979 = vsel %vm1545, %v1902, 0
        %1981 = vmatprep.subr.mxu0 0.0
        %1982 = vmatpush1.msra.mxu0 %v1542
        %1983 = vmatprep.subr.mxu0 0.0
        %1984 = vmatpush1.msra.mxu0 0.0
        %1985 = vmatprep.subr.mxu0 0.0
        %1986 = vmatpush1.msra.mxu0 0.0
        %1987 = vmatprep.subr.mxu0 0.0
        %1988 = vmatpush1.msra.mxu0 0.0
        %1989 = vmatprep.subr.mxu0 0.0
        %1990 = vmatpush1.msra.mxu0 0.0
        %1991 = vmatprep.subr.mxu0 0.0
        %1992 = vmatpush1.msra.mxu0 0.0
        %1993 = vmatprep.subr.mxu0 0.0
        %1994 = vmatpush1.msra.mxu0 0.0
        %1995 = vmatprep.subr.mxu0 0.0
        %1996 = vmatpush1.msra.mxu0 0.0
        %1997 = vmatprep.subr.mxu0 0.0
        %1998 = vmatpush1.msra.mxu0 0.0
        %1999 = vmatprep.subr.mxu0 0.0
        %2000 = vmatpush1.msra.mxu0 0.0
        %2001 = vmatprep.subr.mxu0 0.0
        %2002 = vmatpush1.msra.mxu0 0.0
        %2003 = vmatprep.subr.mxu0 0.0
        %2004 = vmatpush1.msra.mxu0 0.0
        %2005 = vmatprep.subr.mxu0 0.0
        %2006 = vmatpush1.msra.mxu0 0.0
        %2007 = vmatprep.subr.mxu0 0.0
        %2008 = vmatpush1.msra.mxu0 0.0
        %2009 = vmatprep.subr.mxu0 0.0
        %2010 = vmatpush1.msra.mxu0 0.0
        %2011 = vmatprep.subr.mxu0 0.0
        %2012 = vmatpush1.msra.mxu0 0.0
        %2013 = vmatprep.subr.mxu0 0.0
        %2014 = vmatpush1.msra.mxu0 0.0
        %2015 = vmatprep.subr.mxu0 0.0
        %2016 = vmatpush1.msra.mxu0 0.0
        %2017 = vmatprep.subr.mxu0 0.0
        %2018 = vmatpush1.msra.mxu0 0.0
        %2019 = vmatprep.subr.mxu0 0.0
        %2020 = vmatpush1.msra.mxu0 0.0
        %2021 = vmatprep.subr.mxu0 0.0
        %2022 = vmatpush1.msra.mxu0 0.0
        %2023 = vmatprep.subr.mxu0 0.0
        %2024 = vmatpush1.msra.mxu0 0.0
        %2025 = vmatprep.subr.mxu0 0.0
        %2026 = vmatpush1.msra.mxu0 0.0
        %2027 = vmatprep.subr.mxu0 0.0
        %2028 = vmatpush1.msra.mxu0 0.0
        %2029 = vmatprep.subr.mxu0 0.0
        %2030 = vmatpush1.msra.mxu0 0.0
        %2031 = vmatprep.subr.mxu0 0.0
        %2032 = vmatpush1.msra.mxu0 0.0
        %2033 = vmatprep.subr.mxu0 0.0
        %2034 = vmatpush1.msra.mxu0 0.0
        %2035 = vmatprep.subr.mxu0 0.0
        %2036 = vmatpush1.msra.mxu0 0.0
        %2037 = vmatprep.subr.mxu0 0.0
        %2038 = vmatpush1.msra.mxu0 0.0
        %2039 = vmatprep.subr.mxu0 0.0
        %2040 = vmatpush1.msra.mxu0 0.0
        %2041 = vmatprep.subr.mxu0 0.0
        %2042 = vmatpush1.msra.mxu0 0.0
        %2043 = vmatprep.subr.mxu0 0.0
        %2044 = vmatpush1.msra.mxu0 0.0
        %2045 = vmatprep.mubr.f32.mxu0 0.0
        %2046 = vmatmul.mubr.f32.gmra.mrb[0].mxu0 %v1979
        %v2047 = vpop.f32.mrb[0].mxu0
        %v2048 = vadd.f32 0.0, %v2047
        %v2049 = vpop.f32.mrb[0].mxu0
        %2050 = vdwg.mxu0
        %v2052 = vsel %vm1545, %v1903, 0
        %2054 = vmatprep.subr.mxu0 0.0
        %2055 = vmatpush1.msra.mxu0 %v1543
        %2056 = vmatprep.subr.mxu0 0.0
        %2057 = vmatpush1.msra.mxu0 0.0
        %2058 = vmatprep.subr.mxu0 0.0
        %2059 = vmatpush1.msra.mxu0 0.0
        %2060 = vmatprep.subr.mxu0 0.0
        %2061 = vmatpush1.msra.mxu0 0.0
        %2062 = vmatprep.subr.mxu0 0.0
        %2063 = vmatpush1.msra.mxu0 0.0
        %2064 = vmatprep.subr.mxu0 0.0
        %2065 = vmatpush1.msra.mxu0 0.0
        %2066 = vmatprep.subr.mxu0 0.0
        %2067 = vmatpush1.msra.mxu0 0.0
        %2068 = vmatprep.subr.mxu0 0.0
        %2069 = vmatpush1.msra.mxu0 0.0
        %2070 = vmatprep.subr.mxu0 0.0
        %2071 = vmatpush1.msra.mxu0 0.0
        %2072 = vmatprep.subr.mxu0 0.0
        %2073 = vmatpush1.msra.mxu0 0.0
        %2074 = vmatprep.subr.mxu0 0.0
        %2075 = vmatpush1.msra.mxu0 0.0
        %2076 = vmatprep.subr.mxu0 0.0
        %2077 = vmatpush1.msra.mxu0 0.0
        %2078 = vmatprep.subr.mxu0 0.0
        %2079 = vmatpush1.msra.mxu0 0.0
        %2080 = vmatprep.subr.mxu0 0.0
        %2081 = vmatpush1.msra.mxu0 0.0
        %2082 = vmatprep.subr.mxu0 0.0
        %2083 = vmatpush1.msra.mxu0 0.0
        %2084 = vmatprep.subr.mxu0 0.0
        %2085 = vmatpush1.msra.mxu0 0.0
        %2086 = vmatprep.subr.mxu0 0.0
        %2087 = vmatpush1.msra.mxu0 0.0
        %2088 = vmatprep.subr.mxu0 0.0
        %2089 = vmatpush1.msra.mxu0 0.0
        %2090 = vmatprep.subr.mxu0 0.0
        %2091 = vmatpush1.msra.mxu0 0.0
        %2092 = vmatprep.subr.mxu0 0.0
        %2093 = vmatpush1.msra.mxu0 0.0
        %2094 = vmatprep.subr.mxu0 0.0
        %2095 = vmatpush1.msra.mxu0 0.0
        %2096 = vmatprep.subr.mxu0 0.0
        %2097 = vmatpush1.msra.mxu0 0.0
        %2098 = vmatprep.subr.mxu0 0.0
        %2099 = vmatpush1.msra.mxu0 0.0
        %2100 = vmatprep.subr.mxu0 0.0
        %2101 = vmatpush1.msra.mxu0 0.0
        %2102 = vmatprep.subr.mxu0 0.0
        %2103 = vmatpush1.msra.mxu0 0.0
        %2104 = vmatprep.subr.mxu0 0.0
        %2105 = vmatpush1.msra.mxu0 0.0
        %2106 = vmatprep.subr.mxu0 0.0
        %2107 = vmatpush1.msra.mxu0 0.0
        %2108 = vmatprep.subr.mxu0 0.0
        %2109 = vmatpush1.msra.mxu0 0.0
        %2110 = vmatprep.subr.mxu0 0.0
        %2111 = vmatpush1.msra.mxu0 0.0
        %2112 = vmatprep.subr.mxu0 0.0
        %2113 = vmatpush1.msra.mxu0 0.0
        %2114 = vmatprep.subr.mxu0 0.0
        %2115 = vmatpush1.msra.mxu0 0.0
        %2116 = vmatprep.subr.mxu0 0.0
        %2117 = vmatpush1.msra.mxu0 0.0
        %2118 = vmatprep.mubr.f32.mxu0 0.0
        %2119 = vmatmul.mubr.f32.gmra.mrb[0].mxu0 %v2052
        %v2120 = vpop.f32.mrb[0].mxu0
        %v2121 = vadd.f32 0.0, %v2120
        %v2122 = vpop.f32.mrb[0].mxu0
        %2123 = vdwg.mxu0
        %v2125 = vsel %vm1545, %v1904, 0
        %2127 = vmatprep.subr.mxu0 0.0
        %2128 = vmatpush1.msra.mxu0 %v1544
        %2129 = vmatprep.subr.mxu0 0.0
        %2130 = vmatpush1.msra.mxu0 0.0
        %2131 = vmatprep.subr.mxu0 0.0
        %2132 = vmatpush1.msra.mxu0 0.0
        %2133 = vmatprep.subr.mxu0 0.0
        %2134 = vmatpush1.msra.mxu0 0.0
        %2135 = vmatprep.subr.mxu0 0.0
        %2136 = vmatpush1.msra.mxu0 0.0
        %2137 = vmatprep.subr.mxu0 0.0
        %2138 = vmatpush1.msra.mxu0 0.0
        %2139 = vmatprep.subr.mxu0 0.0
        %2140 = vmatpush1.msra.mxu0 0.0
        %2141 = vmatprep.subr.mxu0 0.0
        %2142 = vmatpush1.msra.mxu0 0.0
        %2143 = vmatprep.subr.mxu0 0.0
        %2144 = vmatpush1.msra.mxu0 0.0
        %2145 = vmatprep.subr.mxu0 0.0
        %2146 = vmatpush1.msra.mxu0 0.0
        %2147 = vmatprep.subr.mxu0 0.0
        %2148 = vmatpush1.msra.mxu0 0.0
        %2149 = vmatprep.subr.mxu0 0.0
        %2150 = vmatpush1.msra.mxu0 0.0
        %2151 = vmatprep.subr.mxu0 0.0
        %2152 = vmatpush1.msra.mxu0 0.0
        %2153 = vmatprep.subr.mxu0 0.0
        %2154 = vmatpush1.msra.mxu0 0.0
        %2155 = vmatprep.subr.mxu0 0.0
        %2156 = vmatpush1.msra.mxu0 0.0
        %2157 = vmatprep.subr.mxu0 0.0
        %2158 = vmatpush1.msra.mxu0 0.0
        %2159 = vmatprep.subr.mxu0 0.0
        %2160 = vmatpush1.msra.mxu0 0.0
        %2161 = vmatprep.subr.mxu0 0.0
        %2162 = vmatpush1.msra.mxu0 0.0
        %2163 = vmatprep.subr.mxu0 0.0
        %2164 = vmatpush1.msra.mxu0 0.0
        %2165 = vmatprep.subr.mxu0 0.0
        %2166 = vmatpush1.msra.mxu0 0.0
        %2167 = vmatprep.subr.mxu0 0.0
        %2168 = vmatpush1.msra.mxu0 0.0
        %2169 = vmatprep.subr.mxu0 0.0
        %2170 = vmatpush1.msra.mxu0 0.0
        %2171 = vmatprep.subr.mxu0 0.0
        %2172 = vmatpush1.msra.mxu0 0.0
        %2173 = vmatprep.subr.mxu0 0.0
        %2174 = vmatpush1.msra.mxu0 0.0
        %2175 = vmatprep.subr.mxu0 0.0
        %2176 = vmatpush1.msra.mxu0 0.0
        %2177 = vmatprep.subr.mxu0 0.0
        %2178 = vmatpush1.msra.mxu0 0.0
        %2179 = vmatprep.subr.mxu0 0.0
        %2180 = vmatpush1.msra.mxu0 0.0
        %2181 = vmatprep.subr.mxu0 0.0
        %2182 = vmatpush1.msra.mxu0 0.0
        %2183 = vmatprep.subr.mxu0 0.0
        %2184 = vmatpush1.msra.mxu0 0.0
        %2185 = vmatprep.subr.mxu0 0.0
        %2186 = vmatpush1.msra.mxu0 0.0
        %2187 = vmatprep.subr.mxu0 0.0
        %2188 = vmatpush1.msra.mxu0 0.0
        %2189 = vmatprep.subr.mxu0 0.0
        %2190 = vmatpush1.msra.mxu0 0.0
        %2191 = vmatprep.mubr.f32.mxu0 0.0
        %2192 = vmatmul.mubr.f32.gmra.mrb[0].mxu0 %v2125
        %v2193 = vpop.f32.mrb[0].mxu0
        %v2194 = vadd.f32 0.0, %v2193
        %v2195 = vpop.f32.mrb[0].mxu0
        %2196 = vdwg.mxu0
        %v2197 = vcombine.low %v1975, %v2121
        %v2198 = vcombine.high %v1975, %v2121
        %v2200 = vunpack.c.l.s4 1983009808
        %v2201 = vunpack.c.0.s8 %v2200
        %v2202 = vlaneseq
        %v2203 = vshrl.u32 %v2202, 7
        %v2204 = vsub.s32 %v2201, %v2203
        %v2205 = vrot.slane %v2197, %v2204
        %v2207 = vunpack.c.l.s4 1983009808
        %v2208 = vunpack.c.0.s8 %v2207
        %v2209 = vlaneseq
        %v2210 = vshrl.u32 %v2209, 7
        %v2211 = vsub.s32 %v2208, %v2210
        %v2212 = vrot.slane %v2198, %v2211
        %v2213 = vcombine.low %v2048, %v2194
        %v2214 = vcombine.high %v2048, %v2194
        %v2216 = vunpack.c.l.s4 1983009808
        %v2217 = vunpack.c.0.s8 %v2216
        %v2218 = vlaneseq
        %v2219 = vshrl.u32 %v2218, 7
        %v2220 = vsub.s32 %v2217, %v2219
        %v2221 = vrot.slane %v2213, %v2220
        %v2223 = vunpack.c.l.s4 1983009808
        %v2224 = vunpack.c.0.s8 %v2223
        %v2225 = vlaneseq
        %v2226 = vshrl.u32 %v2225, 7
        %v2227 = vsub.s32 %v2224, %v2226
        %v2228 = vrot.slane %v2214, %v2227
        %v2229 = vcombine.low %v2205, %v2221
        %v2230 = vcombine.high %v2205, %v2221
        %v2232 = vunpack.c.l.s4 1934713408
        %v2233 = vunpack.c.0.s8 %v2232
        %v2234 = vlaneseq
        %v2235 = vshrl.u32 %v2234, 7
        %v2236 = vsub.s32 %v2233, %v2235
        %v2237 = vrot.slane %v2229, %v2236
        %v2239 = vunpack.c.l.s4 1934713408
        %v2240 = vunpack.c.0.s8 %v2239
        %v2241 = vlaneseq
        %v2242 = vshrl.u32 %v2241, 7
        %v2243 = vsub.s32 %v2240, %v2242
        %v2244 = vrot.slane %v2230, %v2243
        %v2245 = vcombine.low %v2212, %v2228
        %v2246 = vcombine.high %v2212, %v2228
        %v2248 = vunpack.c.l.s4 1934713408
        %v2249 = vunpack.c.0.s8 %v2248
        %v2250 = vlaneseq
        %v2251 = vshrl.u32 %v2250, 7
        %v2252 = vsub.s32 %v2249, %v2251
        %v2253 = vrot.slane %v2245, %v2252
        %v2255 = vunpack.c.l.s4 1934713408
        %v2256 = vunpack.c.0.s8 %v2255
        %v2257 = vlaneseq
        %v2258 = vshrl.u32 %v2257, 7
        %v2259 = vsub.s32 %v2256, %v2258
        %v2260 = vrot.slane %v2246, %v2259
        %v2261 = vcombine.high %v2237, 0.0
        %v2262 = vcombine.high %v2244, 0.0
        %v2263 = vcombine.high %v2253, 0.0
        %v2264 = vcombine.high %v2260, 0.0
        %v2265 = vcombine.low %v2237, %v2244
        %v2267 = vunpack.c.l.s4 1983009808
        %v2268 = vunpack.c.0.s8 %v2267
        %v2269 = vlaneseq
        %v2270 = vshrl.u32 %v2269, 7
        %v2271 = vsub.s32 %v2268, %v2270
        %v2272 = vrot.slane %v2265, %v2271
        %v2273 = vcombine.low %v2261, %v2262
        %v2275 = vunpack.c.l.s4 1983009808
        %v2276 = vunpack.c.0.s8 %v2275
        %v2277 = vlaneseq
        %v2278 = vshrl.u32 %v2277, 7
        %v2279 = vsub.s32 %v2276, %v2278
        %v2280 = vrot.slane %v2273, %v2279
        %v2281 = vcombine.low %v2253, %v2260
        %v2283 = vunpack.c.l.s4 1983009808
        %v2284 = vunpack.c.0.s8 %v2283
        %v2285 = vlaneseq
        %v2286 = vshrl.u32 %v2285, 7
        %v2287 = vsub.s32 %v2284, %v2286
        %v2288 = vrot.slane %v2281, %v2287
        %v2289 = vcombine.low %v2263, %v2264
        %v2291 = vunpack.c.l.s4 1983009808
        %v2292 = vunpack.c.0.s8 %v2291
        %v2293 = vlaneseq
        %v2294 = vshrl.u32 %v2293, 7
        %v2295 = vsub.s32 %v2292, %v2294
        %v2296 = vrot.slane %v2289, %v2295
        %v2297 = vcombine.low %v2272, %v2280
        %v2298 = vcombine.high %v2272, %v2280
        %v2300 = vunpack.c.l.s4 1934713408
        %v2301 = vunpack.c.0.s8 %v2300
        %v2302 = vlaneseq
        %v2303 = vshrl.u32 %v2302, 7
        %v2304 = vsub.s32 %v2301, %v2303
        %v2305 = vrot.slane %v2297, %v2304
        %v2307 = vunpack.c.l.s4 1934713408
        %v2308 = vunpack.c.0.s8 %v2307
        %v2309 = vlaneseq
        %v2310 = vshrl.u32 %v2309, 7
        %v2311 = vsub.s32 %v2308, %v2310
        %v2312 = vrot.slane %v2298, %v2311
        %v2313 = vcombine.low %v2288, %v2296
        %v2314 = vcombine.high %v2288, %v2296
        %v2316 = vunpack.c.l.s4 1934713408
        %v2317 = vunpack.c.0.s8 %v2316
        %v2318 = vlaneseq
        %v2319 = vshrl.u32 %v2318, 7
        %v2320 = vsub.s32 %v2317, %v2319
        %v2321 = vrot.slane %v2313, %v2320
        %v2323 = vunpack.c.l.s4 1934713408
        %v2324 = vunpack.c.0.s8 %v2323
        %v2325 = vlaneseq
        %v2326 = vshrl.u32 %v2325, 7
        %v2327 = vsub.s32 %v2324, %v2326
        %v2328 = vrot.slane %v2314, %v2327
        %v2329 = vcombine.low %v2305, %v2321
        %v2330 = vcombine.high %v2305, %v2321
        %v2331 = vcombine.low %v2312, %v2328
        %v2332 = vcombine.high %v2312, %v2328
        %2334 = vrot.lane.b32.xlu0 %v2330, 8
        %v2335 = vpop.permute.xlu0 %2334
        %2338 = vrot.lane.b32.xlu0 %v2331, 16
        %v2339 = vpop.permute.xlu0 %2338
        %2342 = vrot.lane.b32.xlu0 %v2332, 24
        %v2343 = vpop.permute.xlu0 %2342
        %v2345 = vsel %vm1545, %v2329, %v2335
        %vm2346 = vcmask 130048
        %v2347 = vsel %vm2346, %v2345, %v2339
        %vm2348 = vcmask 195584
        %v2349 = vsel %vm2348, %v2347, %v2343
        %v2351 = vlaneseq
        %v2352 = vshrl.u32 %v2351, 7
        %v2353 = vsub.s32 0, %v2352
        %v2354 = vrot.slane %v1102, %v2353
        %v2357 = vsel %vm1023, %v2349, 0
        %2359 = vmatprep.subr.mxu0 0.0
        %2360 = vmatpush1.msra.mxu0 %v1098
        %2361 = vmatprep.subr.mxu0 0.0
        %2362 = vmatpush1.msra.mxu0 %v1099
        %2363 = vmatprep.subr.mxu0 0.0
        %2364 = vmatpush1.msra.mxu0 %v1100
        %2365 = vmatprep.subr.mxu0 0.0
        %2366 = vmatpush1.msra.mxu0 %v1101
        %2367 = vmatprep.subr.mxu0 0.0
        %2368 = vmatpush1.msra.mxu0 0.0
        %2369 = vmatprep.subr.mxu0 0.0
        %2370 = vmatpush1.msra.mxu0 0.0
        %2371 = vmatprep.subr.mxu0 0.0
        %2372 = vmatpush1.msra.mxu0 0.0
        %2373 = vmatprep.subr.mxu0 0.0
        %2374 = vmatpush1.msra.mxu0 0.0
        %2375 = vmatprep.subr.mxu0 0.0
        %2376 = vmatpush1.msra.mxu0 0.0
        %2377 = vmatprep.subr.mxu0 0.0
        %2378 = vmatpush1.msra.mxu0 0.0
        %2379 = vmatprep.subr.mxu0 0.0
        %2380 = vmatpush1.msra.mxu0 0.0
        %2381 = vmatprep.subr.mxu0 0.0
        %2382 = vmatpush1.msra.mxu0 0.0
        %2383 = vmatprep.subr.mxu0 0.0
        %2384 = vmatpush1.msra.mxu0 0.0
        %2385 = vmatprep.subr.mxu0 0.0
        %2386 = vmatpush1.msra.mxu0 0.0
        %2387 = vmatprep.subr.mxu0 0.0
        %2388 = vmatpush1.msra.mxu0 0.0
        %2389 = vmatprep.subr.mxu0 0.0
        %2390 = vmatpush1.msra.mxu0 0.0
        %2391 = vmatprep.subr.mxu0 0.0
        %2392 = vmatpush1.msra.mxu0 0.0
        %2393 = vmatprep.subr.mxu0 0.0
        %2394 = vmatpush1.msra.mxu0 0.0
        %2395 = vmatprep.subr.mxu0 0.0
        %2396 = vmatpush1.msra.mxu0 0.0
        %2397 = vmatprep.subr.mxu0 0.0
        %2398 = vmatpush1.msra.mxu0 0.0
        %2399 = vmatprep.subr.mxu0 0.0
        %2400 = vmatpush1.msra.mxu0 0.0
        %2401 = vmatprep.subr.mxu0 0.0
        %2402 = vmatpush1.msra.mxu0 0.0
        %2403 = vmatprep.subr.mxu0 0.0
        %2404 = vmatpush1.msra.mxu0 0.0
        %2405 = vmatprep.subr.mxu0 0.0
        %2406 = vmatpush1.msra.mxu0 0.0
        %2407 = vmatprep.subr.mxu0 0.0
        %2408 = vmatpush1.msra.mxu0 0.0
        %2409 = vmatprep.subr.mxu0 0.0
        %2410 = vmatpush1.msra.mxu0 0.0
        %2411 = vmatprep.subr.mxu0 0.0
        %2412 = vmatpush1.msra.mxu0 0.0
        %2413 = vmatprep.subr.mxu0 0.0
        %2414 = vmatpush1.msra.mxu0 0.0
        %2415 = vmatprep.subr.mxu0 0.0
        %2416 = vmatpush1.msra.mxu0 0.0
        %2417 = vmatprep.subr.mxu0 0.0
        %2418 = vmatpush1.msra.mxu0 0.0
        %2419 = vmatprep.subr.mxu0 0.0
        %2420 = vmatpush1.msra.mxu0 0.0
        %2421 = vmatprep.subr.mxu0 0.0
        %2422 = vmatpush1.msra.mxu0 0.0
        %2423 = vmatprep.mubr.f32.mxu0 0.0
        %2424 = vmatmul.mubr.f32.gmra.mrb[0].mxu0 %v2357
        %v2425 = vpop.f32.mrb[0].mxu0
        %v2426 = vadd.f32 %v2354, %v2425
        %v2427 = vpop.f32.mrb[0].mxu0
        %2428 = vdwg.mxu0
        %v2429 = vadd.f32 %v1010, %v2426
        %v2430 = vld [vmem:[#allocation8] sm:$0x1]
        %v2431 = vld [vmem:[#allocation10] sm:$0x1]
        %v2432 = vsel %vm1023, %v2429, 0.0
        %2433 = vadd.xlane.f32.xlu0 %v2432
        %v2434 = vpop.xlane.xlu0 %2433
        %v2435 = vrcp.pop 32.0
        %v2436 = vmul.f32 %v2434, %v2435
        %v2437 = vsub.f32 %v2429, %v2436
        %v2438 = vmul.f32 %v2437, %v2437
        %v2439 = vsel %vm1023, %v2438, 0.0
        %2440 = vadd.xlane.f32.xlu0 %v2439
        %v2441 = vpop.xlane.xlu0 %2440
        %v2442 = vmul.f32 %v2441, %v2435
        %v2443 = vadd.f32 %v2442, 1e-05
        %v2444 = vrsqrt.pop %v2443
        %v2445 = vmul.f32 %v2437, %v2444
        %v2447 = vlaneseq
        %v2448 = vshrl.u32 %v2447, 7
        %v2449 = vsub.s32 0, %v2448
        %v2450 = vrot.slane %v2430, %v2449
        %v2452 = vmul.f32 %v2445, %v2450
        %v2454 = vlaneseq
        %v2455 = vshrl.u32 %v2454, 7
        %v2456 = vsub.s32 0, %v2455
        %v2457 = vrot.slane %v2431, %v2456
        %v2459 = vadd.f32 %v2452, %v2457
        %v2460 = vld [vmem:[%s10] sm:$0xff]
        %v2461 = vld [vmem:[%s10 + $0x8] sm:$0xff]
        %v2462 = vld [vmem:[%s10 + $0x10] sm:$0xff]
        %v2463 = vld [vmem:[%s10 + $0x18] sm:$0xff]
        %v2464 = vld [vmem:[#allocation11] sm:$0x1]
        %v2466 = vlaneseq
        %v2467 = vshrl.u32 %v2466, 7
        %v2468 = vsub.s32 0, %v2467
        %v2469 = vrot.slane %v2464, %v2468
        %v2472 = vsel %vm1023, %v2459, 0
        %2474 = vmatprep.subr.mxu0 0.0
        %2475 = vmatpush1.msra.mxu0 %v2460
        %2476 = vmatprep.subr.mxu0 0.0
        %2477 = vmatpush1.msra.mxu0 %v2461
        %2478 = vmatprep.subr.mxu0 0.0
        %2479 = vmatpush1.msra.mxu0 %v2462
        %2480 = vmatprep.subr.mxu0 0.0
        %2481 = vmatpush1.msra.mxu0 %v2463
        %2482 = vmatprep.subr.mxu0 0.0
        %2483 = vmatpush1.msra.mxu0 0.0
        %2484 = vmatprep.subr.mxu0 0.0
        %2485 = vmatpush1.msra.mxu0 0.0
        %2486 = vmatprep.subr.mxu0 0.0
        %2487 = vmatpush1.msra.mxu0 0.0
        %2488 = vmatprep.subr.mxu0 0.0
        %2489 = vmatpush1.msra.mxu0 0.0
        %2490 = vmatprep.subr.mxu0 0.0
        %2491 = vmatpush1.msra.mxu0 0.0
        %2492 = vmatprep.subr.mxu0 0.0
        %2493 = vmatpush1.msra.mxu0 0.0
        %2494 = vmatprep.subr.mxu0 0.0
        %2495 = vmatpush1.msra.mxu0 0.0
        %2496 = vmatprep.subr.mxu0 0.0
        %2497 = vmatpush1.msra.mxu0 0.0
        %2498 = vmatprep.subr.mxu0 0.0
        %2499 = vmatpush1.msra.mxu0 0.0
        %2500 = vmatprep.subr.mxu0 0.0
        %2501 = vmatpush1.msra.mxu0 0.0
        %2502 = vmatprep.subr.mxu0 0.0
        %2503 = vmatpush1.msra.mxu0 0.0
        %2504 = vmatprep.subr.mxu0 0.0
        %2505 = vmatpush1.msra.mxu0 0.0
        %2506 = vmatprep.subr.mxu0 0.0
        %2507 = vmatpush1.msra.mxu0 0.0
        %2508 = vmatprep.subr.mxu0 0.0
        %2509 = vmatpush1.msra.mxu0 0.0
        %2510 = vmatprep.subr.mxu0 0.0
        %2511 = vmatpush1.msra.mxu0 0.0
        %2512 = vmatprep.subr.mxu0 0.0
        %2513 = vmatpush1.msra.mxu0 0.0
        %2514 = vmatprep.subr.mxu0 0.0
        %2515 = vmatpush1.msra.mxu0 0.0
        %2516 = vmatprep.subr.mxu0 0.0
        %2517 = vmatpush1.msra.mxu0 0.0
        %2518 = vmatprep.subr.mxu0 0.0
        %2519 = vmatpush1.msra.mxu0 0.0
        %2520 = vmatprep.subr.mxu0 0.0
        %2521 = vmatpush1.msra.mxu0 0.0
        %2522 = vmatprep.subr.mxu0 0.0
        %2523 = vmatpush1.msra.mxu0 0.0
        %2524 = vmatprep.subr.mxu0 0.0
        %2525 = vmatpush1.msra.mxu0 0.0
        %2526 = vmatprep.subr.mxu0 0.0
        %2527 = vmatpush1.msra.mxu0 0.0
        %2528 = vmatprep.subr.mxu0 0.0
        %2529 = vmatpush1.msra.mxu0 0.0
        %2530 = vmatprep.subr.mxu0 0.0
        %2531 = vmatpush1.msra.mxu0 0.0
        %2532 = vmatprep.subr.mxu0 0.0
        %2533 = vmatpush1.msra.mxu0 0.0
        %2534 = vmatprep.subr.mxu0 0.0
        %2535 = vmatpush1.msra.mxu0 0.0
        %2536 = vmatprep.subr.mxu0 0.0
        %2537 = vmatpush1.msra.mxu0 0.0
        %2538 = vmatprep.mubr.f32.mxu0 0.0
        %2539 = vmatmul.mubr.f32.gmra.mrb[0].mxu0 %v2472
        %v2540 = vpop.f32.mrb[0].mxu0
        %v2541 = vadd.f32 %v2469, %v2540
        %v2542 = vpop.f32.mrb[0].mxu0
        %2543 = vdwg.mxu0
        %v2544 = vld [vmem:[#allocation13] sm:$0xff]
        %v2545 = vld [vmem:[#allocation13 + $0x8] sm:$0xff]
        %v2546 = vld [vmem:[#allocation13 + $0x10] sm:$0xff]
        %v2547 = vld [vmem:[#allocation13 + $0x18] sm:$0xff]
        %v2548 = vld [vmem:[#allocation14] sm:$0x1]
        %v2550 = vlaneseq
        %v2551 = vshrl.u32 %v2550, 7
        %v2552 = vsub.s32 0, %v2551
        %v2553 = vrot.slane %v2548, %v2552
        %v2556 = vsel %vm1023, %v1011, 0
        %2558 = vmatprep.subr.mxu0 0.0
        %2559 = vmatpush1.msra.mxu0 %v2544
        %2560 = vmatprep.subr.mxu0 0.0
        %2561 = vmatpush1.msra.mxu0 %v2545
        %2562 = vmatprep.subr.mxu0 0.0
        %2563 = vmatpush1.msra.mxu0 %v2546
        %2564 = vmatprep.subr.mxu0 0.0
        %2565 = vmatpush1.msra.mxu0 %v2547
        %2566 = vmatprep.subr.mxu0 0.0
        %2567 = vmatpush1.msra.mxu0 0.0
        %2568 = vmatprep.subr.mxu0 0.0
        %2569 = vmatpush1.msra.mxu0 0.0
        %2570 = vmatprep.subr.mxu0 0.0
        %2571 = vmatpush1.msra.mxu0 0.0
        %2572 = vmatprep.subr.mxu0 0.0
        %2573 = vmatpush1.msra.mxu0 0.0
        %2574 = vmatprep.subr.mxu0 0.0
        %2575 = vmatpush1.msra.mxu0 0.0
        %2576 = vmatprep.subr.mxu0 0.0
        %2577 = vmatpush1.msra.mxu0 0.0
        %2578 = vmatprep.subr.mxu0 0.0
        %2579 = vmatpush1.msra.mxu0 0.0
        %2580 = vmatprep.subr.mxu0 0.0
        %2581 = vmatpush1.msra.mxu0 0.0
        %2582 = vmatprep.subr.mxu0 0.0
        %2583 = vmatpush1.msra.mxu0 0.0
        %2584 = vmatprep.subr.mxu0 0.0
        %2585 = vmatpush1.msra.mxu0 0.0
        %2586 = vmatprep.subr.mxu0 0.0
        %2587 = vmatpush1.msra.mxu0 0.0
        %2588 = vmatprep.subr.mxu0 0.0
        %2589 = vmatpush1.msra.mxu0 0.0
        %2590 = vmatprep.subr.mxu0 0.0
        %2591 = vmatpush1.msra.mxu0 0.0
        %2592 = vmatprep.subr.mxu0 0.0
        %2593 = vmatpush1.msra.mxu0 0.0
        %2594 = vmatprep.subr.mxu0 0.0
        %2595 = vmatpush1.msra.mxu0 0.0
        %2596 = vmatprep.subr.mxu0 0.0
        %2597 = vmatpush1.msra.mxu0 0.0
        %2598 = vmatprep.subr.mxu0 0.0
        %2599 = vmatpush1.msra.mxu0 0.0
        %2600 = vmatprep.subr.mxu0 0.0
        %2601 = vmatpush1.msra.mxu0 0.0
        %2602 = vmatprep.subr.mxu0 0.0
        %2603 = vmatpush1.msra.mxu0 0.0
        %2604 = vmatprep.subr.mxu0 0.0
        %2605 = vmatpush1.msra.mxu0 0.0
        %2606 = vmatprep.subr.mxu0 0.0
        %2607 = vmatpush1.msra.mxu0 0.0
        %2608 = vmatprep.subr.mxu0 0.0
        %2609 = vmatpush1.msra.mxu0 0.0
        %2610 = vmatprep.subr.mxu0 0.0
        %2611 = vmatpush1.msra.mxu0 0.0
        %2612 = vmatprep.subr.mxu0 0.0
        %2613 = vmatpush1.msra.mxu0 0.0
        %2614 = vmatprep.subr.mxu0 0.0
        %2615 = vmatpush1.msra.mxu0 0.0
        %2616 = vmatprep.subr.mxu0 0.0
        %2617 = vmatpush1.msra.mxu0 0.0
        %2618 = vmatprep.subr.mxu0 0.0
        %2619 = vmatpush1.msra.mxu0 0.0
        %2620 = vmatprep.subr.mxu0 0.0
        %2621 = vmatpush1.msra.mxu0 0.0
        %2622 = vmatprep.mubr.f32.mxu0 0.0
        %2623 = vmatmul.mubr.f32.gmra.mrb[0].mxu0 %v2556
        %v2624 = vpop.f32.mrb[0].mxu0
        %v2625 = vadd.f32 %v2553, %v2624
        %v2626 = vpop.f32.mrb[0].mxu0
        %2627 = vdwg.mxu0
        %v2628 = vld [vmem:[%s857] sm:$0xff]
        %v2629 = vld [vmem:[#allocation16] sm:$0xff]
        %v2630 = vld [vmem:[#allocation16 + $0x8] sm:$0xff]
        %v2631 = vld [vmem:[#allocation16 + $0x10] sm:$0xff]
        %v2632 = vld [vmem:[#allocation16 + $0x18] sm:$0xff]
        %v2633 = vld [vmem:[#allocation17] sm:$0x1]
        %2635 = vrot.lane.b32.xlu0 %v2541, 120
        %v2636 = vpop.permute.xlu0 %2635
        %2638 = vrot.lane.b32.xlu0 %v2541, 112
        %v2639 = vpop.permute.xlu0 %2638
        %2641 = vrot.lane.b32.xlu0 %v2541, 104
        %v2642 = vpop.permute.xlu0 %2641
        %v2644 = vcombine.low %v2541, %v2639
        %v2645 = vcombine.high %v2541, %v2639
        %v2647 = vunpack.c.l.s4 1983009808
        %v2648 = vunpack.c.0.s8 %v2647
        %v2649 = vlaneseq
        %v2650 = vshrl.u32 %v2649, 7
        %v2651 = vsub.s32 %v2648, %v2650
        %v2652 = vrot.slane %v2644, %v2651
        %v2654 = vunpack.c.l.s4 1983009808
        %v2655 = vunpack.c.0.s8 %v2654
        %v2656 = vlaneseq
        %v2657 = vshrl.u32 %v2656, 7
        %v2658 = vsub.s32 %v2655, %v2657
        %v2659 = vrot.slane %v2645, %v2658
        %v2660 = vcombine.low %v2636, %v2642
        %v2661 = vcombine.high %v2636, %v2642
        %v2663 = vunpack.c.l.s4 1983009808
        %v2664 = vunpack.c.0.s8 %v2663
        %v2665 = vlaneseq
        %v2666 = vshrl.u32 %v2665, 7
        %v2667 = vsub.s32 %v2664, %v2666
        %v2668 = vrot.slane %v2660, %v2667
        %v2670 = vunpack.c.l.s4 1983009808
        %v2671 = vunpack.c.0.s8 %v2670
        %v2672 = vlaneseq
        %v2673 = vshrl.u32 %v2672, 7
        %v2674 = vsub.s32 %v2671, %v2673
        %v2675 = vrot.slane %v2661, %v2674
        %v2676 = vcombine.low %v2652, %v2668
        %v2677 = vcombine.high %v2652, %v2668
        %v2679 = vunpack.c.l.s4 1934713408
        %v2680 = vunpack.c.0.s8 %v2679
        %v2681 = vlaneseq
        %v2682 = vshrl.u32 %v2681, 7
        %v2683 = vsub.s32 %v2680, %v2682
        %v2684 = vrot.slane %v2676, %v2683
        %v2686 = vunpack.c.l.s4 1934713408
        %v2687 = vunpack.c.0.s8 %v2686
        %v2688 = vlaneseq
        %v2689 = vshrl.u32 %v2688, 7
        %v2690 = vsub.s32 %v2687, %v2689
        %v2691 = vrot.slane %v2677, %v2690
        %v2692 = vcombine.low %v2659, %v2675
        %v2693 = vcombine.high %v2659, %v2675
        %v2695 = vunpack.c.l.s4 1934713408
        %v2696 = vunpack.c.0.s8 %v2695
        %v2697 = vlaneseq
        %v2698 = vshrl.u32 %v2697, 7
        %v2699 = vsub.s32 %v2696, %v2698
        %v2700 = vrot.slane %v2692, %v2699
        %v2702 = vunpack.c.l.s4 1934713408
        %v2703 = vunpack.c.0.s8 %v2702
        %v2704 = vlaneseq
        %v2705 = vshrl.u32 %v2704, 7
        %v2706 = vsub.s32 %v2703, %v2705
        %v2707 = vrot.slane %v2693, %v2706
        %v2708 = vcombine.high %v2684, 0.0
        %v2709 = vcombine.high %v2691, 0.0
        %v2710 = vcombine.high %v2700, 0.0
        %v2711 = vcombine.high %v2707, 0.0
        %v2712 = vcombine.low %v2684, %v2691
        %v2714 = vunpack.c.l.s4 1983009808
        %v2715 = vunpack.c.0.s8 %v2714
        %v2716 = vlaneseq
        %v2717 = vshrl.u32 %v2716, 7
        %v2718 = vsub.s32 %v2715, %v2717
        %v2719 = vrot.slane %v2712, %v2718
        %v2720 = vcombine.low %v2708, %v2709
        %v2722 = vunpack.c.l.s4 1983009808
        %v2723 = vunpack.c.0.s8 %v2722
        %v2724 = vlaneseq
        %v2725 = vshrl.u32 %v2724, 7
        %v2726 = vsub.s32 %v2723, %v2725
        %v2727 = vrot.slane %v2720, %v2726
        %v2728 = vcombine.low %v2700, %v2707
        %v2730 = vunpack.c.l.s4 1983009808
        %v2731 = vunpack.c.0.s8 %v2730
        %v2732 = vlaneseq
        %v2733 = vshrl.u32 %v2732, 7
        %v2734 = vsub.s32 %v2731, %v2733
        %v2735 = vrot.slane %v2728, %v2734
        %v2736 = vcombine.low %v2710, %v2711
        %v2738 = vunpack.c.l.s4 1983009808
        %v2739 = vunpack.c.0.s8 %v2738
        %v2740 = vlaneseq
        %v2741 = vshrl.u32 %v2740, 7
        %v2742 = vsub.s32 %v2739, %v2741
        %v2743 = vrot.slane %v2736, %v2742
        %v2744 = vcombine.low %v2719, %v2727
        %v2745 = vcombine.high %v2719, %v2727
        %v2747 = vunpack.c.l.s4 1934713408
        %v2748 = vunpack.c.0.s8 %v2747
        %v2749 = vlaneseq
        %v2750 = vshrl.u32 %v2749, 7
        %v2751 = vsub.s32 %v2748, %v2750
        %v2752 = vrot.slane %v2744, %v2751
        %v2754 = vunpack.c.l.s4 1934713408
        %v2755 = vunpack.c.0.s8 %v2754
        %v2756 = vlaneseq
        %v2757 = vshrl.u32 %v2756, 7
        %v2758 = vsub.s32 %v2755, %v2757
        %v2759 = vrot.slane %v2745, %v2758
        %v2760 = vcombine.low %v2735, %v2743
        %v2761 = vcombine.high %v2735, %v2743
        %v2763 = vunpack.c.l.s4 1934713408
        %v2764 = vunpack.c.0.s8 %v2763
        %v2765 = vlaneseq
        %v2766 = vshrl.u32 %v2765, 7
        %v2767 = vsub.s32 %v2764, %v2766
        %v2768 = vrot.slane %v2760, %v2767
        %v2770 = vunpack.c.l.s4 1934713408
        %v2771 = vunpack.c.0.s8 %v2770
        %v2772 = vlaneseq
        %v2773 = vshrl.u32 %v2772, 7
        %v2774 = vsub.s32 %v2771, %v2773
        %v2775 = vrot.slane %v2761, %v2774
        %v2776 = vcombine.low %v2752, %v2768
        %v2777 = vcombine.high %v2752, %v2768
        %v2778 = vcombine.low %v2759, %v2775
        %v2779 = vcombine.high %v2759, %v2775
        %2781 = vrot.lane.b32.xlu0 %v2625, 120
        %v2782 = vpop.permute.xlu0 %2781
        %2784 = vrot.lane.b32.xlu0 %v2625, 112
        %v2785 = vpop.permute.xlu0 %2784
        %2787 = vrot.lane.b32.xlu0 %v2625, 104
        %v2788 = vpop.permute.xlu0 %2787
        %v2790 = vcombine.low %v2625, %v2785
        %v2791 = vcombine.high %v2625, %v2785
        %v2793 = vunpack.c.l.s4 1983009808
        %v2794 = vunpack.c.0.s8 %v2793
        %v2795 = vlaneseq
        %v2796 = vshrl.u32 %v2795, 7
        %v2797 = vsub.s32 %v2794, %v2796
        %v2798 = vrot.slane %v2790, %v2797
        %v2800 = vunpack.c.l.s4 1983009808
        %v2801 = vunpack.c.0.s8 %v2800
        %v2802 = vlaneseq
        %v2803 = vshrl.u32 %v2802, 7
        %v2804 = vsub.s32 %v2801, %v2803
        %v2805 = vrot.slane %v2791, %v2804
        %v2806 = vcombine.low %v2782, %v2788
        %v2807 = vcombine.high %v2782, %v2788
        %v2809 = vunpack.c.l.s4 1983009808
        %v2810 = vunpack.c.0.s8 %v2809
        %v2811 = vlaneseq
        %v2812 = vshrl.u32 %v2811, 7
        %v2813 = vsub.s32 %v2810, %v2812
        %v2814 = vrot.slane %v2806, %v2813
        %v2816 = vunpack.c.l.s4 1983009808
        %v2817 = vunpack.c.0.s8 %v2816
        %v2818 = vlaneseq
        %v2819 = vshrl.u32 %v2818, 7
        %v2820 = vsub.s32 %v2817, %v2819
        %v2821 = vrot.slane %v2807, %v2820
        %v2822 = vcombine.low %v2798, %v2814
        %v2823 = vcombine.high %v2798, %v2814
        %v2825 = vunpack.c.l.s4 1934713408
        %v2826 = vunpack.c.0.s8 %v2825
        %v2827 = vlaneseq
        %v2828 = vshrl.u32 %v2827, 7
        %v2829 = vsub.s32 %v2826, %v2828
        %v2830 = vrot.slane %v2822, %v2829
        %v2832 = vunpack.c.l.s4 1934713408
        %v2833 = vunpack.c.0.s8 %v2832
        %v2834 = vlaneseq
        %v2835 = vshrl.u32 %v2834, 7
        %v2836 = vsub.s32 %v2833, %v2835
        %v2837 = vrot.slane %v2823, %v2836
        %v2838 = vcombine.low %v2805, %v2821
        %v2839 = vcombine.high %v2805, %v2821
        %v2841 = vunpack.c.l.s4 1934713408
        %v2842 = vunpack.c.0.s8 %v2841
        %v2843 = vlaneseq
        %v2844 = vshrl.u32 %v2843, 7
        %v2845 = vsub.s32 %v2842, %v2844
        %v2846 = vrot.slane %v2838, %v2845
        %v2848 = vunpack.c.l.s4 1934713408
        %v2849 = vunpack.c.0.s8 %v2848
        %v2850 = vlaneseq
        %v2851 = vshrl.u32 %v2850, 7
        %v2852 = vsub.s32 %v2849, %v2851
        %v2853 = vrot.slane %v2839, %v2852
        %v2854 = vcombine.high %v2830, 0.0
        %v2855 = vcombine.high %v2837, 0.0
        %v2856 = vcombine.high %v2846, 0.0
        %v2857 = vcombine.high %v2853, 0.0
        %v2858 = vcombine.low %v2830, %v2837
        %v2860 = vunpack.c.l.s4 1983009808
        %v2861 = vunpack.c.0.s8 %v2860
        %v2862 = vlaneseq
        %v2863 = vshrl.u32 %v2862, 7
        %v2864 = vsub.s32 %v2861, %v2863
        %v2865 = vrot.slane %v2858, %v2864
        %v2866 = vcombine.low %v2854, %v2855
        %v2868 = vunpack.c.l.s4 1983009808
        %v2869 = vunpack.c.0.s8 %v2868
        %v2870 = vlaneseq
        %v2871 = vshrl.u32 %v2870, 7
        %v2872 = vsub.s32 %v2869, %v2871
        %v2873 = vrot.slane %v2866, %v2872
        %v2874 = vcombine.low %v2846, %v2853
        %v2876 = vunpack.c.l.s4 1983009808
        %v2877 = vunpack.c.0.s8 %v2876
        %v2878 = vlaneseq
        %v2879 = vshrl.u32 %v2878, 7
        %v2880 = vsub.s32 %v2877, %v2879
        %v2881 = vrot.slane %v2874, %v2880
        %v2882 = vcombine.low %v2856, %v2857
        %v2884 = vunpack.c.l.s4 1983009808
        %v2885 = vunpack.c.0.s8 %v2884
        %v2886 = vlaneseq
        %v2887 = vshrl.u32 %v2886, 7
        %v2888 = vsub.s32 %v2885, %v2887
        %v2889 = vrot.slane %v2882, %v2888
        %v2890 = vcombine.low %v2865, %v2873
        %v2891 = vcombine.high %v2865, %v2873
        %v2893 = vunpack.c.l.s4 1934713408
        %v2894 = vunpack.c.0.s8 %v2893
        %v2895 = vlaneseq
        %v2896 = vshrl.u32 %v2895, 7
        %v2897 = vsub.s32 %v2894, %v2896
        %v2898 = vrot.slane %v2890, %v2897
        %v2900 = vunpack.c.l.s4 1934713408
        %v2901 = vunpack.c.0.s8 %v2900
        %v2902 = vlaneseq
        %v2903 = vshrl.u32 %v2902, 7
        %v2904 = vsub.s32 %v2901, %v2903
        %v2905 = vrot.slane %v2891, %v2904
        %v2906 = vcombine.low %v2881, %v2889
        %v2907 = vcombine.high %v2881, %v2889
        %v2909 = vunpack.c.l.s4 1934713408
        %v2910 = vunpack.c.0.s8 %v2909
        %v2911 = vlaneseq
        %v2912 = vshrl.u32 %v2911, 7
        %v2913 = vsub.s32 %v2910, %v2912
        %v2914 = vrot.slane %v2906, %v2913
        %v2916 = vunpack.c.l.s4 1934713408
        %v2917 = vunpack.c.0.s8 %v2916
        %v2918 = vlaneseq
        %v2919 = vshrl.u32 %v2918, 7
        %v2920 = vsub.s32 %v2917, %v2919
        %v2921 = vrot.slane %v2907, %v2920
        %v2922 = vcombine.low %v2898, %v2914
        %v2923 = vcombine.high %v2898, %v2914
        %v2924 = vcombine.low %v2905, %v2921
        %v2925 = vcombine.high %v2905, %v2921
        %2926 = vrot.lane.b32.xlu0 %v2625, 96
        %v2927 = vpop.permute.xlu0 %2926
        %2928 = vrot.lane.b32.xlu0 %v2782, 96
        %v2929 = vpop.permute.xlu0 %2928
        %2930 = vrot.lane.b32.xlu0 %v2785, 96
        %v2931 = vpop.permute.xlu0 %2930
        %2932 = vrot.lane.b32.xlu0 %v2788, 96
        %v2933 = vpop.permute.xlu0 %2932
        %v2938 = vcombine.low %v2927, %v2931
        %v2939 = vcombine.high %v2927, %v2931
        %v2941 = vunpack.c.l.s4 1983009808
        %v2942 = vunpack.c.0.s8 %v2941
        %v2943 = vlaneseq
        %v2944 = vshrl.u32 %v2943, 7
        %v2945 = vsub.s32 %v2942, %v2944
        %v2946 = vrot.slane %v2938, %v2945
        %v2948 = vunpack.c.l.s4 1983009808
        %v2949 = vunpack.c.0.s8 %v2948
        %v2950 = vlaneseq
        %v2951 = vshrl.u32 %v2950, 7
        %v2952 = vsub.s32 %v2949, %v2951
        %v2953 = vrot.slane %v2939, %v2952
        %v2954 = vcombine.low %v2929, %v2933
        %v2955 = vcombine.high %v2929, %v2933
        %v2957 = vunpack.c.l.s4 1983009808
        %v2958 = vunpack.c.0.s8 %v2957
        %v2959 = vlaneseq
        %v2960 = vshrl.u32 %v2959, 7
        %v2961 = vsub.s32 %v2958, %v2960
        %v2962 = vrot.slane %v2954, %v2961
        %v2964 = vunpack.c.l.s4 1983009808
        %v2965 = vunpack.c.0.s8 %v2964
        %v2966 = vlaneseq
        %v2967 = vshrl.u32 %v2966, 7
        %v2968 = vsub.s32 %v2965, %v2967
        %v2969 = vrot.slane %v2955, %v2968
        %v2970 = vcombine.low %v2946, %v2962
        %v2971 = vcombine.high %v2946, %v2962
        %v2973 = vunpack.c.l.s4 1934713408
        %v2974 = vunpack.c.0.s8 %v2973
        %v2975 = vlaneseq
        %v2976 = vshrl.u32 %v2975, 7
        %v2977 = vsub.s32 %v2974, %v2976
        %v2978 = vrot.slane %v2970, %v2977
        %v2980 = vunpack.c.l.s4 1934713408
        %v2981 = vunpack.c.0.s8 %v2980
        %v2982 = vlaneseq
        %v2983 = vshrl.u32 %v2982, 7
        %v2984 = vsub.s32 %v2981, %v2983
        %v2985 = vrot.slane %v2971, %v2984
        %v2986 = vcombine.low %v2953, %v2969
        %v2987 = vcombine.high %v2953, %v2969
        %v2989 = vunpack.c.l.s4 1934713408
        %v2990 = vunpack.c.0.s8 %v2989
        %v2991 = vlaneseq
        %v2992 = vshrl.u32 %v2991, 7
        %v2993 = vsub.s32 %v2990, %v2992
        %v2994 = vrot.slane %v2986, %v2993
        %v2996 = vunpack.c.l.s4 1934713408
        %v2997 = vunpack.c.0.s8 %v2996
        %v2998 = vlaneseq
        %v2999 = vshrl.u32 %v2998, 7
        %v3000 = vsub.s32 %v2997, %v2999
        %v3001 = vrot.slane %v2987, %v3000
        %v3002 = vcombine.high %v2978, 0.0
        %v3003 = vcombine.high %v2985, 0.0
        %v3004 = vcombine.high %v2994, 0.0
        %v3005 = vcombine.high %v3001, 0.0
        %v3006 = vcombine.low %v2978, %v2985
        %v3008 = vunpack.c.l.s4 1983009808
        %v3009 = vunpack.c.0.s8 %v3008
        %v3010 = vlaneseq
        %v3011 = vshrl.u32 %v3010, 7
        %v3012 = vsub.s32 %v3009, %v3011
        %v3013 = vrot.slane %v3006, %v3012
        %v3014 = vcombine.low %v3002, %v3003
        %v3016 = vunpack.c.l.s4 1983009808
        %v3017 = vunpack.c.0.s8 %v3016
        %v3018 = vlaneseq
        %v3019 = vshrl.u32 %v3018, 7
        %v3020 = vsub.s32 %v3017, %v3019
        %v3021 = vrot.slane %v3014, %v3020
        %v3022 = vcombine.low %v2994, %v3001
        %v3024 = vunpack.c.l.s4 1983009808
        %v3025 = vunpack.c.0.s8 %v3024
        %v3026 = vlaneseq
        %v3027 = vshrl.u32 %v3026, 7
        %v3028 = vsub.s32 %v3025, %v3027
        %v3029 = vrot.slane %v3022, %v3028
        %v3030 = vcombine.low %v3004, %v3005
        %v3032 = vunpack.c.l.s4 1983009808
        %v3033 = vunpack.c.0.s8 %v3032
        %v3034 = vlaneseq
        %v3035 = vshrl.u32 %v3034, 7
        %v3036 = vsub.s32 %v3033, %v3035
        %v3037 = vrot.slane %v3030, %v3036
        %v3038 = vcombine.low %v3013, %v3021
        %v3039 = vcombine.high %v3013, %v3021
        %v3041 = vunpack.c.l.s4 1934713408
        %v3042 = vunpack.c.0.s8 %v3041
        %v3043 = vlaneseq
        %v3044 = vshrl.u32 %v3043, 7
        %v3045 = vsub.s32 %v3042, %v3044
        %v3046 = vrot.slane %v3038, %v3045
        %v3048 = vunpack.c.l.s4 1934713408
        %v3049 = vunpack.c.0.s8 %v3048
        %v3050 = vlaneseq
        %v3051 = vshrl.u32 %v3050, 7
        %v3052 = vsub.s32 %v3049, %v3051
        %v3053 = vrot.slane %v3039, %v3052
        %v3054 = vcombine.low %v3029, %v3037
        %v3055 = vcombine.high %v3029, %v3037
        %v3057 = vunpack.c.l.s4 1934713408
        %v3058 = vunpack.c.0.s8 %v3057
        %v3059 = vlaneseq
        %v3060 = vshrl.u32 %v3059, 7
        %v3061 = vsub.s32 %v3058, %v3060
        %v3062 = vrot.slane %v3054, %v3061
        %v3064 = vunpack.c.l.s4 1934713408
        %v3065 = vunpack.c.0.s8 %v3064
        %v3066 = vlaneseq
        %v3067 = vshrl.u32 %v3066, 7
        %v3068 = vsub.s32 %v3065, %v3067
        %v3069 = vrot.slane %v3055, %v3068
        %v3070 = vcombine.low %v3046, %v3062
        %v3071 = vcombine.high %v3046, %v3062
        %v3072 = vcombine.low %v3053, %v3069
        %v3073 = vcombine.high %v3053, %v3069
        %v3075 = vsel %vm1545, %v2776, 0
        %v3078 = vsel %vm1545, %v2922, 0
        %3080 = vmatprep.subr.mxu0 0.0
        %3081 = vmatpush1.xpose.msra.mxu0 %v3078
        %3082 = vmatprep.subr.mxu0 0.0
        %3083 = vmatpush1.xpose.msra.mxu0 0.0
        %3084 = vmatprep.subr.mxu0 0.0
        %3085 = vmatpush1.xpose.msra.mxu0 0.0
        %3086 = vmatprep.subr.mxu0 0.0
        %3087 = vmatpush1.xpose.msra.mxu0 0.0
        %3088 = vmatprep.subr.mxu0 0.0
        %3089 = vmatpush1.xpose.msra.mxu0 0.0
        %3090 = vmatprep.subr.mxu0 0.0
        %3091 = vmatpush1.xpose.msra.mxu0 0.0
        %3092 = vmatprep.subr.mxu0 0.0
        %3093 = vmatpush1.xpose.msra.mxu0 0.0
        %3094 = vmatprep.subr.mxu0 0.0
        %3095 = vmatpush1.xpose.msra.mxu0 0.0
        %3096 = vmatprep.subr.mxu0 0.0
        %3097 = vmatpush1.xpose.msra.mxu0 0.0
        %3098 = vmatprep.subr.mxu0 0.0
        %3099 = vmatpush1.xpose.msra.mxu0 0.0
        %3100 = vmatprep.subr.mxu0 0.0
        %3101 = vmatpush1.xpose.msra.mxu0 0.0
        %3102 = vmatprep.subr.mxu0 0.0
        %3103 = vmatpush1.xpose.msra.mxu0 0.0
        %3104 = vmatprep.subr.mxu0 0.0
        %3105 = vmatpush1.xpose.msra.mxu0 0.0
        %3106 = vmatprep.subr.mxu0 0.0
        %3107 = vmatpush1.xpose.msra.mxu0 0.0
        %3108 = vmatprep.subr.mxu0 0.0
        %3109 = vmatpush1.xpose.msra.mxu0 0.0
        %3110 = vmatprep.subr.mxu0 0.0
        %3111 = vmatpush1.xpose.msra.mxu0 0.0
        %3112 = vmatprep.subr.mxu0 0.0
        %3113 = vmatpush1.xpose.msra.mxu0 0.0
        %3114 = vmatprep.subr.mxu0 0.0
        %3115 = vmatpush1.xpose.msra.mxu0 0.0
        %3116 = vmatprep.subr.mxu0 0.0
        %3117 = vmatpush1.xpose.msra.mxu0 0.0
        %3118 = vmatprep.subr.mxu0 0.0
        %3119 = vmatpush1.xpose.msra.mxu0 0.0
        %3120 = vmatprep.subr.mxu0 0.0
        %3121 = vmatpush1.xpose.msra.mxu0 0.0
        %3122 = vmatprep.subr.mxu0 0.0
        %3123 = vmatpush1.xpose.msra.mxu0 0.0
        %3124 = vmatprep.subr.mxu0 0.0
        %3125 = vmatpush1.xpose.msra.mxu0 0.0
        %3126 = vmatprep.subr.mxu0 0.0
        %3127 = vmatpush1.xpose.msra.mxu0 0.0
        %3128 = vmatprep.subr.mxu0 0.0
        %3129 = vmatpush1.xpose.msra.mxu0 0.0
        %3130 = vmatprep.subr.mxu0 0.0
        %3131 = vmatpush1.xpose.msra.mxu0 0.0
        %3132 = vmatprep.subr.mxu0 0.0
        %3133 = vmatpush1.xpose.msra.mxu0 0.0
        %3134 = vmatprep.subr.mxu0 0.0
        %3135 = vmatpush1.xpose.msra.mxu0 0.0
        %3136 = vmatprep.subr.mxu0 0.0
        %3137 = vmatpush1.xpose.msra.mxu0 0.0
        %3138 = vmatprep.subr.mxu0 0.0
        %3139 = vmatpush1.xpose.msra.mxu0 0.0
        %3140 = vmatprep.subr.mxu0 0.0
        %3141 = vmatpush1.xpose.msra.mxu0 0.0
        %3142 = vmatprep.subr.mxu0 0.0
        %3143 = vmatpush1.xpose.msra.mxu0 0.0
        %3144 = vmatprep.mubr.f32.mxu0 0.0
        %3145 = vmatmul.mubr.f32.gmra.mrb[0].mxu0 %v3075
        %v3146 = vpop.f32.mrb[0].mxu0
        %v3147 = vadd.f32 0.0, %v3146
        %v3148 = vpop.f32.mrb[0].mxu0
        %3149 = vdwg.mxu0
        %v3151 = vsel %vm1545, %v2777, 0
        %v3154 = vsel %vm1545, %v2923, 0
        %3156 = vmatprep.subr.mxu0 0.0
        %3157 = vmatpush1.xpose.msra.mxu0 %v3154
        %3158 = vmatprep.subr.mxu0 0.0
        %3159 = vmatpush1.xpose.msra.mxu0 0.0
        %3160 = vmatprep.subr.mxu0 0.0
        %3161 = vmatpush1.xpose.msra.mxu0 0.0
        %3162 = vmatprep.subr.mxu0 0.0
        %3163 = vmatpush1.xpose.msra.mxu0 0.0
        %3164 = vmatprep.subr.mxu0 0.0
        %3165 = vmatpush1.xpose.msra.mxu0 0.0
        %3166 = vmatprep.subr.mxu0 0.0
        %3167 = vmatpush1.xpose.msra.mxu0 0.0
        %3168 = vmatprep.subr.mxu0 0.0
        %3169 = vmatpush1.xpose.msra.mxu0 0.0
        %3170 = vmatprep.subr.mxu0 0.0
        %3171 = vmatpush1.xpose.msra.mxu0 0.0
        %3172 = vmatprep.subr.mxu0 0.0
        %3173 = vmatpush1.xpose.msra.mxu0 0.0
        %3174 = vmatprep.subr.mxu0 0.0
        %3175 = vmatpush1.xpose.msra.mxu0 0.0
        %3176 = vmatprep.subr.mxu0 0.0
        %3177 = vmatpush1.xpose.msra.mxu0 0.0
        %3178 = vmatprep.subr.mxu0 0.0
        %3179 = vmatpush1.xpose.msra.mxu0 0.0
        %3180 = vmatprep.subr.mxu0 0.0
        %3181 = vmatpush1.xpose.msra.mxu0 0.0
        %3182 = vmatprep.subr.mxu0 0.0
        %3183 = vmatpush1.xpose.msra.mxu0 0.0
        %3184 = vmatprep.subr.mxu0 0.0
        %3185 = vmatpush1.xpose.msra.mxu0 0.0
        %3186 = vmatprep.subr.mxu0 0.0
        %3187 = vmatpush1.xpose.msra.mxu0 0.0
        %3188 = vmatprep.subr.mxu0 0.0
        %3189 = vmatpush1.xpose.msra.mxu0 0.0
        %3190 = vmatprep.subr.mxu0 0.0
        %3191 = vmatpush1.xpose.msra.mxu0 0.0
        %3192 = vmatprep.subr.mxu0 0.0
        %3193 = vmatpush1.xpose.msra.mxu0 0.0
        %3194 = vmatprep.subr.mxu0 0.0
        %3195 = vmatpush1.xpose.msra.mxu0 0.0
        %3196 = vmatprep.subr.mxu0 0.0
        %3197 = vmatpush1.xpose.msra.mxu0 0.0
        %3198 = vmatprep.subr.mxu0 0.0
        %3199 = vmatpush1.xpose.msra.mxu0 0.0
        %3200 = vmatprep.subr.mxu0 0.0
        %3201 = vmatpush1.xpose.msra.mxu0 0.0
        %3202 = vmatprep.subr.mxu0 0.0
        %3203 = vmatpush1.xpose.msra.mxu0 0.0
        %3204 = vmatprep.subr.mxu0 0.0
        %3205 = vmatpush1.xpose.msra.mxu0 0.0
        %3206 = vmatprep.subr.mxu0 0.0
        %3207 = vmatpush1.xpose.msra.mxu0 0.0
        %3208 = vmatprep.subr.mxu0 0.0
        %3209 = vmatpush1.xpose.msra.mxu0 0.0
        %3210 = vmatprep.subr.mxu0 0.0
        %3211 = vmatpush1.xpose.msra.mxu0 0.0
        %3212 = vmatprep.subr.mxu0 0.0
        %3213 = vmatpush1.xpose.msra.mxu0 0.0
        %3214 = vmatprep.subr.mxu0 0.0
        %3215 = vmatpush1.xpose.msra.mxu0 0.0
        %3216 = vmatprep.subr.mxu0 0.0
        %3217 = vmatpush1.xpose.msra.mxu0 0.0
        %3218 = vmatprep.subr.mxu0 0.0
        %3219 = vmatpush1.xpose.msra.mxu0 0.0
        %3220 = vmatprep.mubr.f32.mxu0 0.0
        %3221 = vmatmul.mubr.f32.gmra.mrb[0].mxu0 %v3151
        %v3222 = vpop.f32.mrb[0].mxu0
        %v3223 = vadd.f32 0.0, %v3222
        %v3224 = vpop.f32.mrb[0].mxu0
        %3225 = vdwg.mxu0
        %v3227 = vsel %vm1545, %v2778, 0
        %v3230 = vsel %vm1545, %v2924, 0
        %3232 = vmatprep.subr.mxu0 0.0
        %3233 = vmatpush1.xpose.msra.mxu0 %v3230
        %3234 = vmatprep.subr.mxu0 0.0
        %3235 = vmatpush1.xpose.msra.mxu0 0.0
        %3236 = vmatprep.subr.mxu0 0.0
        %3237 = vmatpush1.xpose.msra.mxu0 0.0
        %3238 = vmatprep.subr.mxu0 0.0
        %3239 = vmatpush1.xpose.msra.mxu0 0.0
        %3240 = vmatprep.subr.mxu0 0.0
        %3241 = vmatpush1.xpose.msra.mxu0 0.0
        %3242 = vmatprep.subr.mxu0 0.0
        %3243 = vmatpush1.xpose.msra.mxu0 0.0
        %3244 = vmatprep.subr.mxu0 0.0
        %3245 = vmatpush1.xpose.msra.mxu0 0.0
        %3246 = vmatprep.subr.mxu0 0.0
        %3247 = vmatpush1.xpose.msra.mxu0 0.0
        %3248 = vmatprep.subr.mxu0 0.0
        %3249 = vmatpush1.xpose.msra.mxu0 0.0
        %3250 = vmatprep.subr.mxu0 0.0
        %3251 = vmatpush1.xpose.msra.mxu0 0.0
        %3252 = vmatprep.subr.mxu0 0.0
        %3253 = vmatpush1.xpose.msra.mxu0 0.0
        %3254 = vmatprep.subr.mxu0 0.0
        %3255 = vmatpush1.xpose.msra.mxu0 0.0
        %3256 = vmatprep.subr.mxu0 0.0
        %3257 = vmatpush1.xpose.msra.mxu0 0.0
        %3258 = vmatprep.subr.mxu0 0.0
        %3259 = vmatpush1.xpose.msra.mxu0 0.0
        %3260 = vmatprep.subr.mxu0 0.0
        %3261 = vmatpush1.xpose.msra.mxu0 0.0
        %3262 = vmatprep.subr.mxu0 0.0
        %3263 = vmatpush1.xpose.msra.mxu0 0.0
        %3264 = vmatprep.subr.mxu0 0.0
        %3265 = vmatpush1.xpose.msra.mxu0 0.0
        %3266 = vmatprep.subr.mxu0 0.0
        %3267 = vmatpush1.xpose.msra.mxu0 0.0
        %3268 = vmatprep.subr.mxu0 0.0
        %3269 = vmatpush1.xpose.msra.mxu0 0.0
        %3270 = vmatprep.subr.mxu0 0.0
        %3271 = vmatpush1.xpose.msra.mxu0 0.0
        %3272 = vmatprep.subr.mxu0 0.0
        %3273 = vmatpush1.xpose.msra.mxu0 0.0
        %3274 = vmatprep.subr.mxu0 0.0
        %3275 = vmatpush1.xpose.msra.mxu0 0.0
        %3276 = vmatprep.subr.mxu0 0.0
        %3277 = vmatpush1.xpose.msra.mxu0 0.0
        %3278 = vmatprep.subr.mxu0 0.0
        %3279 = vmatpush1.xpose.msra.mxu0 0.0
        %3280 = vmatprep.subr.mxu0 0.0
        %3281 = vmatpush1.xpose.msra.mxu0 0.0
        %3282 = vmatprep.subr.mxu0 0.0
        %3283 = vmatpush1.xpose.msra.mxu0 0.0
        %3284 = vmatprep.subr.mxu0 0.0
        %3285 = vmatpush1.xpose.msra.mxu0 0.0
        %3286 = vmatprep.subr.mxu0 0.0
        %3287 = vmatpush1.xpose.msra.mxu0 0.0
        %3288 = vmatprep.subr.mxu0 0.0
        %3289 = vmatpush1.xpose.msra.mxu0 0.0
        %3290 = vmatprep.subr.mxu0 0.0
        %3291 = vmatpush1.xpose.msra.mxu0 0.0
        %3292 = vmatprep.subr.mxu0 0.0
        %3293 = vmatpush1.xpose.msra.mxu0 0.0
        %3294 = vmatprep.subr.mxu0 0.0
        %3295 = vmatpush1.xpose.msra.mxu0 0.0
        %3296 = vmatprep.mubr.f32.mxu0 0.0
        %3297 = vmatmul.mubr.f32.gmra.mrb[0].mxu0 %v3227
        %v3298 = vpop.f32.mrb[0].mxu0
        %v3299 = vadd.f32 0.0, %v3298
        %v3300 = vpop.f32.mrb[0].mxu0
        %3301 = vdwg.mxu0
        %v3303 = vsel %vm1545, %v2779, 0
        %v3306 = vsel %vm1545, %v2925, 0
        %3308 = vmatprep.subr.mxu0 0.0
        %3309 = vmatpush1.xpose.msra.mxu0 %v3306
        %3310 = vmatprep.subr.mxu0 0.0
        %3311 = vmatpush1.xpose.msra.mxu0 0.0
        %3312 = vmatprep.subr.mxu0 0.0
        %3313 = vmatpush1.xpose.msra.mxu0 0.0
        %3314 = vmatprep.subr.mxu0 0.0
        %3315 = vmatpush1.xpose.msra.mxu0 0.0
        %3316 = vmatprep.subr.mxu0 0.0
        %3317 = vmatpush1.xpose.msra.mxu0 0.0
        %3318 = vmatprep.subr.mxu0 0.0
        %3319 = vmatpush1.xpose.msra.mxu0 0.0
        %3320 = vmatprep.subr.mxu0 0.0
        %3321 = vmatpush1.xpose.msra.mxu0 0.0
        %3322 = vmatprep.subr.mxu0 0.0
        %3323 = vmatpush1.xpose.msra.mxu0 0.0
        %3324 = vmatprep.subr.mxu0 0.0
        %3325 = vmatpush1.xpose.msra.mxu0 0.0
        %3326 = vmatprep.subr.mxu0 0.0
        %3327 = vmatpush1.xpose.msra.mxu0 0.0
        %3328 = vmatprep.subr.mxu0 0.0
        %3329 = vmatpush1.xpose.msra.mxu0 0.0
        %3330 = vmatprep.subr.mxu0 0.0
        %3331 = vmatpush1.xpose.msra.mxu0 0.0
        %3332 = vmatprep.subr.mxu0 0.0
        %3333 = vmatpush1.xpose.msra.mxu0 0.0
        %3334 = vmatprep.subr.mxu0 0.0
        %3335 = vmatpush1.xpose.msra.mxu0 0.0
        %3336 = vmatprep.subr.mxu0 0.0
        %3337 = vmatpush1.xpose.msra.mxu0 0.0
        %3338 = vmatprep.subr.mxu0 0.0
        %3339 = vmatpush1.xpose.msra.mxu0 0.0
        %3340 = vmatprep.subr.mxu0 0.0
        %3341 = vmatpush1.xpose.msra.mxu0 0.0
        %3342 = vmatprep.subr.mxu0 0.0
        %3343 = vmatpush1.xpose.msra.mxu0 0.0
        %3344 = vmatprep.subr.mxu0 0.0
        %3345 = vmatpush1.xpose.msra.mxu0 0.0
        %3346 = vmatprep.subr.mxu0 0.0
        %3347 = vmatpush1.xpose.msra.mxu0 0.0
        %3348 = vmatprep.subr.mxu0 0.0
        %3349 = vmatpush1.xpose.msra.mxu0 0.0
        %3350 = vmatprep.subr.mxu0 0.0
        %3351 = vmatpush1.xpose.msra.mxu0 0.0
        %3352 = vmatprep.subr.mxu0 0.0
        %3353 = vmatpush1.xpose.msra.mxu0 0.0
        %3354 = vmatprep.subr.mxu0 0.0
        %3355 = vmatpush1.xpose.msra.mxu0 0.0
        %3356 = vmatprep.subr.mxu0 0.0
        %3357 = vmatpush1.xpose.msra.mxu0 0.0
        %3358 = vmatprep.subr.mxu0 0.0
        %3359 = vmatpush1.xpose.msra.mxu0 0.0
        %3360 = vmatprep.subr.mxu0 0.0
        %3361 = vmatpush1.xpose.msra.mxu0 0.0
        %3362 = vmatprep.subr.mxu0 0.0
        %3363 = vmatpush1.xpose.msra.mxu0 0.0
        %3364 = vmatprep.subr.mxu0 0.0
        %3365 = vmatpush1.xpose.msra.mxu0 0.0
        %3366 = vmatprep.subr.mxu0 0.0
        %3367 = vmatpush1.xpose.msra.mxu0 0.0
        %3368 = vmatprep.subr.mxu0 0.0
        %3369 = vmatpush1.xpose.msra.mxu0 0.0
        %3370 = vmatprep.subr.mxu0 0.0
        %3371 = vmatpush1.xpose.msra.mxu0 0.0
        %3372 = vmatprep.mubr.f32.mxu0 0.0
        %3373 = vmatmul.mubr.f32.gmra.mrb[0].mxu0 %v3303
        %v3374 = vpop.f32.mrb[0].mxu0
        %v3375 = vadd.f32 0.0, %v3374
        %v3376 = vpop.f32.mrb[0].mxu0
        %3377 = vdwg.mxu0
        %v3378 = vmul.f32 %v3147, 0.35355338
        %v3379 = vmul.f32 %v3223, 0.35355338
        %v3380 = vmul.f32 %v3299, 0.35355338
        %v3381 = vmul.f32 %v3375, 0.35355338
        %vm3382 = vcmp.eq.f32.partialorder %v2628, 0.0
        %v3383 = vsel %vm3382, 1, 0
        %vm3384 = vcmp.eq.s32.totalorder %v3383, 1
        %v3385 = vsel %vm3384, -1e+10, %v3378
        %v3386 = vsel %vm3384, -1e+10, %v3379
        %v3387 = vsel %vm3384, -1e+10, %v3380
        %v3388 = vsel %vm3384, -1e+10, %v3381
        %v3389 = vsel %vm1545, %v3385, -inf
        %3390 = vmax.xlane.f32.xlu0 %v3389
        %v3391 = vpop.xlane.xlu0 %3390
        %v3392 = vsel %vm1545, %v3386, -inf
        %3393 = vmax.xlane.f32.xlu0 %v3392
        %v3394 = vpop.xlane.xlu0 %3393
        %v3395 = vsel %vm1545, %v3387, -inf
        %3396 = vmax.xlane.f32.xlu0 %v3395
        %v3397 = vpop.xlane.xlu0 %3396
        %v3398 = vsel %vm1545, %v3388, -inf
        %3399 = vmax.xlane.f32.xlu0 %v3398
        %v3400 = vpop.xlane.xlu0 %3399
        %v3401 = vsub.f32 %v3385, %v3391
        %v3402 = vsub.f32 %v3386, %v3394
        %v3403 = vsub.f32 %v3387, %v3397
        %v3404 = vsub.f32 %v3388, %v3400
        %v3405 = vmul.f32 %v3401, 1.442695
        %v3406 = vpow.pop %v3405
        %v3407 = vmul.f32 %v3402, 1.442695
        %v3408 = vpow.pop %v3407
        %v3409 = vmul.f32 %v3403, 1.442695
        %v3410 = vpow.pop %v3409
        %v3411 = vmul.f32 %v3404, 1.442695
        %v3412 = vpow.pop %v3411
        %v3413 = vsel %vm1545, %v3406, 0.0
        %3414 = vadd.xlane.f32.xlu0 %v3413
        %v3415 = vpop.xlane.xlu0 %3414
        %v3416 = vsel %vm1545, %v3408, 0.0
        %3417 = vadd.xlane.f32.xlu0 %v3416
        %v3418 = vpop.xlane.xlu0 %3417
        %v3419 = vsel %vm1545, %v3410, 0.0
        %3420 = vadd.xlane.f32.xlu0 %v3419
        %v3421 = vpop.xlane.xlu0 %3420
        %v3422 = vsel %vm1545, %v3412, 0.0
        %3423 = vadd.xlane.f32.xlu0 %v3422
        %v3424 = vpop.xlane.xlu0 %3423
        %v3425 = vrcp.pop %v3415
        %v3426 = vrcp.pop %v3418
        %v3427 = vrcp.pop %v3421
        %v3428 = vrcp.pop %v3424
        %v3429 = vmul.f32 %v3406, %v3425
        %v3430 = vmul.f32 %v3408, %v3426
        %v3431 = vmul.f32 %v3410, %v3427
        %v3432 = vmul.f32 %v3412, %v3428
        %v3434 = vsel %vm1545, %v3429, 0
        %3436 = vmatprep.subr.mxu0 0.0
        %3437 = vmatpush1.msra.mxu0 %v3070
        %3438 = vmatprep.subr.mxu0 0.0
        %3439 = vmatpush1.msra.mxu0 0.0
        %3440 = vmatprep.subr.mxu0 0.0
        %3441 = vmatpush1.msra.mxu0 0.0
        %3442 = vmatprep.subr.mxu0 0.0
        %3443 = vmatpush1.msra.mxu0 0.0
        %3444 = vmatprep.subr.mxu0 0.0
        %3445 = vmatpush1.msra.mxu0 0.0
        %3446 = vmatprep.subr.mxu0 0.0
        %3447 = vmatpush1.msra.mxu0 0.0
        %3448 = vmatprep.subr.mxu0 0.0
        %3449 = vmatpush1.msra.mxu0 0.0
        %3450 = vmatprep.subr.mxu0 0.0
        %3451 = vmatpush1.msra.mxu0 0.0
        %3452 = vmatprep.subr.mxu0 0.0
        %3453 = vmatpush1.msra.mxu0 0.0
        %3454 = vmatprep.subr.mxu0 0.0
        %3455 = vmatpush1.msra.mxu0 0.0
        %3456 = vmatprep.subr.mxu0 0.0
        %3457 = vmatpush1.msra.mxu0 0.0
        %3458 = vmatprep.subr.mxu0 0.0
        %3459 = vmatpush1.msra.mxu0 0.0
        %3460 = vmatprep.subr.mxu0 0.0
        %3461 = vmatpush1.msra.mxu0 0.0
        %3462 = vmatprep.subr.mxu0 0.0
        %3463 = vmatpush1.msra.mxu0 0.0
        %3464 = vmatprep.subr.mxu0 0.0
        %3465 = vmatpush1.msra.mxu0 0.0
        %3466 = vmatprep.subr.mxu0 0.0
        %3467 = vmatpush1.msra.mxu0 0.0
        %3468 = vmatprep.subr.mxu0 0.0
        %3469 = vmatpush1.msra.mxu0 0.0
        %3470 = vmatprep.subr.mxu0 0.0
        %3471 = vmatpush1.msra.mxu0 0.0
        %3472 = vmatprep.subr.mxu0 0.0
        %3473 = vmatpush1.msra.mxu0 0.0
        %3474 = vmatprep.subr.mxu0 0.0
        %3475 = vmatpush1.msra.mxu0 0.0
        %3476 = vmatprep.subr.mxu0 0.0
        %3477 = vmatpush1.msra.mxu0 0.0
        %3478 = vmatprep.subr.mxu0 0.0
        %3479 = vmatpush1.msra.mxu0 0.0
        %3480 = vmatprep.subr.mxu0 0.0
        %3481 = vmatpush1.msra.mxu0 0.0
        %3482 = vmatprep.subr.mxu0 0.0
        %3483 = vmatpush1.msra.mxu0 0.0
        %3484 = vmatprep.subr.mxu0 0.0
        %3485 = vmatpush1.msra.mxu0 0.0
        %3486 = vmatprep.subr.mxu0 0.0
        %3487 = vmatpush1.msra.mxu0 0.0
        %3488 = vmatprep.subr.mxu0 0.0
        %3489 = vmatpush1.msra.mxu0 0.0
        %3490 = vmatprep.subr.mxu0 0.0
        %3491 = vmatpush1.msra.mxu0 0.0
        %3492 = vmatprep.subr.mxu0 0.0
        %3493 = vmatpush1.msra.mxu0 0.0
        %3494 = vmatprep.subr.mxu0 0.0
        %3495 = vmatpush1.msra.mxu0 0.0
        %3496 = vmatprep.subr.mxu0 0.0
        %3497 = vmatpush1.msra.mxu0 0.0
        %3498 = vmatprep.subr.mxu0 0.0
        %3499 = vmatpush1.msra.mxu0 0.0
        %3500 = vmatprep.mubr.f32.mxu0 0.0
        %3501 = vmatmul.mubr.f32.gmra.mrb[0].mxu0 %v3434
        %v3502 = vpop.f32.mrb[0].mxu0
        %v3503 = vadd.f32 0.0, %v3502
        %v3504 = vpop.f32.mrb[0].mxu0
        %3505 = vdwg.mxu0
        %v3507 = vsel %vm1545, %v3430, 0
        %3509 = vmatprep.subr.mxu0 0.0
        %3510 = vmatpush1.msra.mxu0 %v3071
        %3511 = vmatprep.subr.mxu0 0.0
        %3512 = vmatpush1.msra.mxu0 0.0
        %3513 = vmatprep.subr.mxu0 0.0
        %3514 = vmatpush1.msra.mxu0 0.0
        %3515 = vmatprep.subr.mxu0 0.0
        %3516 = vmatpush1.msra.mxu0 0.0
        %3517 = vmatprep.subr.mxu0 0.0
        %3518 = vmatpush1.msra.mxu0 0.0
        %3519 = vmatprep.subr.mxu0 0.0
        %3520 = vmatpush1.msra.mxu0 0.0
        %3521 = vmatprep.subr.mxu0 0.0
        %3522 = vmatpush1.msra.mxu0 0.0
        %3523 = vmatprep.subr.mxu0 0.0
        %3524 = vmatpush1.msra.mxu0 0.0
        %3525 = vmatprep.subr.mxu0 0.0
        %3526 = vmatpush1.msra.mxu0 0.0
        %3527 = vmatprep.subr.mxu0 0.0
        %3528 = vmatpush1.msra.mxu0 0.0
        %3529 = vmatprep.subr.mxu0 0.0
        %3530 = vmatpush1.msra.mxu0 0.0
        %3531 = vmatprep.subr.mxu0 0.0
        %3532 = vmatpush1.msra.mxu0 0.0
        %3533 = vmatprep.subr.mxu0 0.0
        %3534 = vmatpush1.msra.mxu0 0.0
        %3535 = vmatprep.subr.mxu0 0.0
        %3536 = vmatpush1.msra.mxu0 0.0
        %3537 = vmatprep.subr.mxu0 0.0
        %3538 = vmatpush1.msra.mxu0 0.0
        %3539 = vmatprep.subr.mxu0 0.0
        %3540 = vmatpush1.msra.mxu0 0.0
        %3541 = vmatprep.subr.mxu0 0.0
        %3542 = vmatpush1.msra.mxu0 0.0
        %3543 = vmatprep.subr.mxu0 0.0
        %3544 = vmatpush1.msra.mxu0 0.0
        %3545 = vmatprep.subr.mxu0 0.0
        %3546 = vmatpush1.msra.mxu0 0.0
        %3547 = vmatprep.subr.mxu0 0.0
        %3548 = vmatpush1.msra.mxu0 0.0
        %3549 = vmatprep.subr.mxu0 0.0
        %3550 = vmatpush1.msra.mxu0 0.0
        %3551 = vmatprep.subr.mxu0 0.0
        %3552 = vmatpush1.msra.mxu0 0.0
        %3553 = vmatprep.subr.mxu0 0.0
        %3554 = vmatpush1.msra.mxu0 0.0
        %3555 = vmatprep.subr.mxu0 0.0
        %3556 = vmatpush1.msra.mxu0 0.0
        %3557 = vmatprep.subr.mxu0 0.0
        %3558 = vmatpush1.msra.mxu0 0.0
        %3559 = vmatprep.subr.mxu0 0.0
        %3560 = vmatpush1.msra.mxu0 0.0
        %3561 = vmatprep.subr.mxu0 0.0
        %3562 = vmatpush1.msra.mxu0 0.0
        %3563 = vmatprep.subr.mxu0 0.0
        %3564 = vmatpush1.msra.mxu0 0.0
        %3565 = vmatprep.subr.mxu0 0.0
        %3566 = vmatpush1.msra.mxu0 0.0
        %3567 = vmatprep.subr.mxu0 0.0
        %3568 = vmatpush1.msra.mxu0 0.0
        %3569 = vmatprep.subr.mxu0 0.0
        %3570 = vmatpush1.msra.mxu0 0.0
        %3571 = vmatprep.subr.mxu0 0.0
        %3572 = vmatpush1.msra.mxu0 0.0
        %3573 = vmatprep.mubr.f32.mxu0 0.0
        %3574 = vmatmul.mubr.f32.gmra.mrb[0].mxu0 %v3507
        %v3575 = vpop.f32.mrb[0].mxu0
        %v3576 = vadd.f32 0.0, %v3575
        %v3577 = vpop.f32.mrb[0].mxu0
        %3578 = vdwg.mxu0
        %v3580 = vsel %vm1545, %v3431, 0
        %3582 = vmatprep.subr.mxu0 0.0
        %3583 = vmatpush1.msra.mxu0 %v3072
        %3584 = vmatprep.subr.mxu0 0.0
        %3585 = vmatpush1.msra.mxu0 0.0
        %3586 = vmatprep.subr.mxu0 0.0
        %3587 = vmatpush1.msra.mxu0 0.0
        %3588 = vmatprep.subr.mxu0 0.0
        %3589 = vmatpush1.msra.mxu0 0.0
        %3590 = vmatprep.subr.mxu0 0.0
        %3591 = vmatpush1.msra.mxu0 0.0
        %3592 = vmatprep.subr.mxu0 0.0
        %3593 = vmatpush1.msra.mxu0 0.0
        %3594 = vmatprep.subr.mxu0 0.0
        %3595 = vmatpush1.msra.mxu0 0.0
        %3596 = vmatprep.subr.mxu0 0.0
        %3597 = vmatpush1.msra.mxu0 0.0
        %3598 = vmatprep.subr.mxu0 0.0
        %3599 = vmatpush1.msra.mxu0 0.0
        %3600 = vmatprep.subr.mxu0 0.0
        %3601 = vmatpush1.msra.mxu0 0.0
        %3602 = vmatprep.subr.mxu0 0.0
        %3603 = vmatpush1.msra.mxu0 0.0
        %3604 = vmatprep.subr.mxu0 0.0
        %3605 = vmatpush1.msra.mxu0 0.0
        %3606 = vmatprep.subr.mxu0 0.0
        %3607 = vmatpush1.msra.mxu0 0.0
        %3608 = vmatprep.subr.mxu0 0.0
        %3609 = vmatpush1.msra.mxu0 0.0
        %3610 = vmatprep.subr.mxu0 0.0
        %3611 = vmatpush1.msra.mxu0 0.0
        %3612 = vmatprep.subr.mxu0 0.0
        %3613 = vmatpush1.msra.mxu0 0.0
        %3614 = vmatprep.subr.mxu0 0.0
        %3615 = vmatpush1.msra.mxu0 0.0
        %3616 = vmatprep.subr.mxu0 0.0
        %3617 = vmatpush1.msra.mxu0 0.0
        %3618 = vmatprep.subr.mxu0 0.0
        %3619 = vmatpush1.msra.mxu0 0.0
        %3620 = vmatprep.subr.mxu0 0.0
        %3621 = vmatpush1.msra.mxu0 0.0
        %3622 = vmatprep.subr.mxu0 0.0
        %3623 = vmatpush1.msra.mxu0 0.0
        %3624 = vmatprep.subr.mxu0 0.0
        %3625 = vmatpush1.msra.mxu0 0.0
        %3626 = vmatprep.subr.mxu0 0.0
        %3627 = vmatpush1.msra.mxu0 0.0
        %3628 = vmatprep.subr.mxu0 0.0
        %3629 = vmatpush1.msra.mxu0 0.0
        %3630 = vmatprep.subr.mxu0 0.0
        %3631 = vmatpush1.msra.mxu0 0.0
        %3632 = vmatprep.subr.mxu0 0.0
        %3633 = vmatpush1.msra.mxu0 0.0
        %3634 = vmatprep.subr.mxu0 0.0
        %3635 = vmatpush1.msra.mxu0 0.0
        %3636 = vmatprep.subr.mxu0 0.0
        %3637 = vmatpush1.msra.mxu0 0.0
        %3638 = vmatprep.subr.mxu0 0.0
        %3639 = vmatpush1.msra.mxu0 0.0
        %3640 = vmatprep.subr.mxu0 0.0
        %3641 = vmatpush1.msra.mxu0 0.0
        %3642 = vmatprep.subr.mxu0 0.0
        %3643 = vmatpush1.msra.mxu0 0.0
        %3644 = vmatprep.subr.mxu0 0.0
        %3645 = vmatpush1.msra.mxu0 0.0
        %3646 = vmatprep.mubr.f32.mxu0 0.0
        %3647 = vmatmul.mubr.f32.gmra.mrb[0].mxu0 %v3580
        %v3648 = vpop.f32.mrb[0].mxu0
        %v3649 = vadd.f32 0.0, %v3648
        %v3650 = vpop.f32.mrb[0].mxu0
        %3651 = vdwg.mxu0
        %v3653 = vsel %vm1545, %v3432, 0
        %3655 = vmatprep.subr.mxu0 0.0
        %3656 = vmatpush1.msra.mxu0 %v3073
        %3657 = vmatprep.subr.mxu0 0.0
        %3658 = vmatpush1.msra.mxu0 0.0
        %3659 = vmatprep.subr.mxu0 0.0
        %3660 = vmatpush1.msra.mxu0 0.0
        %3661 = vmatprep.subr.mxu0 0.0
        %3662 = vmatpush1.msra.mxu0 0.0
        %3663 = vmatprep.subr.mxu0 0.0
        %3664 = vmatpush1.msra.mxu0 0.0
        %3665 = vmatprep.subr.mxu0 0.0
        %3666 = vmatpush1.msra.mxu0 0.0
        %3667 = vmatprep.subr.mxu0 0.0
        %3668 = vmatpush1.msra.mxu0 0.0
        %3669 = vmatprep.subr.mxu0 0.0
        %3670 = vmatpush1.msra.mxu0 0.0
        %3671 = vmatprep.subr.mxu0 0.0
        %3672 = vmatpush1.msra.mxu0 0.0
        %3673 = vmatprep.subr.mxu0 0.0
        %3674 = vmatpush1.msra.mxu0 0.0
        %3675 = vmatprep.subr.mxu0 0.0
        %3676 = vmatpush1.msra.mxu0 0.0
        %3677 = vmatprep.subr.mxu0 0.0
        %3678 = vmatpush1.msra.mxu0 0.0
        %3679 = vmatprep.subr.mxu0 0.0
        %3680 = vmatpush1.msra.mxu0 0.0
        %3681 = vmatprep.subr.mxu0 0.0
        %3682 = vmatpush1.msra.mxu0 0.0
        %3683 = vmatprep.subr.mxu0 0.0
        %3684 = vmatpush1.msra.mxu0 0.0
        %3685 = vmatprep.subr.mxu0 0.0
        %3686 = vmatpush1.msra.mxu0 0.0
        %3687 = vmatprep.subr.mxu0 0.0
        %3688 = vmatpush1.msra.mxu0 0.0
        %3689 = vmatprep.subr.mxu0 0.0
        %3690 = vmatpush1.msra.mxu0 0.0
        %3691 = vmatprep.subr.mxu0 0.0
        %3692 = vmatpush1.msra.mxu0 0.0
        %3693 = vmatprep.subr.mxu0 0.0
        %3694 = vmatpush1.msra.mxu0 0.0
        %3695 = vmatprep.subr.mxu0 0.0
        %3696 = vmatpush1.msra.mxu0 0.0
        %3697 = vmatprep.subr.mxu0 0.0
        %3698 = vmatpush1.msra.mxu0 0.0
        %3699 = vmatprep.subr.mxu0 0.0
        %3700 = vmatpush1.msra.mxu0 0.0
        %3701 = vmatprep.subr.mxu0 0.0
        %3702 = vmatpush1.msra.mxu0 0.0
        %3703 = vmatprep.subr.mxu0 0.0
        %3704 = vmatpush1.msra.mxu0 0.0
        %3705 = vmatprep.subr.mxu0 0.0
        %3706 = vmatpush1.msra.mxu0 0.0
        %3707 = vmatprep.subr.mxu0 0.0
        %3708 = vmatpush1.msra.mxu0 0.0
        %3709 = vmatprep.subr.mxu0 0.0
        %3710 = vmatpush1.msra.mxu0 0.0
        %3711 = vmatprep.subr.mxu0 0.0
        %3712 = vmatpush1.msra.mxu0 0.0
        %3713 = vmatprep.subr.mxu0 0.0
        %3714 = vmatpush1.msra.mxu0 0.0
        %3715 = vmatprep.subr.mxu0 0.0
        %3716 = vmatpush1.msra.mxu0 0.0
        %3717 = vmatprep.subr.mxu0 0.0
        %3718 = vmatpush1.msra.mxu0 0.0
        %3719 = vmatprep.mubr.f32.mxu0 0.0
        %3720 = vmatmul.mubr.f32.gmra.mrb[0].mxu0 %v3653
        %v3721 = vpop.f32.mrb[0].mxu0
        %v3722 = vadd.f32 0.0, %v3721
        %v3723 = vpop.f32.mrb[0].mxu0
        %3724 = vdwg.mxu0
        %v3725 = vcombine.low %v3503, %v3649
        %v3726 = vcombine.high %v3503, %v3649
        %v3728 = vunpack.c.l.s4 1983009808
        %v3729 = vunpack.c.0.s8 %v3728
        %v3730 = vlaneseq
        %v3731 = vshrl.u32 %v3730, 7
        %v3732 = vsub.s32 %v3729, %v3731
        %v3733 = vrot.slane %v3725, %v3732
        %v3735 = vunpack.c.l.s4 1983009808
        %v3736 = vunpack.c.0.s8 %v3735
        %v3737 = vlaneseq
        %v3738 = vshrl.u32 %v3737, 7
        %v3739 = vsub.s32 %v3736, %v3738
        %v3740 = vrot.slane %v3726, %v3739
        %v3741 = vcombine.low %v3576, %v3722
        %v3742 = vcombine.high %v3576, %v3722
        %v3744 = vunpack.c.l.s4 1983009808
        %v3745 = vunpack.c.0.s8 %v3744
        %v3746 = vlaneseq
        %v3747 = vshrl.u32 %v3746, 7
        %v3748 = vsub.s32 %v3745, %v3747
        %v3749 = vrot.slane %v3741, %v3748
        %v3751 = vunpack.c.l.s4 1983009808
        %v3752 = vunpack.c.0.s8 %v3751
        %v3753 = vlaneseq
        %v3754 = vshrl.u32 %v3753, 7
        %v3755 = vsub.s32 %v3752, %v3754
        %v3756 = vrot.slane %v3742, %v3755
        %v3757 = vcombine.low %v3733, %v3749
        %v3758 = vcombine.high %v3733, %v3749
        %v3760 = vunpack.c.l.s4 1934713408
        %v3761 = vunpack.c.0.s8 %v3760
        %v3762 = vlaneseq
        %v3763 = vshrl.u32 %v3762, 7
        %v3764 = vsub.s32 %v3761, %v3763
        %v3765 = vrot.slane %v3757, %v3764
        %v3767 = vunpack.c.l.s4 1934713408
        %v3768 = vunpack.c.0.s8 %v3767
        %v3769 = vlaneseq
        %v3770 = vshrl.u32 %v3769, 7
        %v3771 = vsub.s32 %v3768, %v3770
        %v3772 = vrot.slane %v3758, %v3771
        %v3773 = vcombine.low %v3740, %v3756
        %v3774 = vcombine.high %v3740, %v3756
        %v3776 = vunpack.c.l.s4 1934713408
        %v3777 = vunpack.c.0.s8 %v3776
        %v3778 = vlaneseq
        %v3779 = vshrl.u32 %v3778, 7
        %v3780 = vsub.s32 %v3777, %v3779
        %v3781 = vrot.slane %v3773, %v3780
        %v3783 = vunpack.c.l.s4 1934713408
        %v3784 = vunpack.c.0.s8 %v3783
        %v3785 = vlaneseq
        %v3786 = vshrl.u32 %v3785, 7
        %v3787 = vsub.s32 %v3784, %v3786
        %v3788 = vrot.slane %v3774, %v3787
        %v3789 = vcombine.high %v3765, 0.0
        %v3790 = vcombine.high %v3772, 0.0
        %v3791 = vcombine.high %v3781, 0.0
        %v3792 = vcombine.high %v3788, 0.0
        %v3793 = vcombine.low %v3765, %v3772
        %v3795 = vunpack.c.l.s4 1983009808
        %v3796 = vunpack.c.0.s8 %v3795
        %v3797 = vlaneseq
        %v3798 = vshrl.u32 %v3797, 7
        %v3799 = vsub.s32 %v3796, %v3798
        %v3800 = vrot.slane %v3793, %v3799
        %v3801 = vcombine.low %v3789, %v3790
        %v3803 = vunpack.c.l.s4 1983009808
        %v3804 = vunpack.c.0.s8 %v3803
        %v3805 = vlaneseq
        %v3806 = vshrl.u32 %v3805, 7
        %v3807 = vsub.s32 %v3804, %v3806
        %v3808 = vrot.slane %v3801, %v3807
        %v3809 = vcombine.low %v3781, %v3788
        %v3811 = vunpack.c.l.s4 1983009808
        %v3812 = vunpack.c.0.s8 %v3811
        %v3813 = vlaneseq
        %v3814 = vshrl.u32 %v3813, 7
        %v3815 = vsub.s32 %v3812, %v3814
        %v3816 = vrot.slane %v3809, %v3815
        %v3817 = vcombine.low %v3791, %v3792
        %v3819 = vunpack.c.l.s4 1983009808
        %v3820 = vunpack.c.0.s8 %v3819
        %v3821 = vlaneseq
        %v3822 = vshrl.u32 %v3821, 7
        %v3823 = vsub.s32 %v3820, %v3822
        %v3824 = vrot.slane %v3817, %v3823
        %v3825 = vcombine.low %v3800, %v3808
        %v3826 = vcombine.high %v3800, %v3808
        %v3828 = vunpack.c.l.s4 1934713408
        %v3829 = vunpack.c.0.s8 %v3828
        %v3830 = vlaneseq
        %v3831 = vshrl.u32 %v3830, 7
        %v3832 = vsub.s32 %v3829, %v3831
        %v3833 = vrot.slane %v3825, %v3832
        %v3835 = vunpack.c.l.s4 1934713408
        %v3836 = vunpack.c.0.s8 %v3835
        %v3837 = vlaneseq
        %v3838 = vshrl.u32 %v3837, 7
        %v3839 = vsub.s32 %v3836, %v3838
        %v3840 = vrot.slane %v3826, %v3839
        %v3841 = vcombine.low %v3816, %v3824
        %v3842 = vcombine.high %v3816, %v3824
        %v3844 = vunpack.c.l.s4 1934713408
        %v3845 = vunpack.c.0.s8 %v3844
        %v3846 = vlaneseq
        %v3847 = vshrl.u32 %v3846, 7
        %v3848 = vsub.s32 %v3845, %v3847
        %v3849 = vrot.slane %v3841, %v3848
        %v3851 = vunpack.c.l.s4 1934713408
        %v3852 = vunpack.c.0.s8 %v3851
        %v3853 = vlaneseq
        %v3854 = vshrl.u32 %v3853, 7
        %v3855 = vsub.s32 %v3852, %v3854
        %v3856 = vrot.slane %v3842, %v3855
        %v3857 = vcombine.low %v3833, %v3849
        %v3858 = vcombine.high %v3833, %v3849
        %v3859 = vcombine.low %v3840, %v3856
        %v3860 = vcombine.high %v3840, %v3856
        %3862 = vrot.lane.b32.xlu0 %v3858, 8
        %v3863 = vpop.permute.xlu0 %3862
        %3866 = vrot.lane.b32.xlu0 %v3859, 16
        %v3867 = vpop.permute.xlu0 %3866
        %3870 = vrot.lane.b32.xlu0 %v3860, 24
        %v3871 = vpop.permute.xlu0 %3870
        %v3873 = vsel %vm1545, %v3857, %v3863
        %v3874 = vsel %vm2346, %v3873, %v3867
        %v3875 = vsel %vm2348, %v3874, %v3871
        %v3877 = vlaneseq
        %v3878 = vshrl.u32 %v3877, 7
        %v3879 = vsub.s32 0, %v3878
        %v3880 = vrot.slane %v2633, %v3879
        %v3883 = vsel %vm1023, %v3875, 0
        %3885 = vmatprep.subr.mxu0 0.0
        %3886 = vmatpush1.msra.mxu0 %v2629
        %3887 = vmatprep.subr.mxu0 0.0
        %3888 = vmatpush1.msra.mxu0 %v2630
        %3889 = vmatprep.subr.mxu0 0.0
        %3890 = vmatpush1.msra.mxu0 %v2631
        %3891 = vmatprep.subr.mxu0 0.0
        %3892 = vmatpush1.msra.mxu0 %v2632
        %3893 = vmatprep.subr.mxu0 0.0
        %3894 = vmatpush1.msra.mxu0 0.0
        %3895 = vmatprep.subr.mxu0 0.0
        %3896 = vmatpush1.msra.mxu0 0.0
        %3897 = vmatprep.subr.mxu0 0.0
        %3898 = vmatpush1.msra.mxu0 0.0
        %3899 = vmatprep.subr.mxu0 0.0
        %3900 = vmatpush1.msra.mxu0 0.0
        %3901 = vmatprep.subr.mxu0 0.0
        %3902 = vmatpush1.msra.mxu0 0.0
        %3903 = vmatprep.subr.mxu0 0.0
        %3904 = vmatpush1.msra.mxu0 0.0
        %3905 = vmatprep.subr.mxu0 0.0
        %3906 = vmatpush1.msra.mxu0 0.0
        %3907 = vmatprep.subr.mxu0 0.0
        %3908 = vmatpush1.msra.mxu0 0.0
        %3909 = vmatprep.subr.mxu0 0.0
        %3910 = vmatpush1.msra.mxu0 0.0
        %3911 = vmatprep.subr.mxu0 0.0
        %3912 = vmatpush1.msra.mxu0 0.0
        %3913 = vmatprep.subr.mxu0 0.0
        %3914 = vmatpush1.msra.mxu0 0.0
        %3915 = vmatprep.subr.mxu0 0.0
        %3916 = vmatpush1.msra.mxu0 0.0
        %3917 = vmatprep.subr.mxu0 0.0
        %3918 = vmatpush1.msra.mxu0 0.0
        %3919 = vmatprep.subr.mxu0 0.0
        %3920 = vmatpush1.msra.mxu0 0.0
        %3921 = vmatprep.subr.mxu0 0.0
        %3922 = vmatpush1.msra.mxu0 0.0
        %3923 = vmatprep.subr.mxu0 0.0
        %3924 = vmatpush1.msra.mxu0 0.0
        %3925 = vmatprep.subr.mxu0 0.0
        %3926 = vmatpush1.msra.mxu0 0.0
        %3927 = vmatprep.subr.mxu0 0.0
        %3928 = vmatpush1.msra.mxu0 0.0
        %3929 = vmatprep.subr.mxu0 0.0
        %3930 = vmatpush1.msra.mxu0 0.0
        %3931 = vmatprep.subr.mxu0 0.0
        %3932 = vmatpush1.msra.mxu0 0.0
        %3933 = vmatprep.subr.mxu0 0.0
        %3934 = vmatpush1.msra.mxu0 0.0
        %3935 = vmatprep.subr.mxu0 0.0
        %3936 = vmatpush1.msra.mxu0 0.0
        %3937 = vmatprep.subr.mxu0 0.0
        %3938 = vmatpush1.msra.mxu0 0.0
        %3939 = vmatprep.subr.mxu0 0.0
        %3940 = vmatpush1.msra.mxu0 0.0
        %3941 = vmatprep.subr.mxu0 0.0
        %3942 = vmatpush1.msra.mxu0 0.0
        %3943 = vmatprep.subr.mxu0 0.0
        %3944 = vmatpush1.msra.mxu0 0.0
        %3945 = vmatprep.subr.mxu0 0.0
        %3946 = vmatpush1.msra.mxu0 0.0
        %3947 = vmatprep.subr.mxu0 0.0
        %3948 = vmatpush1.msra.mxu0 0.0
        %3949 = vmatprep.mubr.f32.mxu0 0.0
        %3950 = vmatmul.mubr.f32.gmra.mrb[0].mxu0 %v3883
        %v3951 = vpop.f32.mrb[0].mxu0
        %v3952 = vadd.f32 %v3880, %v3951
        %v3953 = vpop.f32.mrb[0].mxu0
        %3954 = vdwg.mxu0
        %v3955 = vadd.f32 %v2459, %v3952
        %v3956 = vld [vmem:[#allocation19] sm:$0x1]
        %v3957 = vld [vmem:[#allocation20] sm:$0x1]
        %v3958 = vsel %vm1023, %v3955, 0.0
        %3959 = vadd.xlane.f32.xlu0 %v3958
        %v3960 = vpop.xlane.xlu0 %3959
        %v3961 = vmul.f32 %v3960, %v2435
        %v3962 = vsub.f32 %v3955, %v3961
        %v3963 = vmul.f32 %v3962, %v3962
        %v3964 = vsel %vm1023, %v3963, 0.0
        %3965 = vadd.xlane.f32.xlu0 %v3964
        %v3966 = vpop.xlane.xlu0 %3965
        %v3967 = vmul.f32 %v3966, %v2435
        %v3968 = vadd.f32 %v3967, 1e-05
        %v3969 = vrsqrt.pop %v3968
        %v3970 = vmul.f32 %v3962, %v3969
        %v3972 = vlaneseq
        %v3973 = vshrl.u32 %v3972, 7
        %v3974 = vsub.s32 0, %v3973
        %v3975 = vrot.slane %v3956, %v3974
        %v3977 = vmul.f32 %v3970, %v3975
        %v3979 = vlaneseq
        %v3980 = vshrl.u32 %v3979, 7
        %v3981 = vsub.s32 0, %v3980
        %v3982 = vrot.slane %v3957, %v3981
        %v3984 = vadd.f32 %v3977, %v3982
        %v3985 = vld [vmem:[#allocation22] sm:$0xff]
        %v3986 = vld [vmem:[#allocation22 + $0x8] sm:$0xff]
        %v3987 = vld [vmem:[#allocation22 + $0x10] sm:$0xff]
        %v3988 = vld [vmem:[#allocation22 + $0x18] sm:$0xff]
        %v3989 = vld [vmem:[#allocation23] sm:$0x1]
        %v3991 = vlaneseq
        %v3992 = vshrl.u32 %v3991, 7
        %v3993 = vsub.s32 0, %v3992
        %v3994 = vrot.slane %v3989, %v3993
        %v3997 = vsel %vm1023, %v3984, 0
        %3999 = vmatprep.subr.mxu0 0.0
        %4000 = vmatpush1.msra.mxu0 %v3985
        %4001 = vmatprep.subr.mxu0 0.0
        %4002 = vmatpush1.msra.mxu0 %v3986
        %4003 = vmatprep.subr.mxu0 0.0
        %4004 = vmatpush1.msra.mxu0 %v3987
        %4005 = vmatprep.subr.mxu0 0.0
        %4006 = vmatpush1.msra.mxu0 %v3988
        %4007 = vmatprep.subr.mxu0 0.0
        %4008 = vmatpush1.msra.mxu0 0.0
        %4009 = vmatprep.subr.mxu0 0.0
        %4010 = vmatpush1.msra.mxu0 0.0
        %4011 = vmatprep.subr.mxu0 0.0
        %4012 = vmatpush1.msra.mxu0 0.0
        %4013 = vmatprep.subr.mxu0 0.0
        %4014 = vmatpush1.msra.mxu0 0.0
        %4015 = vmatprep.subr.mxu0 0.0
        %4016 = vmatpush1.msra.mxu0 0.0
        %4017 = vmatprep.subr.mxu0 0.0
        %4018 = vmatpush1.msra.mxu0 0.0
        %4019 = vmatprep.subr.mxu0 0.0
        %4020 = vmatpush1.msra.mxu0 0.0
        %4021 = vmatprep.subr.mxu0 0.0
        %4022 = vmatpush1.msra.mxu0 0.0
        %4023 = vmatprep.subr.mxu0 0.0
        %4024 = vmatpush1.msra.mxu0 0.0
        %4025 = vmatprep.subr.mxu0 0.0
        %4026 = vmatpush1.msra.mxu0 0.0
        %4027 = vmatprep.subr.mxu0 0.0
        %4028 = vmatpush1.msra.mxu0 0.0
        %4029 = vmatprep.subr.mxu0 0.0
        %4030 = vmatpush1.msra.mxu0 0.0
        %4031 = vmatprep.subr.mxu0 0.0
        %4032 = vmatpush1.msra.mxu0 0.0
        %4033 = vmatprep.subr.mxu0 0.0
        %4034 = vmatpush1.msra.mxu0 0.0
        %4035 = vmatprep.subr.mxu0 0.0
        %4036 = vmatpush1.msra.mxu0 0.0
        %4037 = vmatprep.subr.mxu0 0.0
        %4038 = vmatpush1.msra.mxu0 0.0
        %4039 = vmatprep.subr.mxu0 0.0
        %4040 = vmatpush1.msra.mxu0 0.0
        %4041 = vmatprep.subr.mxu0 0.0
        %4042 = vmatpush1.msra.mxu0 0.0
        %4043 = vmatprep.subr.mxu0 0.0
        %4044 = vmatpush1.msra.mxu0 0.0
        %4045 = vmatprep.subr.mxu0 0.0
        %4046 = vmatpush1.msra.mxu0 0.0
        %4047 = vmatprep.subr.mxu0 0.0
        %4048 = vmatpush1.msra.mxu0 0.0
        %4049 = vmatprep.subr.mxu0 0.0
        %4050 = vmatpush1.msra.mxu0 0.0
        %4051 = vmatprep.subr.mxu0 0.0
        %4052 = vmatpush1.msra.mxu0 0.0
        %4053 = vmatprep.subr.mxu0 0.0
        %4054 = vmatpush1.msra.mxu0 0.0
        %4055 = vmatprep.subr.mxu0 0.0
        %4056 = vmatpush1.msra.mxu0 0.0
        %4057 = vmatprep.subr.mxu0 0.0
        %4058 = vmatpush1.msra.mxu0 0.0
        %4059 = vmatprep.subr.mxu0 0.0
        %4060 = vmatpush1.msra.mxu0 0.0
        %4061 = vmatprep.subr.mxu0 0.0
        %4062 = vmatpush1.msra.mxu0 0.0
        %4063 = vmatprep.mubr.f32.mxu0 0.0
        %4064 = vmatmul.mubr.f32.gmra.mrb[0].mxu0 %v3997
        %v4065 = vpop.f32.mrb[0].mxu0
        %v4066 = vadd.f32 %v3994, %v4065
        %v4067 = vpop.f32.mrb[0].mxu0
        %4068 = vdwg.mxu0
        %v4069 = vmax.f32 %v4066, 0.0
        %v4070 = vld [vmem:[%s20] sm:$0xff]
        %v4071 = vld [vmem:[%s20 + $0x8] sm:$0xff]
        %v4072 = vld [vmem:[%s20 + $0x10] sm:$0xff]
        %v4073 = vld [vmem:[%s20 + $0x18] sm:$0xff]
        %v4074 = vld [vmem:[%s20 + $0x20] sm:$0xff]
        %v4075 = vld [vmem:[%s20 + $0x28] sm:$0xff]
        %v4076 = vld [vmem:[%s20 + $0x30] sm:$0xff]
        %v4077 = vld [vmem:[%s20 + $0x38] sm:$0xff]
        %v4078 = vld [vmem:[#allocation25] sm:$0x1]
        %v4080 = vlaneseq
        %v4081 = vshrl.u32 %v4080, 7
        %v4082 = vsub.s32 0, %v4081
        %v4083 = vrot.slane %v4078, %v4082
        %vm4085 = vcmask 523264
        %v4087 = vsel %vm4085, %v4069, 0
        %4089 = vmatprep.subr.mxu0 0.0
        %4090 = vmatpush1.msra.mxu0 %v4070
        %4091 = vmatprep.subr.mxu0 0.0
        %4092 = vmatpush1.msra.mxu0 %v4071
        %4093 = vmatprep.subr.mxu0 0.0
        %4094 = vmatpush1.msra.mxu0 %v4072
        %4095 = vmatprep.subr.mxu0 0.0
        %4096 = vmatpush1.msra.mxu0 %v4073
        %4097 = vmatprep.subr.mxu0 0.0
        %4098 = vmatpush1.msra.mxu0 %v4074
        %4099 = vmatprep.subr.mxu0 0.0
        %4100 = vmatpush1.msra.mxu0 %v4075
        %4101 = vmatprep.subr.mxu0 0.0
        %4102 = vmatpush1.msra.mxu0 %v4076
        %4103 = vmatprep.subr.mxu0 0.0
        %4104 = vmatpush1.msra.mxu0 %v4077
        %4105 = vmatprep.subr.mxu0 0.0
        %4106 = vmatpush1.msra.mxu0 0.0
        %4107 = vmatprep.subr.mxu0 0.0
        %4108 = vmatpush1.msra.mxu0 0.0
        %4109 = vmatprep.subr.mxu0 0.0
        %4110 = vmatpush1.msra.mxu0 0.0
        %4111 = vmatprep.subr.mxu0 0.0
        %4112 = vmatpush1.msra.mxu0 0.0
        %4113 = vmatprep.subr.mxu0 0.0
        %4114 = vmatpush1.msra.mxu0 0.0
        %4115 = vmatprep.subr.mxu0 0.0
        %4116 = vmatpush1.msra.mxu0 0.0
        %4117 = vmatprep.subr.mxu0 0.0
        %4118 = vmatpush1.msra.mxu0 0.0
        %4119 = vmatprep.subr.mxu0 0.0
        %4120 = vmatpush1.msra.mxu0 0.0
        %4121 = vmatprep.subr.mxu0 0.0
        %4122 = vmatpush1.msra.mxu0 0.0
        %4123 = vmatprep.subr.mxu0 0.0
        %4124 = vmatpush1.msra.mxu0 0.0
        %4125 = vmatprep.subr.mxu0 0.0
        %4126 = vmatpush1.msra.mxu0 0.0
        %4127 = vmatprep.subr.mxu0 0.0
        %4128 = vmatpush1.msra.mxu0 0.0
        %4129 = vmatprep.subr.mxu0 0.0
        %4130 = vmatpush1.msra.mxu0 0.0
        %4131 = vmatprep.subr.mxu0 0.0
        %4132 = vmatpush1.msra.mxu0 0.0
        %4133 = vmatprep.subr.mxu0 0.0
        %4134 = vmatpush1.msra.mxu0 0.0
        %4135 = vmatprep.subr.mxu0 0.0
        %4136 = vmatpush1.msra.mxu0 0.0
        %4137 = vmatprep.subr.mxu0 0.0
        %4138 = vmatpush1.msra.mxu0 0.0
        %4139 = vmatprep.subr.mxu0 0.0
        %4140 = vmatpush1.msra.mxu0 0.0
        %4141 = vmatprep.subr.mxu0 0.0
        %4142 = vmatpush1.msra.mxu0 0.0
        %4143 = vmatprep.subr.mxu0 0.0
        %4144 = vmatpush1.msra.mxu0 0.0
        %4145 = vmatprep.subr.mxu0 0.0
        %4146 = vmatpush1.msra.mxu0 0.0
        %4147 = vmatprep.subr.mxu0 0.0
        %4148 = vmatpush1.msra.mxu0 0.0
        %4149 = vmatprep.subr.mxu0 0.0
        %4150 = vmatpush1.msra.mxu0 0.0
        %4151 = vmatprep.subr.mxu0 0.0
        %4152 = vmatpush1.msra.mxu0 0.0
        %4153 = vmatprep.mubr.f32.mxu0 0.0
        %4154 = vmatmul.mubr.f32.gmra.mrb[0].mxu0 %v4087
        %v4155 = vpop.f32.mrb[0].mxu0
        %v4156 = vadd.f32 %v4083, %v4155
        %v4157 = vpop.f32.mrb[0].mxu0
        %4158 = vdwg.mxu0
        %v4159 = vadd.f32 %v3984, %v4156
        %v4160 = vld [vmem:[#allocation26] sm:$0x1]
        %v4161 = vld [vmem:[#allocation28] sm:$0x1]
        %v4162 = vsel %vm1023, %v4159, 0.0
        %4163 = vadd.xlane.f32.xlu0 %v4162
        %v4164 = vpop.xlane.xlu0 %4163
        %v4165 = vmul.f32 %v4164, %v2435
        %v4166 = vsub.f32 %v4159, %v4165
        %v4167 = vmul.f32 %v4166, %v4166
        %v4168 = vsel %vm1023, %v4167, 0.0
        %4169 = vadd.xlane.f32.xlu0 %v4168
        %v4170 = vpop.xlane.xlu0 %4169
        %v4171 = vmul.f32 %v4170, %v2435
        %v4172 = vadd.f32 %v4171, 1e-05
        %v4173 = vrsqrt.pop %v4172
        %v4174 = vmul.f32 %v4166, %v4173
        %v4176 = vlaneseq
        %v4177 = vshrl.u32 %v4176, 7
        %v4178 = vsub.s32 0, %v4177
        %v4179 = vrot.slane %v4160, %v4178
        %v4181 = vmul.f32 %v4174, %v4179
        %v4183 = vlaneseq
        %v4184 = vshrl.u32 %v4183, 7
        %v4185 = vsub.s32 0, %v4184
        %v4186 = vrot.slane %v4161, %v4185
        %v4188 = vadd.f32 %v4181, %v4186
        %4189 = vst.msk [vmem:[%s997] sm:$0xff] %vm1023, %v4188
        %s4190 = sand.u32 %s581, 1
        %s4191 = scalar_lea.sflag [#allocation4], %s4190
        %s4192 = sand.u32 %s581, 1
        %s4193 = smul.addr %s4192, 8
        %s4194 = scalar_lea.vmem [#allocation29], %s4193
        // Predicated region
        $region185: #{decoder_layer.1} parent=115 // pred_check
          %p4195 = pneg %p591
        $region186: #{decoder_layer.1} parent=115 // pred_check_branch
          %4197 = sbr.rel (%p4195) target = $region188
        $region187: #{decoder_layer.1} parent=115 // pred_region
          %s4199 = ssub.s32 128, 128
          %4200 = vsyncadd %s4191, %s4199
          %s4201 = smul.addr %s49, 128
          %s4202 = scalar_lea.hbm %s24, %s4201
          %s4204 = sshll.u32 %s4194, 4
          %s4205 = int_to_ptr.vmem [resolvable:$true] %s4204
          %4207 = dma.vmem_to_hbm [thread:$0]  %s4205, 128, %s4202, %s4191
        $region188: #{decoder_layer.1} parent=115 // pred_fallthru
          _
      $region116: #{decoder_layer.1} parent=5 // pred_fallthru
        _
      %p4208 = scmp.le.s32.totalorder 2, %s44
      // Predicated region
      $region189: #{decoder_layer.1} parent=5 // pred_check
        %p4209 = pneg %p4208
      $region190: #{decoder_layer.1} parent=5 // pred_check_branch
        %4211 = sbr.rel (%p4209) target = $region192
      $region191: #{decoder_layer.1} parent=5 // pred_region
        %s4212 = ssub.s32 %s44, 2
        // Predicated region
        $region193: #{decoder_layer.1} parent=191 // pred_check
          %p4213 = pneg %p597
        $region194: #{decoder_layer.1} parent=191 // pred_check_branch
          %4215 = sbr.rel (%p4213) target = $region196
        $region195: #{decoder_layer.1} parent=191 // pred_region
          %s4216 = sand.u32 %s582, 1
          %s4217 = scalar_lea.sflag [#allocation4], %s4216
          %s4218 = sand.u32 %s582, 1
          %s4219 = smul.addr %s4218, 8
          %s4220 = scalar_lea.vmem [#allocation29], %s4219
          %4221 = dma.done %s4217, 128
        $region196: #{decoder_layer.1} parent=191 // pred_fallthru
          _
      $region192: #{decoder_layer.1} parent=5 // pred_fallthru
        _
    $region6: #{decoder_layer.1} parent=1 // loop_footer
      %s48 = sadd.s32 1, %s44
    $region7: #{decoder_layer.1} parent=1 // loop_footer_branch
      %43 = sbr.rel target = $region3
    $region8: #{decoder_layer.1} parent=1 // loop_exit
      _
    %4222 = vsyncpa [#allocation3], 1
    %s4223 = scalar_lea.sflag [#allocation3], 1
    %4224 = vsyncpa %s4223, 1
    %4225 = vsyncpa [#allocation6], 1
    %4226 = vsyncpa [#allocation9], 1
    %4227 = vsyncpa [#allocation12], 1
    %4228 = vsyncpa [#allocation15], 1
    %4229 = vsyncpa [#allocation18], 1
    %4230 = vsyncpa [#allocation21], 1
    %4231 = vsyncpa [#allocation24], 1
    %4232 = vsyncpa [#allocation27], 1
    %4233 = vsyncpa [#allocation4], 1
    %s4234 = scalar_lea.sflag [#allocation4], 1
    %4235 = vsyncpa %s4234, 1

</llo_original>
